<compile_context>
chip_gen: v7x
topology: tpu7x:2x2x1
jax: 0.10.0
libtpu: 0.0.40
codegen_flags: <defaults>
</compile_context>

<pallas_src>
import functools

import numpy as np
import jax
import jax.numpy as jnp
from jax.experimental import pallas as pl
from jax.experimental.pallas import tpu as pltpu


def _vmem_limit_bytes():
    """Generation-aware VMEM budget (v7x: 64 MiB physical, v5e/v6e: 128 MiB)."""
    try:
        info = pltpu.get_tpu_info()
        cap = int(getattr(info, "vmem_capacity_bytes", 64 * 1024 * 1024))
    except Exception:  # pragma: no cover - conservative fallback
        cap = 64 * 1024 * 1024
    return max(16 * 1024 * 1024, min(cap * 3 // 4, 96 * 1024 * 1024))


# -----------------------------------------------------------------------------
# Fused conv1 + conv2 + conv3 kernel (all intermediates in VMEM).
#
# Geometry (84x84 input, downsample=True):
#   conv1 8x8/s4  -> via input space-to-depth(4): 2x2/s1 over a 21x21 grid, valid 20x20
#   conv2 4x4/s2  -> via in-VMEM space-to-depth(2): 2x2/s1 over a 10x10 grid, valid 9x9
#   conv3 3x3/s1  -> 3x3/s1 over the 10-wide storage grid, valid 7x7
# Row-shift trick: activations are flattened (row-major) on their storage grid, so a
# kernel offset (di, dj) is a static row shift of di*W + dj; all kh*kw shifted windows
# are concatenated along lanes (im2col in VMEM) and hit the MXU as one matmul.
# Rows whose column index wraps are finite garbage and are never read downstream.
# -----------------------------------------------------------------------------
def _fused_cnn_kernel(x_ref, w1_ref, b1_ref, w2_ref, b2_ref, w3_ref, b3_ref,
                      o_ref, h1_ref, h2i_ref, *, batch_tile):
    """x_ref : (BT, 441, 16*Cin) bf16  - per-image 21x21 storage grid (s2d(4) of input),
                flattened row-major, channel order (bi, bj, c).
       w*_ref: flattened im2col weights (K, Cout) bf16;  b*_ref: (1, Cout) f32.
       o_ref : (BT, 49, 32) bf16       - valid 7x7 conv3 output, rows in (h, w) order.
       h1_ref : (424, 32) f32 VMEM scratch  - conv1 output on the 21-wide storage grid.
       h2i_ref: (104, 128) bf16 VMEM scratch - s2d(2) of conv1's valid 20x20 corner."""
    for b in range(batch_tile):
        xb = x_ref[b]                                                # (441, C0) bf16

        # ---- conv1: 2x2/s1 over the 21-grid, single im2col matmul -------------
        # Output rows 0..418 (max valid storage row 19*21+19 = 418); needs x rows <= 440.
        p1 = jnp.concatenate([xb[s:s + 419, :] for s in (0, 1, 21, 22)], axis=-1)
        h1 = jnp.dot(p1, w1_ref[...], preferred_element_type=jnp.float32)
        h1 = jnp.maximum(h1 + b1_ref[...], 0.0)                      # (419, 32) f32
        h1_ref[pl.ds(0, 419), :] = h1

        # ---- space-to-depth(2) of the valid 20x20 corner, in VMEM --------------
        # h2i row u*10+v, channel block (bi, bj) = h1 at storage (2u+bi, 2v+bj).
        for u in range(10):
            pieces = [h1_ref[pl.ds((2 * u + bi) * 21 + bj, 10, 2), :]   # (10, 32)
                      for bi in (0, 1) for bj in (0, 1)]
            h2i_ref[pl.ds(10 * u, 10), :] = (
                jnp.concatenate(pieces, axis=-1).astype(jnp.bfloat16))  # (10, 128)

        # ---- conv2: 2x2/s1 over the 10-grid, single im2col matmul --------------
        h2all = h2i_ref[pl.ds(0, 100), :]                            # (100, 128)
        p2 = jnp.concatenate([h2all[s:s + 89, :] for s in (0, 1, 10, 11)], axis=-1)
        h2 = jnp.dot(p2, w2_ref[...], preferred_element_type=jnp.float32)
        h2 = jnp.maximum(h2 + b2_ref[...], 0.0).astype(jnp.bfloat16)  # (89, 64)

        # ---- conv3: 3x3/s1 over the 10-grid, single im2col matmul --------------
        p3 = jnp.concatenate([h2[s:s + 67, :]
                              for s in (0, 1, 2, 10, 11, 12, 20, 21, 22)], axis=-1)
        h3 = jnp.dot(p3, w3_ref[...], preferred_element_type=jnp.float32)
        h3 = jnp.maximum(h3 + b3_ref[...], 0.0).astype(jnp.bfloat16)  # (67, 32)

        # ---- gather the valid 7x7 rows (h-major) and write ----------------------
        f5 = jnp.concatenate([h3[10 * i:10 * i + 7, :] for i in range(7)], axis=0)
        o_ref[b] = f5                                                # (49, 32)


def _fused_convs(x_flat, kp, batch_tile):
    """x_flat: (B, 441, 16*Cin) bf16 -> (B, 49, 32) bf16 (valid conv3 output, NHWC rows)."""
    b, rows, c0 = x_flat.shape
    assert rows == 441 and b % batch_tile == 0
    num_tiles = b // batch_tile
    kernel = functools.partial(_fused_cnn_kernel, batch_tile=batch_tile)
    return pl.pallas_call(
        kernel,
        out_shape=jax.ShapeDtypeStruct((b, 49, 32), jnp.bfloat16),
        grid=(num_tiles,),
        in_specs=[
            pl.BlockSpec((batch_tile, rows, c0), lambda i: (i, 0, 0)),   # batch tile
            pl.BlockSpec(kp["w1"].shape, lambda i: (0, 0)),              # resident weights
            pl.BlockSpec(kp["b1"].shape, lambda i: (0, 0)),
            pl.BlockSpec(kp["w2"].shape, lambda i: (0, 0)),
            pl.BlockSpec(kp["b2"].shape, lambda i: (0, 0)),
            pl.BlockSpec(kp["w3"].shape, lambda i: (0, 0)),
            pl.BlockSpec(kp["b3"].shape, lambda i: (0, 0)),
        ],
        out_specs=pl.BlockSpec((batch_tile, 49, 32), lambda i: (i, 0, 0)),
        scratch_shapes=[pltpu.VMEM((424, 32), jnp.float32),      # conv1 output grid
                        pltpu.VMEM((104, 128), jnp.bfloat16)],   # s2d(2) conv2 input
        compiler_params=pltpu.CompilerParams(
            dimension_semantics=("parallel",),
            vmem_limit_bytes=_vmem_limit_bytes()),
    )(x_flat, kp["w1"], kp["b1"], kp["w2"], kp["b2"], kp["w3"], kp["b3"])


def _pick_batch_tile(b, max_tile=8):
    """Largest divisor of b (<= max_tile) that still gives >= 2 grid steps (v7x)."""
    for bt in (max_tile, 4, 2, 1):
        if bt <= max_tile and b % bt == 0 and b // bt >= 2:
            return bt
    return max(b, 1)


# -----------------------------------------------------------------------------
# Dense (matmul + bias) kernel for the final FC; resident weights, row tiling.
# -----------------------------------------------------------------------------
def _dense_kernel(x_ref, w_ref, b_ref, o_ref, *, apply_relu):
    acc = jnp.dot(x_ref[...], w_ref[...], preferred_element_type=jnp.float32)
    acc += b_ref[...]
    if apply_relu:
        acc = jnp.maximum(acc, 0.0)
    o_ref[...] = acc.astype(o_ref.dtype)


def dense(x, w, bias, apply_relu=False, out_dtype=jnp.float32, max_tile=512):
    n, k = x.shape
    _, m = w.shape
    if n <= max_tile:
        tile, num_tiles = n, 1
    else:
        tile = max_tile
        num_tiles = -(-n // tile)
        pad = num_tiles * tile - n
        if pad:
            x = jnp.pad(x, ((0, pad), (0, 0)))   # tiny FC input only (~3 KB/row tile)
    out = pl.pallas_call(
        functools.partial(_dense_kernel, apply_relu=apply_relu),
        out_shape=jax.ShapeDtypeStruct((num_tiles * tile, m), out_dtype),
        grid=(num_tiles,),
        in_specs=[
            pl.BlockSpec((tile, k), lambda i: (i, 0)),
            pl.BlockSpec((k, m), lambda i: (0, 0)),    # resident weights
            pl.BlockSpec((1, m), lambda i: (0, 0)),    # resident bias
        ],
        out_specs=pl.BlockSpec((tile, m), lambda i: (i, 0)),
        compiler_params=pltpu.CompilerParams(
            dimension_semantics=("parallel",),
            vmem_limit_bytes=_vmem_limit_bytes()),
    )(x, w, bias)
    return out[:n]


# -----------------------------------------------------------------------------
# Parameters: orthogonal init (relu gain) in PyTorch layout, then ONE-TIME re-layout
# into the flattened im2col matrices the kernels consume.
# -----------------------------------------------------------------------------
def orthogonal_init(key, shape, gain):
    rows = shape[0]
    cols = int(np.prod(shape[1:]))
    a = jax.random.normal(key, (max(rows, cols), min(rows, cols)), jnp.float32)
    q, r = jnp.linalg.qr(a)
    q = q * jnp.sign(jnp.diag(r))
    if rows < cols:
        q = q.T
    return (gain * q[:rows, :cols]).reshape(shape).astype(jnp.float32)


def make_nature_cnn_params(key, input_channels, feature_size):
    """PyTorch-layout parameters (Conv2d: (O, C, kh, kw), Linear: (out, in))."""
    gain = float(np.sqrt(2.0))  # nn.init.calculate_gain('relu')
    k1, k2, k3, k4 = jax.random.split(key, 4)
    final_conv_size = 32 * 7 * 7
    return {
        "conv1_w": orthogonal_init(k1, (32, input_channels, 8, 8), gain),
        "conv1_b": jnp.zeros((32,), jnp.float32),
        "conv2_w": orthogonal_init(k2, (64, 32, 4, 4), gain),
        "conv2_b": jnp.zeros((64,), jnp.float32),
        "conv3_w": orthogonal_init(k3, (32, 64, 3, 3), gain),
        "conv3_b": jnp.zeros((32,), jnp.float32),
        "fc_w": orthogonal_init(k4, (feature_size, final_conv_size), gain),
        "fc_b": jnp.zeros((feature_size,), jnp.float32),
    }


def _conv1_w_im2col(w):
    """(32, Cin, 8, 8) -> (4*16*Cin, 32): row = (e*2+f)*16*Cin + (bi*4+bj)*Cin + c."""
    o, cin, kh, kw = w.shape
    w = w.reshape(o, cin, 2, 4, 2, 4)        # (o, c, e, bi, f, bj); kh = 4e+bi, kw = 4f+bj
    w = w.transpose(2, 4, 3, 5, 1, 0)        # (e, f, bi, bj, c, o)
    return w.reshape(4 * 16 * cin, o)


def _conv2_w_im2col(w):
    """(64, 32, 4, 4) -> (4*4*32, 64): row = (e*2+f)*128 + (bi*2+bj)*32 + c."""
    o, cin, kh, kw = w.shape
    w = w.reshape(o, cin, 2, 2, 2, 2)        # (o, c, e, bi, f, bj); kh = 2e+bi, kw = 2f+bj
    w = w.transpose(2, 4, 3, 5, 1, 0)        # (e, f, bi, bj, c, o)
    return w.reshape(16 * cin, o)


def _conv3_w_im2col(w):
    """(32, 64, 3, 3) -> (9*64, 32): row = (di*3+dj)*64 + c."""
    o, cin, kh, kw = w.shape
    return w.transpose(2, 3, 1, 0).reshape(kh * kw * cin, o)


def _fc_w_nhwc(w, chw):
    """(feat, C*H*W) torch C-major flatten -> (H*W*C, feat) for NHWC flatten."""
    feat = w.shape[0]
    c, h, wd = chw
    w = w.reshape(feat, c, h, wd).transpose(0, 2, 3, 1).reshape(feat, h * wd * c)
    return w.T


def prepare_kernel_params(params):
    """One-time weight re-layout + dtype cast (outside the forward pass)."""
    return {
        "w1": _conv1_w_im2col(params["conv1_w"]).astype(jnp.bfloat16),
        "b1": params["conv1_b"].reshape(1, -1).astype(jnp.float32),
        "w2": _conv2_w_im2col(params["conv2_w"]).astype(jnp.bfloat16),
        "b2": params["conv2_b"].reshape(1, -1).astype(jnp.float32),
        "w3": _conv3_w_im2col(params["conv3_w"]).astype(jnp.bfloat16),
        "b3": params["conv3_b"].reshape(1, -1).astype(jnp.float32),
        "fc_w": _fc_w_nhwc(params["fc_w"], (32, 7, 7)).astype(jnp.bfloat16),
        "fc_b": params["fc_b"].reshape(1, -1).astype(jnp.float32),
    }


# -----------------------------------------------------------------------------
# NatureCNN forward (downsample=True, end_with_relu=False)
# -----------------------------------------------------------------------------
def nature_cnn_forward(kparams, inputs, fmaps=False):
    """inputs: (B, C, 84, 84) NCHW float -> (B, feature_size) float32."""
    b, cin, h, w = inputs.shape
    assert h == 84 and w == 84, "downsample=True NatureCNN expects 84x84 inputs"
    # One cheap XLA transform of the raw input: NCHW -> NHWC -> space-to-depth(4)
    # -> per-image flattened (441, 16*C) bf16.  Channel order (bi, bj, c).
    x = inputs.transpose(0, 2, 3, 1)
    x = x.reshape(b, 21, 4, 21, 4, cin).transpose(0, 1, 3, 2, 4, 5)
    x = x.reshape(b, 441, 16 * cin).astype(jnp.bfloat16)

    bt = _pick_batch_tile(b)
    f5 = _fused_convs(x, kparams, bt)                    # (B, 49, 32) bf16, NHWC rows
    flat = f5.reshape(b, 49 * 32)                        # NHWC flatten (fc_w pre-permuted)
    f7 = dense(flat, kparams["fc_w"], kparams["fc_b"], apply_relu=False)
    out = f7                                             # main[8:] empty; end_with_relu=False
    if fmaps:
        return {"f5": f5.reshape(b, 7, 7, 32).astype(jnp.float32), "f7": f7, "out": out}
    return out


# -----------------------------------------------------------------------------
# Plain-XLA float32 reference (mirrors the PyTorch module) for validation.
# -----------------------------------------------------------------------------
def nature_cnn_reference(params, inputs):
    hp = jax.lax.Precision.HIGHEST

    def conv(x, w, b, stride):
        y = jax.lax.conv_general_dilated(
            x, w, window_strides=(stride, stride), padding="VALID",
            dimension_numbers=("NCHW", "OIHW", "NCHW"), precision=hp)
        return y + b.reshape(1, -1, 1, 1)

    h = jax.nn.relu(conv(inputs, params["conv1_w"], params["conv1_b"], 4))
    h = jax.nn.relu(conv(h, params["conv2_w"], params["conv2_b"], 2))
    h = jax.nn.relu(conv(h, params["conv3_w"], params["conv3_b"], 1))
    flat = h.reshape(h.shape[0], -1)
    return jnp.matmul(flat, params["fc_w"].T, precision=hp) + params["fc_b"]


if __name__ == "__main__":
    # downsample=True hard-codes final_conv_size = 32*7*7, i.e. 84x84 inputs.
    batch, input_channels, feature_size = 2, 4, 32
    key = jax.random.PRNGKey(0)
    pkey, bkey, xkey = jax.random.split(key, 3)

    params = make_nature_cnn_params(pkey, input_channels, feature_size)
    # The module inits biases to zero; use small non-zero biases in the test so the
    # bias path is exercised (forward semantics are parameter-agnostic).
    b1k, b2k, b3k, bfk = jax.random.split(bkey, 4)
    params["conv1_b"] = 0.1 * jax.random.normal(b1k, (32,), jnp.float32)
    params["conv2_b"] = 0.1 * jax.random.normal(b2k, (64,), jnp.float32)
    params["conv3_b"] = 0.1 * jax.random.normal(b3k, (32,), jnp.float32)
    params["fc_b"] = 0.1 * jax.random.normal(bfk, (feature_size,), jnp.float32)

    kparams = prepare_kernel_params(params)
    x = jax.random.normal(xkey, (batch, input_channels, 84, 84), jnp.float32)

    fwd = jax.jit(nature_cnn_forward)
    out = jax.block_until_ready(fwd(kparams, x))
    assert out.shape == (batch, feature_size), out.shape
    assert bool(jnp.all(jnp.isfinite(out)))

    # Numerical check vs. f32 XLA reference (bf16 MXU inputs -> ~1e-2 typical error).
    ref = jax.block_until_ready(nature_cnn_reference(params, x))
    rel_err = float(jnp.max(jnp.abs(out - ref)) / (jnp.max(jnp.abs(ref)) + 1e-6))
    assert rel_err < 0.05, rel_err

    print("KERNEL_OK")
</pallas_src>

<mosaic_0001>
module attributes {stable_mosaic.version = 11 : i64} {
  func.func @_fused_cnn_kernel(%arg0: i32, %arg1: memref<1x441x64xbf16, #tpu.memory_space<vmem>>, %arg2: memref<256x32xbf16, #tpu.memory_space<vmem>>, %arg3: memref<1x32xf32, #tpu.memory_space<vmem>>, %arg4: memref<512x64xbf16, #tpu.memory_space<vmem>>, %arg5: memref<1x64xf32, #tpu.memory_space<vmem>>, %arg6: memref<576x32xbf16, #tpu.memory_space<vmem>>, %arg7: memref<1x32xf32, #tpu.memory_space<vmem>>, %arg8: memref<1x49x32xbf16, #tpu.memory_space<vmem>>, %arg9: memref<424x32xf32, #tpu.memory_space<vmem>>, %arg10: memref<104x128xbf16, #tpu.memory_space<vmem>>) attributes {dimension_semantics = [#tpu.dimension_semantics<parallel>], iteration_bounds = array<i64: 2>, scalar_prefetch = 0 : i64, scratch_operands = 2 : i64, tpu.core_type = #tpu.core_type<tc>, window_params = [{transform_indices = @transform_0, window_bounds = array<i64: 1, 441, 64>}, {pipeline_mode = #tpu.pipeline_mode<synchronous>, transform_indices = @transform_1, window_bounds = array<i64: 256, 32>}, {pipeline_mode = #tpu.pipeline_mode<synchronous>, transform_indices = @transform_2, window_bounds = array<i64: 1, 32>}, {pipeline_mode = #tpu.pipeline_mode<synchronous>, transform_indices = @transform_3, window_bounds = array<i64: 512, 64>}, {pipeline_mode = #tpu.pipeline_mode<synchronous>, transform_indices = @transform_4, window_bounds = array<i64: 1, 64>}, {pipeline_mode = #tpu.pipeline_mode<synchronous>, transform_indices = @transform_5, window_bounds = array<i64: 576, 32>}, {pipeline_mode = #tpu.pipeline_mode<synchronous>, transform_indices = @transform_6, window_bounds = array<i64: 1, 32>}, {transform_indices = @transform_7, window_bounds = array<i64: 1, 49, 32>}]} {
    %c0 = arith.constant 0 : index
    %c0_0 = arith.constant 0 : index
    %c0_1 = arith.constant 0 : index
    %0 = vector.load %arg1[%c0, %c0_0, %c0_1] : memref<1x441x64xbf16, #tpu.memory_space<vmem>>, vector<1x441x64xbf16>
    %1 = vector.shape_cast %0 : vector<1x441x64xbf16> to vector<441x64xbf16>
    %2 = vector.extract_strided_slice %1 {offsets = [0, 0], sizes = [419, 64], strides = [1, 1]} : vector<441x64xbf16> to vector<419x64xbf16>
    %3 = vector.extract_strided_slice %1 {offsets = [1, 0], sizes = [419, 64], strides = [1, 1]} : vector<441x64xbf16> to vector<419x64xbf16>
    %4 = vector.extract_strided_slice %1 {offsets = [21, 0], sizes = [419, 64], strides = [1, 1]} : vector<441x64xbf16> to vector<419x64xbf16>
    %5 = vector.extract_strided_slice %1 {offsets = [22, 0], sizes = [419, 64], strides = [1, 1]} : vector<441x64xbf16> to vector<419x64xbf16>
    %6 = tpu.concatenate %2, %3, %4, %5 in 1 : vector<419x64xbf16>, vector<419x64xbf16>, vector<419x64xbf16>, vector<419x64xbf16> -> vector<419x256xbf16>
    %c0_2 = arith.constant 0 : index
    %c0_3 = arith.constant 0 : index
    %7 = vector.load %arg2[%c0_2, %c0_3] : memref<256x32xbf16, #tpu.memory_space<vmem>>, vector<256x32xbf16>
    %cst = arith.constant dense<0.000000e+00> : vector<419x32xf32>
    %8 = tpu.matmul %6, %7, %cst {dimension_numbers = #tpu.dot_dimension_numbers<[1], [0], [0], [1], [0, 0, 1, 1], [], []>} : vector<419x256xbf16>, vector<256x32xbf16>, vector<419x32xf32> -> vector<419x32xf32>
    %c0_4 = arith.constant 0 : index
    %c0_5 = arith.constant 0 : index
    %9 = vector.load %arg3[%c0_4, %c0_5] : memref<1x32xf32, #tpu.memory_space<vmem>>, vector<1x32xf32>
    %10 = vector.broadcast %9 : vector<1x32xf32> to vector<419x32xf32>
    %11 = arith.addf %8, %10 : vector<419x32xf32>
    %cst_6 = arith.constant 0.000000e+00 : f32
    %12 = vector.broadcast %cst_6 : f32 to vector<419x32xf32>
    %13 = arith.maximumf %11, %12 : vector<419x32xf32>
    %c0_7 = arith.constant 0 : index
    %c0_8 = arith.constant 0 : index
    %14 = vector.load %arg9[%c0_7, %c0_8] : memref<424x32xf32, #tpu.memory_space<vmem>>, vector<419x32xf32>
    tpu.vector_store %arg9[%c0_7, %c0_8], %13 {strides = array<i32>} : memref<424x32xf32, #tpu.memory_space<vmem>>, vector<419x32xf32>,
    %c0_9 = arith.constant 0 : index
    %c0_10 = arith.constant 0 : index
    %15 = tpu.strided_load %arg9[%c0_9, %c0_10] {strides = array<i32: 2, 1>} : memref<424x32xf32, #tpu.memory_space<vmem>>, vector<10x32xf32>
    %c1 = arith.constant 1 : index
    %c0_11 = arith.constant 0 : index
    %16 = tpu.strided_load %arg9[%c1, %c0_11] {strides = array<i32: 2, 1>} : memref<424x32xf32, #tpu.memory_space<vmem>>, vector<10x32xf32>
    %c21 = arith.constant 21 : index
    %c0_12 = arith.constant 0 : index
    %17 = tpu.strided_load %arg9[%c21, %c0_12] {strides = array<i32: 2, 1>} : memref<424x32xf32, #tpu.memory_space<vmem>>, vector<10x32xf32>
    %c22 = arith.constant 22 : index
    %c0_13 = arith.constant 0 : index
    %18 = tpu.strided_load %arg9[%c22, %c0_13] {strides = array<i32: 2, 1>} : memref<424x32xf32, #tpu.memory_space<vmem>>, vector<10x32xf32>
    %19 = tpu.concatenate %15, %16, %17, %18 in 1 : vector<10x32xf32>, vector<10x32xf32>, vector<10x32xf32>, vector<10x32xf32> -> vector<10x128xf32>
    %20 = arith.truncf %19 : vector<10x128xf32> to vector<10x128xbf16>
    %c0_14 = arith.constant 0 : index
    %c0_15 = arith.constant 0 : index
    %21 = vector.load %arg10[%c0_14, %c0_15] : memref<104x128xbf16, #tpu.memory_space<vmem>>, vector<10x128xbf16>
    tpu.vector_store %arg10[%c0_14, %c0_15], %20 {strides = array<i32>} : memref<104x128xbf16, #tpu.memory_space<vmem>>, vector<10x128xbf16>,
    %c42 = arith.constant 42 : index
    %c0_16 = arith.constant 0 : index
    %22 = tpu.strided_load %arg9[%c42, %c0_16] {strides = array<i32: 2, 1>} : memref<424x32xf32, #tpu.memory_space<vmem>>, vector<10x32xf32>
    %c43 = arith.constant 43 : index
    %c0_17 = arith.constant 0 : index
    %23 = tpu.strided_load %arg9[%c43, %c0_17] {strides = array<i32: 2, 1>} : memref<424x32xf32, #tpu.memory_space<vmem>>, vector<10x32xf32>
    %c63 = arith.constant 63 : index
    %c0_18 = arith.constant 0 : index
    %24 = tpu.strided_load %arg9[%c63, %c0_18] {strides = array<i32: 2, 1>} : memref<424x32xf32, #tpu.memory_space<vmem>>, vector<10x32xf32>
    %c64 = arith.constant 64 : index
    %c0_19 = arith.constant 0 : index
    %25 = tpu.strided_load %arg9[%c64, %c0_19] {strides = array<i32: 2, 1>} : memref<424x32xf32, #tpu.memory_space<vmem>>, vector<10x32xf32>
    %26 = tpu.concatenate %22, %23, %24, %25 in 1 : vector<10x32xf32>, vector<10x32xf32>, vector<10x32xf32>, vector<10x32xf32> -> vector<10x128xf32>
    %27 = arith.truncf %26 : vector<10x128xf32> to vector<10x128xbf16>
    %c10 = arith.constant 10 : index
    %c0_20 = arith.constant 0 : index
    %28 = vector.load %arg10[%c10, %c0_20] : memref<104x128xbf16, #tpu.memory_space<vmem>>, vector<10x128xbf16>
    tpu.vector_store %arg10[%c10, %c0_20], %27 {strides = array<i32>} : memref<104x128xbf16, #tpu.memory_space<vmem>>, vector<10x128xbf16>,
    %c84 = arith.constant 84 : index
    %c0_21 = arith.constant 0 : index
    %29 = tpu.strided_load %arg9[%c84, %c0_21] {strides = array<i32: 2, 1>} : memref<424x32xf32, #tpu.memory_space<vmem>>, vector<10x32xf32>
    %c85 = arith.constant 85 : index
    %c0_22 = arith.constant 0 : index
    %30 = tpu.strided_load %arg9[%c85, %c0_22] {strides = array<i32: 2, 1>} : memref<424x32xf32, #tpu.memory_space<vmem>>, vector<10x32xf32>
    %c105 = arith.constant 105 : index
    %c0_23 = arith.constant 0 : index
    %31 = tpu.strided_load %arg9[%c105, %c0_23] {strides = array<i32: 2, 1>} : memref<424x32xf32, #tpu.memory_space<vmem>>, vector<10x32xf32>
    %c106 = arith.constant 106 : index
    %c0_24 = arith.constant 0 : index
    %32 = tpu.strided_load %arg9[%c106, %c0_24] {strides = array<i32: 2, 1>} : memref<424x32xf32, #tpu.memory_space<vmem>>, vector<10x32xf32>
    %33 = tpu.concatenate %29, %30, %31, %32 in 1 : vector<10x32xf32>, vector<10x32xf32>, vector<10x32xf32>, vector<10x32xf32> -> vector<10x128xf32>
    %34 = arith.truncf %33 : vector<10x128xf32> to vector<10x128xbf16>
    %c20 = arith.constant 20 : index
    %c0_25 = arith.constant 0 : index
    %35 = vector.load %arg10[%c20, %c0_25] : memref<104x128xbf16, #tpu.memory_space<vmem>>, vector<10x128xbf16>
    tpu.vector_store %arg10[%c20, %c0_25], %34 {strides = array<i32>} : memref<104x128xbf16, #tpu.memory_space<vmem>>, vector<10x128xbf16>,
    %c126 = arith.constant 126 : index
    %c0_26 = arith.constant 0 : index
    %36 = tpu.strided_load %arg9[%c126, %c0_26] {strides = array<i32: 2, 1>} : memref<424x32xf32, #tpu.memory_space<vmem>>, vector<10x32xf32>
    %c127 = arith.constant 127 : index
    %c0_27 = arith.constant 0 : index
    %37 = tpu.strided_load %arg9[%c127, %c0_27] {strides = array<i32: 2, 1>} : memref<424x32xf32, #tpu.memory_space<vmem>>, vector<10x32xf32>
    %c147 = arith.constant 147 : index
    %c0_28 = arith.constant 0 : index
    %38 = tpu.strided_load %arg9[%c147, %c0_28] {strides = array<i32: 2, 1>} : memref<424x32xf32, #tpu.memory_space<vmem>>, vector<10x32xf32>
    %c148 = arith.constant 148 : index
    %c0_29 = arith.constant 0 : index
    %39 = tpu.strided_load %arg9[%c148, %c0_29] {strides = array<i32: 2, 1>} : memref<424x32xf32, #tpu.memory_space<vmem>>, vector<10x32xf32>
    %40 = tpu.concatenate %36, %37, %38, %39 in 1 : vector<10x32xf32>, vector<10x32xf32>, vector<10x32xf32>, vector<10x32xf32> -> vector<10x128xf32>
    %41 = arith.truncf %40 : vector<10x128xf32> to vector<10x128xbf16>
    %c30 = arith.constant 30 : index
    %c0_30 = arith.constant 0 : index
    %42 = vector.load %arg10[%c30, %c0_30] : memref<104x128xbf16, #tpu.memory_space<vmem>>, vector<10x128xbf16>
    tpu.vector_store %arg10[%c30, %c0_30], %41 {strides = array<i32>} : memref<104x128xbf16, #tpu.memory_space<vmem>>, vector<10x128xbf16>,
    %c168 = arith.constant 168 : index
    %c0_31 = arith.constant 0 : index
    %43 = tpu.strided_load %arg9[%c168, %c0_31] {strides = array<i32: 2, 1>} : memref<424x32xf32, #tpu.memory_space<vmem>>, vector<10x32xf32>
    %c169 = arith.constant 169 : index
    %c0_32 = arith.constant 0 : index
    %44 = tpu.strided_load %arg9[%c169, %c0_32] {strides = array<i32: 2, 1>} : memref<424x32xf32, #tpu.memory_space<vmem>>, vector<10x32xf32>
    %c189 = arith.constant 189 : index
    %c0_33 = arith.constant 0 : index
    %45 = tpu.strided_load %arg9[%c189, %c0_33] {strides = array<i32: 2, 1>} : memref<424x32xf32, #tpu.memory_space<vmem>>, vector<10x32xf32>
    %c190 = arith.constant 190 : index
    %c0_34 = arith.constant 0 : index
    %46 = tpu.strided_load %arg9[%c190, %c0_34] {strides = array<i32: 2, 1>} : memref<424x32xf32, #tpu.memory_space<vmem>>, vector<10x32xf32>
    %47 = tpu.concatenate %43, %44, %45, %46 in 1 : vector<10x32xf32>, vector<10x32xf32>, vector<10x32xf32>, vector<10x32xf32> -> vector<10x128xf32>
    %48 = arith.truncf %47 : vector<10x128xf32> to vector<10x128xbf16>
    %c40 = arith.constant 40 : index
    %c0_35 = arith.constant 0 : index
    %49 = vector.load %arg10[%c40, %c0_35] : memref<104x128xbf16, #tpu.memory_space<vmem>>, vector<10x128xbf16>
    tpu.vector_store %arg10[%c40, %c0_35], %48 {strides = array<i32>} : memref<104x128xbf16, #tpu.memory_space<vmem>>, vector<10x128xbf16>,
    %c210 = arith.constant 210 : index
    %c0_36 = arith.constant 0 : index
    %50 = tpu.strided_load %arg9[%c210, %c0_36] {strides = array<i32: 2, 1>} : memref<424x32xf32, #tpu.memory_space<vmem>>, vector<10x32xf32>
    %c211 = arith.constant 211 : index
    %c0_37 = arith.constant 0 : index
    %51 = tpu.strided_load %arg9[%c211, %c0_37] {strides = array<i32: 2, 1>} : memref<424x32xf32, #tpu.memory_space<vmem>>, vector<10x32xf32>
    %c231 = arith.constant 231 : index
    %c0_38 = arith.constant 0 : index
    %52 = tpu.strided_load %arg9[%c231, %c0_38] {strides = array<i32: 2, 1>} : memref<424x32xf32, #tpu.memory_space<vmem>>, vector<10x32xf32>
    %c232 = arith.constant 232 : index
    %c0_39 = arith.constant 0 : index
    %53 = tpu.strided_load %arg9[%c232, %c0_39] {strides = array<i32: 2, 1>} : memref<424x32xf32, #tpu.memory_space<vmem>>, vector<10x32xf32>
    %54 = tpu.concatenate %50, %51, %52, %53 in 1 : vector<10x32xf32>, vector<10x32xf32>, vector<10x32xf32>, vector<10x32xf32> -> vector<10x128xf32>
    %55 = arith.truncf %54 : vector<10x128xf32> to vector<10x128xbf16>
    %c50 = arith.constant 50 : index
    %c0_40 = arith.constant 0 : index
    %56 = vector.load %arg10[%c50, %c0_40] : memref<104x128xbf16, #tpu.memory_space<vmem>>, vector<10x128xbf16>
    tpu.vector_store %arg10[%c50, %c0_40], %55 {strides = array<i32>} : memref<104x128xbf16, #tpu.memory_space<vmem>>, vector<10x128xbf16>,
    %c252 = arith.constant 252 : index
    %c0_41 = arith.constant 0 : index
    %57 = tpu.strided_load %arg9[%c252, %c0_41] {strides = array<i32: 2, 1>} : memref<424x32xf32, #tpu.memory_space<vmem>>, vector<10x32xf32>
    %c253 = arith.constant 253 : index
    %c0_42 = arith.constant 0 : index
    %58 = tpu.strided_load %arg9[%c253, %c0_42] {strides = array<i32: 2, 1>} : memref<424x32xf32, #tpu.memory_space<vmem>>, vector<10x32xf32>
    %c273 = arith.constant 273 : index
    %c0_43 = arith.constant 0 : index
    %59 = tpu.strided_load %arg9[%c273, %c0_43] {strides = array<i32: 2, 1>} : memref<424x32xf32, #tpu.memory_space<vmem>>, vector<10x32xf32>
    %c274 = arith.constant 274 : index
    %c0_44 = arith.constant 0 : index
    %60 = tpu.strided_load %arg9[%c274, %c0_44] {strides = array<i32: 2, 1>} : memref<424x32xf32, #tpu.memory_space<vmem>>, vector<10x32xf32>
    %61 = tpu.concatenate %57, %58, %59, %60 in 1 : vector<10x32xf32>, vector<10x32xf32>, vector<10x32xf32>, vector<10x32xf32> -> vector<10x128xf32>
    %62 = arith.truncf %61 : vector<10x128xf32> to vector<10x128xbf16>
    %c60 = arith.constant 60 : index
    %c0_45 = arith.constant 0 : index
    %63 = vector.load %arg10[%c60, %c0_45] : memref<104x128xbf16, #tpu.memory_space<vmem>>, vector<10x128xbf16>
    tpu.vector_store %arg10[%c60, %c0_45], %62 {strides = array<i32>} : memref<104x128xbf16, #tpu.memory_space<vmem>>, vector<10x128xbf16>,
    %c294 = arith.constant 294 : index
    %c0_46 = arith.constant 0 : index
    %64 = tpu.strided_load %arg9[%c294, %c0_46] {strides = array<i32: 2, 1>} : memref<424x32xf32, #tpu.memory_space<vmem>>, vector<10x32xf32>
    %c295 = arith.constant 295 : index
    %c0_47 = arith.constant 0 : index
    %65 = tpu.strided_load %arg9[%c295, %c0_47] {strides = array<i32: 2, 1>} : memref<424x32xf32, #tpu.memory_space<vmem>>, vector<10x32xf32>
    %c315 = arith.constant 315 : index
    %c0_48 = arith.constant 0 : index
    %66 = tpu.strided_load %arg9[%c315, %c0_48] {strides = array<i32: 2, 1>} : memref<424x32xf32, #tpu.memory_space<vmem>>, vector<10x32xf32>
    %c316 = arith.constant 316 : index
    %c0_49 = arith.constant 0 : index
    %67 = tpu.strided_load %arg9[%c316, %c0_49] {strides = array<i32: 2, 1>} : memref<424x32xf32, #tpu.memory_space<vmem>>, vector<10x32xf32>
    %68 = tpu.concatenate %64, %65, %66, %67 in 1 : vector<10x32xf32>, vector<10x32xf32>, vector<10x32xf32>, vector<10x32xf32> -> vector<10x128xf32>
    %69 = arith.truncf %68 : vector<10x128xf32> to vector<10x128xbf16>
    %c70 = arith.constant 70 : index
    %c0_50 = arith.constant 0 : index
    %70 = vector.load %arg10[%c70, %c0_50] : memref<104x128xbf16, #tpu.memory_space<vmem>>, vector<10x128xbf16>
    tpu.vector_store %arg10[%c70, %c0_50], %69 {strides = array<i32>} : memref<104x128xbf16, #tpu.memory_space<vmem>>, vector<10x128xbf16>,
    %c336 = arith.constant 336 : index
    %c0_51 = arith.constant 0 : index
    %71 = tpu.strided_load %arg9[%c336, %c0_51] {strides = array<i32: 2, 1>} : memref<424x32xf32, #tpu.memory_space<vmem>>, vector<10x32xf32>
    %c337 = arith.constant 337 : index
    %c0_52 = arith.constant 0 : index
    %72 = tpu.strided_load %arg9[%c337, %c0_52] {strides = array<i32: 2, 1>} : memref<424x32xf32, #tpu.memory_space<vmem>>, vector<10x32xf32>
    %c357 = arith.constant 357 : index
    %c0_53 = arith.constant 0 : index
    %73 = tpu.strided_load %arg9[%c357, %c0_53] {strides = array<i32: 2, 1>} : memref<424x32xf32, #tpu.memory_space<vmem>>, vector<10x32xf32>
    %c358 = arith.constant 358 : index
    %c0_54 = arith.constant 0 : index
    %74 = tpu.strided_load %arg9[%c358, %c0_54] {strides = array<i32: 2, 1>} : memref<424x32xf32, #tpu.memory_space<vmem>>, vector<10x32xf32>
    %75 = tpu.concatenate %71, %72, %73, %74 in 1 : vector<10x32xf32>, vector<10x32xf32>, vector<10x32xf32>, vector<10x32xf32> -> vector<10x128xf32>
    %76 = arith.truncf %75 : vector<10x128xf32> to vector<10x128xbf16>
    %c80 = arith.constant 80 : index
    %c0_55 = arith.constant 0 : index
    %77 = vector.load %arg10[%c80, %c0_55] : memref<104x128xbf16, #tpu.memory_space<vmem>>, vector<10x128xbf16>
    tpu.vector_store %arg10[%c80, %c0_55], %76 {strides = array<i32>} : memref<104x128xbf16, #tpu.memory_space<vmem>>, vector<10x128xbf16>,
    %c378 = arith.constant 378 : index
    %c0_56 = arith.constant 0 : index
    %78 = tpu.strided_load %arg9[%c378, %c0_56] {strides = array<i32: 2, 1>} : memref<424x32xf32, #tpu.memory_space<vmem>>, vector<10x32xf32>
    %c379 = arith.constant 379 : index
    %c0_57 = arith.constant 0 : index
    %79 = tpu.strided_load %arg9[%c379, %c0_57] {strides = array<i32: 2, 1>} : memref<424x32xf32, #tpu.memory_space<vmem>>, vector<10x32xf32>
    %c399 = arith.constant 399 : index
    %c0_58 = arith.constant 0 : index
    %80 = tpu.strided_load %arg9[%c399, %c0_58] {strides = array<i32: 2, 1>} : memref<424x32xf32, #tpu.memory_space<vmem>>, vector<10x32xf32>
    %c400 = arith.constant 400 : index
    %c0_59 = arith.constant 0 : index
    %81 = tpu.strided_load %arg9[%c400, %c0_59] {strides = array<i32: 2, 1>} : memref<424x32xf32, #tpu.memory_space<vmem>>, vector<10x32xf32>
    %82 = tpu.concatenate %78, %79, %80, %81 in 1 : vector<10x32xf32>, vector<10x32xf32>, vector<10x32xf32>, vector<10x32xf32> -> vector<10x128xf32>
    %83 = arith.truncf %82 : vector<10x128xf32> to vector<10x128xbf16>
    %c90 = arith.constant 90 : index
    %c0_60 = arith.constant 0 : index
    %84 = vector.load %arg10[%c90, %c0_60] : memref<104x128xbf16, #tpu.memory_space<vmem>>, vector<10x128xbf16>
    tpu.vector_store %arg10[%c90, %c0_60], %83 {strides = array<i32>} : memref<104x128xbf16, #tpu.memory_space<vmem>>, vector<10x128xbf16>,
    %c0_61 = arith.constant 0 : index
    %c0_62 = arith.constant 0 : index
    %85 = vector.load %arg10[%c0_61, %c0_62] : memref<104x128xbf16, #tpu.memory_space<vmem>>, vector<100x128xbf16>
    %86 = vector.extract_strided_slice %85 {offsets = [0, 0], sizes = [89, 128], strides = [1, 1]} : vector<100x128xbf16> to vector<89x128xbf16>
    %87 = vector.extract_strided_slice %85 {offsets = [1, 0], sizes = [89, 128], strides = [1, 1]} : vector<100x128xbf16> to vector<89x128xbf16>
    %88 = vector.extract_strided_slice %85 {offsets = [10, 0], sizes = [89, 128], strides = [1, 1]} : vector<100x128xbf16> to vector<89x128xbf16>
    %89 = vector.extract_strided_slice %85 {offsets = [11, 0], sizes = [89, 128], strides = [1, 1]} : vector<100x128xbf16> to vector<89x128xbf16>
    %90 = tpu.concatenate %86, %87, %88, %89 in 1 : vector<89x128xbf16>, vector<89x128xbf16>, vector<89x128xbf16>, vector<89x128xbf16> -> vector<89x512xbf16>
    %c0_63 = arith.constant 0 : index
    %c0_64 = arith.constant 0 : index
    %91 = vector.load %arg4[%c0_63, %c0_64] : memref<512x64xbf16, #tpu.memory_space<vmem>>, vector<512x64xbf16>
    %cst_65 = arith.constant dense<0.000000e+00> : vector<89x64xf32>
    %92 = tpu.matmul %90, %91, %cst_65 {dimension_numbers = #tpu.dot_dimension_numbers<[1], [0], [0], [1], [0, 0, 1, 1], [], []>} : vector<89x512xbf16>, vector<512x64xbf16>, vector<89x64xf32> -> vector<89x64xf32>
    %c0_66 = arith.constant 0 : index
    %c0_67 = arith.constant 0 : index
    %93 = vector.load %arg5[%c0_66, %c0_67] : memref<1x64xf32, #tpu.memory_space<vmem>>, vector<1x64xf32>
    %94 = vector.broadcast %93 : vector<1x64xf32> to vector<89x64xf32>
    %95 = arith.addf %92, %94 : vector<89x64xf32>
    %cst_68 = arith.constant 0.000000e+00 : f32
    %96 = vector.broadcast %cst_68 : f32 to vector<89x64xf32>
    %97 = arith.maximumf %95, %96 : vector<89x64xf32>
    %98 = arith.truncf %97 : vector<89x64xf32> to vector<89x64xbf16>
    %99 = vector.extract_strided_slice %98 {offsets = [0, 0], sizes = [67, 64], strides = [1, 1]} : vector<89x64xbf16> to vector<67x64xbf16>
    %100 = vector.extract_strided_slice %98 {offsets = [1, 0], sizes = [67, 64], strides = [1, 1]} : vector<89x64xbf16> to vector<67x64xbf16>
    %101 = vector.extract_strided_slice %98 {offsets = [2, 0], sizes = [67, 64], strides = [1, 1]} : vector<89x64xbf16> to vector<67x64xbf16>
    %102 = vector.extract_strided_slice %98 {offsets = [10, 0], sizes = [67, 64], strides = [1, 1]} : vector<89x64xbf16> to vector<67x64xbf16>
    %103 = vector.extract_strided_slice %98 {offsets = [11, 0], sizes = [67, 64], strides = [1, 1]} : vector<89x64xbf16> to vector<67x64xbf16>
    %104 = vector.extract_strided_slice %98 {offsets = [12, 0], sizes = [67, 64], strides = [1, 1]} : vector<89x64xbf16> to vector<67x64xbf16>
    %105 = vector.extract_strided_slice %98 {offsets = [20, 0], sizes = [67, 64], strides = [1, 1]} : vector<89x64xbf16> to vector<67x64xbf16>
    %106 = vector.extract_strided_slice %98 {offsets = [21, 0], sizes = [67, 64], strides = [1, 1]} : vector<89x64xbf16> to vector<67x64xbf16>
    %107 = vector.extract_strided_slice %98 {offsets = [22, 0], sizes = [67, 64], strides = [1, 1]} : vector<89x64xbf16> to vector<67x64xbf16>
    %108 = tpu.concatenate %99, %100, %101, %102, %103, %104, %105, %106, %107 in 1 : vector<67x64xbf16>, vector<67x64xbf16>, vector<67x64xbf16>, vector<67x64xbf16>, vector<67x64xbf16>, vector<67x64xbf16>, vector<67x64xbf16>, vector<67x64xbf16>, vector<67x64xbf16> -> vector<67x576xbf16>
    %c0_69 = arith.constant 0 : index
    %c0_70 = arith.constant 0 : index
    %109 = vector.load %arg6[%c0_69, %c0_70] : memref<576x32xbf16, #tpu.memory_space<vmem>>, vector<576x32xbf16>
    %cst_71 = arith.constant dense<0.000000e+00> : vector<67x32xf32>
    %110 = tpu.matmul %108, %109, %cst_71 {dimension_numbers = #tpu.dot_dimension_numbers<[1], [0], [0], [1], [0, 0, 1, 1], [], []>} : vector<67x576xbf16>, vector<576x32xbf16>, vector<67x32xf32> -> vector<67x32xf32>
    %c0_72 = arith.constant 0 : index
    %c0_73 = arith.constant 0 : index
    %111 = vector.load %arg7[%c0_72, %c0_73] : memref<1x32xf32, #tpu.memory_space<vmem>>, vector<1x32xf32>
    %112 = vector.broadcast %111 : vector<1x32xf32> to vector<67x32xf32>
    %113 = arith.addf %110, %112 : vector<67x32xf32>
    %cst_74 = arith.constant 0.000000e+00 : f32
    %114 = vector.broadcast %cst_74 : f32 to vector<67x32xf32>
    %115 = arith.maximumf %113, %114 : vector<67x32xf32>
    %116 = arith.truncf %115 : vector<67x32xf32> to vector<67x32xbf16>
    %117 = vector.extract_strided_slice %116 {offsets = [0, 0], sizes = [7, 32], strides = [1, 1]} : vector<67x32xbf16> to vector<7x32xbf16>
    %118 = vector.extract_strided_slice %116 {offsets = [10, 0], sizes = [7, 32], strides = [1, 1]} : vector<67x32xbf16> to vector<7x32xbf16>
    %119 = vector.extract_strided_slice %116 {offsets = [20, 0], sizes = [7, 32], strides = [1, 1]} : vector<67x32xbf16> to vector<7x32xbf16>
    %120 = vector.extract_strided_slice %116 {offsets = [30, 0], sizes = [7, 32], strides = [1, 1]} : vector<67x32xbf16> to vector<7x32xbf16>
    %121 = vector.extract_strided_slice %116 {offsets = [40, 0], sizes = [7, 32], strides = [1, 1]} : vector<67x32xbf16> to vector<7x32xbf16>
    %122 = vector.extract_strided_slice %116 {offsets = [50, 0], sizes = [7, 32], strides = [1, 1]} : vector<67x32xbf16> to vector<7x32xbf16>
    %123 = vector.extract_strided_slice %116 {offsets = [60, 0], sizes = [7, 32], strides = [1, 1]} : vector<67x32xbf16> to vector<7x32xbf16>
    %124 = tpu.concatenate %117, %118, %119, %120, %121, %122, %123 in 0 : vector<7x32xbf16>, vector<7x32xbf16>, vector<7x32xbf16>, vector<7x32xbf16>, vector<7x32xbf16>, vector<7x32xbf16>, vector<7x32xbf16> -> vector<49x32xbf16>
    %c0_75 = arith.constant 0 : index
    %c0_76 = arith.constant 0 : index
    %c0_77 = arith.constant 0 : index
    %125 = vector.load %arg8[%c0_75, %c0_76, %c0_77] : memref<1x49x32xbf16, #tpu.memory_space<vmem>>, vector<1x49x32xbf16>
    %126 = vector.shape_cast %125 : vector<1x49x32xbf16> to vector<49x32xbf16>
    %127 = vector.shape_cast %124 : vector<49x32xbf16> to vector<1x49x32xbf16>
    tpu.vector_store %arg8[%c0_75, %c0_76, %c0_77], %127 {strides = array<i32>} : memref<1x49x32xbf16, #tpu.memory_space<vmem>>, vector<1x49x32xbf16>,
    return
  }
  func.func @transform_0(%arg0: i32) -> (i32, i32, i32) {
    %c0_i32 = arith.constant 0 : i32
    %c0_i32_0 = arith.constant 0 : i32
    %c0_i32_1 = arith.constant 0 : i32
    return %arg0, %c0_i32, %c0_i32_0 : i32, i32, i32
  }
  func.func @transform_1(%arg0: i32) -> (i32, i32) {
    %c0_i32 = arith.constant 0 : i32
    %c0_i32_0 = arith.constant 0 : i32
    %c0_i32_1 = arith.constant 0 : i32
    return %c0_i32, %c0_i32_0 : i32, i32
  }
  func.func @transform_2(%arg0: i32) -> (i32, i32) {
    %c0_i32 = arith.constant 0 : i32
    %c0_i32_0 = arith.constant 0 : i32
    %c0_i32_1 = arith.constant 0 : i32
    return %c0_i32, %c0_i32_0 : i32, i32
  }
  func.func @transform_3(%arg0: i32) -> (i32, i32) {
    %c0_i32 = arith.constant 0 : i32
    %c0_i32_0 = arith.constant 0 : i32
    %c0_i32_1 = arith.constant 0 : i32
    return %c0_i32, %c0_i32_0 : i32, i32
  }
  func.func @transform_4(%arg0: i32) -> (i32, i32) {
    %c0_i32 = arith.constant 0 : i32
    %c0_i32_0 = arith.constant 0 : i32
    %c0_i32_1 = arith.constant 0 : i32
    return %c0_i32, %c0_i32_0 : i32, i32
  }
  func.func @transform_5(%arg0: i32) -> (i32, i32) {
    %c0_i32 = arith.constant 0 : i32
    %c0_i32_0 = arith.constant 0 : i32
    %c0_i32_1 = arith.constant 0 : i32
    return %c0_i32, %c0_i32_0 : i32, i32
  }
  func.func @transform_6(%arg0: i32) -> (i32, i32) {
    %c0_i32 = arith.constant 0 : i32
    %c0_i32_0 = arith.constant 0 : i32
    %c0_i32_1 = arith.constant 0 : i32
    return %c0_i32, %c0_i32_0 : i32, i32
  }
  func.func @transform_7(%arg0: i32) -> (i32, i32, i32) {
    %c0_i32 = arith.constant 0 : i32
    %c0_i32_0 = arith.constant 0 : i32
    %c0_i32_1 = arith.constant 0 : i32
    return %arg0, %c0_i32, %c0_i32_0 : i32, i32, i32
  }
}

module attributes {stable_mosaic.version = 11 : i64} {
  func.func @_dense_kernel(%arg0: i32, %arg1: memref<2x1568xbf16, #tpu.memory_space<vmem>>, %arg2: memref<1568x32xbf16, #tpu.memory_space<vmem>>, %arg3: memref<1x32xf32, #tpu.memory_space<vmem>>, %arg4: memref<2x32xf32, #tpu.memory_space<vmem>>) attributes {dimension_semantics = [#tpu.dimension_semantics<parallel>], iteration_bounds = array<i64: 1>, scalar_prefetch = 0 : i64, scratch_operands = 0 : i64, tpu.core_type = #tpu.core_type<tc>, window_params = [{transform_indices = @transform_0, window_bounds = array<i64: 2, 1568>}, {pipeline_mode = #tpu.pipeline_mode<synchronous>, transform_indices = @transform_1, window_bounds = array<i64: 1568, 32>}, {pipeline_mode = #tpu.pipeline_mode<synchronous>, transform_indices = @transform_2, window_bounds = array<i64: 1, 32>}, {transform_indices = @transform_3, window_bounds = array<i64: 2, 32>}]} {
    %c0 = arith.constant 0 : index
    %c0_0 = arith.constant 0 : index
    %0 = vector.load %arg1[%c0, %c0_0] : memref<2x1568xbf16, #tpu.memory_space<vmem>>, vector<2x1568xbf16>
    %c0_1 = arith.constant 0 : index
    %c0_2 = arith.constant 0 : index
    %1 = vector.load %arg2[%c0_1, %c0_2] : memref<1568x32xbf16, #tpu.memory_space<vmem>>, vector<1568x32xbf16>
    %cst = arith.constant dense<0.000000e+00> : vector<2x32xf32>
    %2 = tpu.matmul %0, %1, %cst {dimension_numbers = #tpu.dot_dimension_numbers<[1], [0], [0], [1], [0, 0, 1, 1], [], []>} : vector<2x1568xbf16>, vector<1568x32xbf16>, vector<2x32xf32> -> vector<2x32xf32>
    %c0_3 = arith.constant 0 : index
    %c0_4 = arith.constant 0 : index
    %3 = vector.load %arg3[%c0_3, %c0_4] : memref<1x32xf32, #tpu.memory_space<vmem>>, vector<1x32xf32>
    %4 = vector.broadcast %3 : vector<1x32xf32> to vector<2x32xf32>
    %5 = arith.addf %2, %4 : vector<2x32xf32>
    %c0_5 = arith.constant 0 : index
    %c0_6 = arith.constant 0 : index
    %6 = vector.load %arg4[%c0_5, %c0_6] : memref<2x32xf32, #tpu.memory_space<vmem>>, vector<2x32xf32>
    tpu.vector_store %arg4[%c0_5, %c0_6], %5 {strides = array<i32>} : memref<2x32xf32, #tpu.memory_space<vmem>>, vector<2x32xf32>,
    return
  }
  func.func @transform_0(%arg0: i32) -> (i32, i32) {
    %c0_i32 = arith.constant 0 : i32
    %c0_i32_0 = arith.constant 0 : i32
    return %arg0, %c0_i32 : i32, i32
  }
  func.func @transform_1(%arg0: i32) -> (i32, i32) {
    %c0_i32 = arith.constant 0 : i32
    %c0_i32_0 = arith.constant 0 : i32
    %c0_i32_1 = arith.constant 0 : i32
    return %c0_i32, %c0_i32_0 : i32, i32
  }
  func.func @transform_2(%arg0: i32) -> (i32, i32) {
    %c0_i32 = arith.constant 0 : i32
    %c0_i32_0 = arith.constant 0 : i32
    %c0_i32_1 = arith.constant 0 : i32
    return %c0_i32, %c0_i32_0 : i32, i32
  }
  func.func @transform_3(%arg0: i32) -> (i32, i32) {
    %c0_i32 = arith.constant 0 : i32
    %c0_i32_0 = arith.constant 0 : i32
    return %arg0, %c0_i32 : i32, i32
  }
}

</mosaic_0001>

<llo_original>
// kernel: nature_cnn_forward.2
$region0: #{nature_cnn_forward.2}
  #allocation0 [shape = 'u32[]', space=smem, size = 0x4, offset = 0x4, fixed_abs, tag = 'smem constant byte address 0x4 - core index']
  #allocation1 [shape = 'u32[144,128]{1,0:T(1,128)}', space=vmem, size = 0x12000, scoped, tag = 'internal scratch']
  #allocation2 [shape = 'f32[424,32]{1,0:T(8,128)}', space=vmem, size = 0x35000, scoped, tag = 'scratch operand']
  #allocation3 [shape = 'bf16[104,128]{1,0:T(8,128)(2,1)}', space=vmem, size = 0x6800, scoped, tag = 'scratch operand']
  %s0 = inlined_call_operand.vmem [shape: bf16[2,441,64], index: 0, kind: input, shape index: {}]
  %s1 = inlined_call_operand.vmem [shape: bf16[256,32], index: 1, kind: input, shape index: {}]
  %s2 = inlined_call_operand.vmem [shape: f32[1,32], index: 2, kind: input, shape index: {}]
  %s3 = inlined_call_operand.vmem [shape: bf16[512,64], index: 3, kind: input, shape index: {}]
  %s4 = inlined_call_operand.vmem [shape: f32[1,64], index: 4, kind: input, shape index: {}]
  %s5 = inlined_call_operand.vmem [shape: bf16[576,32], index: 5, kind: input, shape index: {}]
  %s6 = inlined_call_operand.vmem [shape: f32[1,32], index: 6, kind: input, shape index: {}]
  %s7 = inlined_call_operand.vmem [shape: bf16[2,49,32], index: 7, kind: output, shape index: {}]
  %s8 = sld [smem:[#allocation0]]
  $region61: #{nature_cnn_forward.2} parent=0
    _
  %s10 = ssub.s32 1, %s8
  %s11 = scalar_select 0, %s10, %s8
  loop: start=0, step=1, limit=4
  $region2: #{nature_cnn_forward.2} parent=0 // loop_pre_header
    _
  $region3: #{nature_cnn_forward.2} parent=0 // loop_header
    %s13 = sphi 0, %s17
    %p14 = scmp.ge.s32.totalorder %s13, 4
    %s23 = sphi 0, %s25
    %s26 = sphi 0, %s23
    %s27 = sphi 0, %s26
    %s43 = sphi 0, %s27
    %s47 = sphi 0, %s47
    %s49 = sphi 0, %s47
    %s50 = sphi 0, %s49
    %s64 = sphi 0, %s50
    %s68 = sphi 0, %s68
    %s70 = sphi 0, %s68
    %s71 = sphi 0, %s70
    %s85 = sphi 0, %s71
    %s89 = sphi 0, %s89
    %s91 = sphi 0, %s89
    %s92 = sphi 0, %s91
    %s106 = sphi 0, %s92
    %s110 = sphi 0, %s110
    %s112 = sphi 0, %s110
    %s113 = sphi 0, %s112
    %s127 = sphi 0, %s113
    %s131 = sphi 0, %s131
    %s133 = sphi 0, %s131
    %s134 = sphi 0, %s133
    %s148 = sphi 0, %s134
    %s152 = sphi 0, %s152
    %s154 = sphi 0, %s152
    %s155 = sphi 0, %s154
    %s169 = sphi 0, %s155
    %s175 = sphi 0, %s177
    %s178 = sphi 0, %s175
    %s179 = sphi 0, %s178
    %s195 = sphi 0, %s179
  $region4: #{nature_cnn_forward.2} parent=0 // loop_header_branch
    %16 = sbr.rel (%p14) target = $region8
  $region5: #{nature_cnn_forward.2} parent=0 // loop_body
    %s18 = ssub.s32 %s13, 1
    %s19 = ssub.s32 %s13, 2
    %s20 = sadd.s32 %s13, 1
    %s21 = ssub.s32 %s13, %s20
    %p22 = scmp.eq.s32.totalorder %s21, 0
    %s24 = sadd.s32 %s23, 1
    %s25 = scalar_select %p22, %s23, %s24
    %p28 = pneg %p22
    %p29 = scmp.eq.s32.totalorder %s13, 1
    %p30 = por %p28, %p29
    %p31 = scmp.ne.s32.totalorder %s23, %s26
    %p32 = scmp.eq.s32.totalorder %s13, 0
    %p33 = por %p31, %p32
    %p34 = scmp.ne.s32.totalorder %s23, %s26
    %p35 = scmp.eq.s32.totalorder %s18, 1
    %p36 = por %p34, %p35
    %p37 = scmp.ne.s32.totalorder %s26, %s27
    %p38 = scmp.eq.s32.totalorder %s18, 0
    %p39 = por %p37, %p38
    %p40 = scmp.ne.s32.totalorder %s26, %s27
    %p41 = scmp.eq.s32.totalorder %s19, 1
    %p42 = por %p40, %p41
    %p44 = scmp.ne.s32.totalorder %s27, %s43
    %p45 = scmp.eq.s32.totalorder %s19, 0
    %p46 = por %p44, %p45
    %s48 = sadd.s32 %s47, 1
    %p51 = scmp.eq.s32.totalorder %s13, 1
    %p52 = scmp.ne.s32.totalorder %s47, %s49
    %p53 = scmp.eq.s32.totalorder %s13, 0
    %p54 = por %p52, %p53
    %p55 = scmp.ne.s32.totalorder %s47, %s49
    %p56 = scmp.eq.s32.totalorder %s18, 1
    %p57 = por %p55, %p56
    %p58 = scmp.ne.s32.totalorder %s49, %s50
    %p59 = scmp.eq.s32.totalorder %s18, 0
    %p60 = por %p58, %p59
    %p61 = scmp.ne.s32.totalorder %s49, %s50
    %p62 = scmp.eq.s32.totalorder %s19, 1
    %p63 = por %p61, %p62
    %p65 = scmp.ne.s32.totalorder %s50, %s64
    %p66 = scmp.eq.s32.totalorder %s19, 0
    %p67 = por %p65, %p66
    %s69 = sadd.s32 %s68, 1
    %p72 = scmp.eq.s32.totalorder %s13, 1
    %p73 = scmp.ne.s32.totalorder %s68, %s70
    %p74 = scmp.eq.s32.totalorder %s13, 0
    %p75 = por %p73, %p74
    %p76 = scmp.ne.s32.totalorder %s68, %s70
    %p77 = scmp.eq.s32.totalorder %s18, 1
    %p78 = por %p76, %p77
    %p79 = scmp.ne.s32.totalorder %s70, %s71
    %p80 = scmp.eq.s32.totalorder %s18, 0
    %p81 = por %p79, %p80
    %p82 = scmp.ne.s32.totalorder %s70, %s71
    %p83 = scmp.eq.s32.totalorder %s19, 1
    %p84 = por %p82, %p83
    %p86 = scmp.ne.s32.totalorder %s71, %s85
    %p87 = scmp.eq.s32.totalorder %s19, 0
    %p88 = por %p86, %p87
    %s90 = sadd.s32 %s89, 1
    %p93 = scmp.eq.s32.totalorder %s13, 1
    %p94 = scmp.ne.s32.totalorder %s89, %s91
    %p95 = scmp.eq.s32.totalorder %s13, 0
    %p96 = por %p94, %p95
    %p97 = scmp.ne.s32.totalorder %s89, %s91
    %p98 = scmp.eq.s32.totalorder %s18, 1
    %p99 = por %p97, %p98
    %p100 = scmp.ne.s32.totalorder %s91, %s92
    %p101 = scmp.eq.s32.totalorder %s18, 0
    %p102 = por %p100, %p101
    %p103 = scmp.ne.s32.totalorder %s91, %s92
    %p104 = scmp.eq.s32.totalorder %s19, 1
    %p105 = por %p103, %p104
    %p107 = scmp.ne.s32.totalorder %s92, %s106
    %p108 = scmp.eq.s32.totalorder %s19, 0
    %p109 = por %p107, %p108
    %s111 = sadd.s32 %s110, 1
    %p114 = scmp.eq.s32.totalorder %s13, 1
    %p115 = scmp.ne.s32.totalorder %s110, %s112
    %p116 = scmp.eq.s32.totalorder %s13, 0
    %p117 = por %p115, %p116
    %p118 = scmp.ne.s32.totalorder %s110, %s112
    %p119 = scmp.eq.s32.totalorder %s18, 1
    %p120 = por %p118, %p119
    %p121 = scmp.ne.s32.totalorder %s112, %s113
    %p122 = scmp.eq.s32.totalorder %s18, 0
    %p123 = por %p121, %p122
    %p124 = scmp.ne.s32.totalorder %s112, %s113
    %p125 = scmp.eq.s32.totalorder %s19, 1
    %p126 = por %p124, %p125
    %p128 = scmp.ne.s32.totalorder %s113, %s127
    %p129 = scmp.eq.s32.totalorder %s19, 0
    %p130 = por %p128, %p129
    %s132 = sadd.s32 %s131, 1
    %p135 = scmp.eq.s32.totalorder %s13, 1
    %p136 = scmp.ne.s32.totalorder %s131, %s133
    %p137 = scmp.eq.s32.totalorder %s13, 0
    %p138 = por %p136, %p137
    %p139 = scmp.ne.s32.totalorder %s131, %s133
    %p140 = scmp.eq.s32.totalorder %s18, 1
    %p141 = por %p139, %p140
    %p142 = scmp.ne.s32.totalorder %s133, %s134
    %p143 = scmp.eq.s32.totalorder %s18, 0
    %p144 = por %p142, %p143
    %p145 = scmp.ne.s32.totalorder %s133, %s134
    %p146 = scmp.eq.s32.totalorder %s19, 1
    %p147 = por %p145, %p146
    %p149 = scmp.ne.s32.totalorder %s134, %s148
    %p150 = scmp.eq.s32.totalorder %s19, 0
    %p151 = por %p149, %p150
    %s153 = sadd.s32 %s152, 1
    %p156 = scmp.eq.s32.totalorder %s13, 1
    %p157 = scmp.ne.s32.totalorder %s152, %s154
    %p158 = scmp.eq.s32.totalorder %s13, 0
    %p159 = por %p157, %p158
    %p160 = scmp.ne.s32.totalorder %s152, %s154
    %p161 = scmp.eq.s32.totalorder %s18, 1
    %p162 = por %p160, %p161
    %p163 = scmp.ne.s32.totalorder %s154, %s155
    %p164 = scmp.eq.s32.totalorder %s18, 0
    %p165 = por %p163, %p164
    %p166 = scmp.ne.s32.totalorder %s154, %s155
    %p167 = scmp.eq.s32.totalorder %s19, 1
    %p168 = por %p166, %p167
    %p170 = scmp.ne.s32.totalorder %s155, %s169
    %p171 = scmp.eq.s32.totalorder %s19, 0
    %p172 = por %p170, %p171
    %s173 = ssub.s32 %s13, %s20
    %p174 = scmp.eq.s32.totalorder %s173, 0
    %s176 = sadd.s32 %s175, 1
    %s177 = scalar_select %p174, %s175, %s176
    %p180 = pneg %p174
    %p181 = scmp.eq.s32.totalorder %s13, 1
    %p182 = por %p180, %p181
    %p183 = scmp.ne.s32.totalorder %s175, %s178
    %p184 = scmp.eq.s32.totalorder %s13, 0
    %p185 = por %p183, %p184
    %p186 = scmp.ne.s32.totalorder %s175, %s178
    %p187 = scmp.eq.s32.totalorder %s18, 1
    %p188 = por %p186, %p187
    %p189 = scmp.ne.s32.totalorder %s178, %s179
    %p190 = scmp.eq.s32.totalorder %s18, 0
    %p191 = por %p189, %p190
    %p192 = scmp.ne.s32.totalorder %s178, %s179
    %p193 = scmp.eq.s32.totalorder %s19, 1
    %p194 = por %p192, %p193
    %p196 = scmp.ne.s32.totalorder %s179, %s195
    %p197 = scmp.eq.s32.totalorder %s19, 0
    %p198 = por %p196, %p197
    %p199 = scmp.le.s32.totalorder 1, %s13
    %p200 = scmp.lt.s32.totalorder %s13, 3
    %p201 = pnand %p199, %p200
    %p202 = pneg %p201
    // Predicated region
    $region9: #{nature_cnn_forward.2} parent=5 // pred_check
      _
    $region10: #{nature_cnn_forward.2} parent=5 // pred_check_branch
      %204 = sbr.rel (%p201) target = $region12
    $region11: #{nature_cnn_forward.2} parent=5 // pred_region
      %s205 = ssub.s32 %s13, 1
      // Predicated region
      $region13: #{nature_cnn_forward.2} parent=11 // pred_check
        %p206 = pneg %p60
      $region14: #{nature_cnn_forward.2} parent=11 // pred_check_branch
        %208 = sbr.rel (%p206) target = $region16
      $region15: #{nature_cnn_forward.2} parent=11 // pred_region
        _
      $region16: #{nature_cnn_forward.2} parent=11 // pred_fallthru
        _
      // Predicated region
      $region17: #{nature_cnn_forward.2} parent=11 // pred_check
        %p209 = pneg %p81
      $region18: #{nature_cnn_forward.2} parent=11 // pred_check_branch
        %211 = sbr.rel (%p209) target = $region20
      $region19: #{nature_cnn_forward.2} parent=11 // pred_region
        _
      $region20: #{nature_cnn_forward.2} parent=11 // pred_fallthru
        _
      // Predicated region
      $region21: #{nature_cnn_forward.2} parent=11 // pred_check
        %p212 = pneg %p102
      $region22: #{nature_cnn_forward.2} parent=11 // pred_check_branch
        %214 = sbr.rel (%p212) target = $region24
      $region23: #{nature_cnn_forward.2} parent=11 // pred_region
        _
      $region24: #{nature_cnn_forward.2} parent=11 // pred_fallthru
        _
      // Predicated region
      $region25: #{nature_cnn_forward.2} parent=11 // pred_check
        %p215 = pneg %p123
      $region26: #{nature_cnn_forward.2} parent=11 // pred_check_branch
        %217 = sbr.rel (%p215) target = $region28
      $region27: #{nature_cnn_forward.2} parent=11 // pred_region
        _
      $region28: #{nature_cnn_forward.2} parent=11 // pred_fallthru
        _
      // Predicated region
      $region29: #{nature_cnn_forward.2} parent=11 // pred_check
        %p218 = pneg %p144
      $region30: #{nature_cnn_forward.2} parent=11 // pred_check_branch
        %220 = sbr.rel (%p218) target = $region32
      $region31: #{nature_cnn_forward.2} parent=11 // pred_region
        _
      $region32: #{nature_cnn_forward.2} parent=11 // pred_fallthru
        _
      // Predicated region
      $region33: #{nature_cnn_forward.2} parent=11 // pred_check
        %p221 = pneg %p165
      $region34: #{nature_cnn_forward.2} parent=11 // pred_check_branch
        %223 = sbr.rel (%p221) target = $region36
      $region35: #{nature_cnn_forward.2} parent=11 // pred_region
        _
      $region36: #{nature_cnn_forward.2} parent=11 // pred_fallthru
        _
    $region12: #{nature_cnn_forward.2} parent=5 // pred_fallthru
      _
    %p224 = scmp.lt.s32.totalorder %s13, 2
    // Predicated region
    $region37: #{nature_cnn_forward.2} parent=5 // pred_check
      %p225 = pneg %p224
    $region38: #{nature_cnn_forward.2} parent=5 // pred_check_branch
      %227 = sbr.rel (%p225) target = $region40
    $region39: #{nature_cnn_forward.2} parent=5 // pred_region
      // Predicated region
      $region41: #{nature_cnn_forward.2} parent=39 // pred_check
        %p228 = pneg %p33
      $region42: #{nature_cnn_forward.2} parent=39 // pred_check_branch
        %230 = sbr.rel (%p228) target = $region44
      $region43: #{nature_cnn_forward.2} parent=39 // pred_region
        %p231 = scmp.lt.s32.totalorder %s13, 1
        %s232 = scalar_select %p231, %s13, 1
        %s233 = smul.addr %s232, 56
        %s234 = smul.addr %s233, 4
        %s235 = scalar_lea.vmem %s0, %s234
      $region44: #{nature_cnn_forward.2} parent=39 // pred_fallthru
        _
    $region40: #{nature_cnn_forward.2} parent=5 // pred_fallthru
      _
    %p236 = scmp.le.s32.totalorder 1, %s13
    %p237 = scmp.lt.s32.totalorder %s13, 3
    %p238 = pnand %p236, %p237
    %p239 = pneg %p238
    // Predicated region
    $region45: #{nature_cnn_forward.2} parent=5 // pred_check
      _
    $region46: #{nature_cnn_forward.2} parent=5 // pred_check_branch
      %241 = sbr.rel (%p238) target = $region48
    $region47: #{nature_cnn_forward.2} parent=5 // pred_region
      %s242 = ssub.s32 %s13, 1
      %p243 = scmp.lt.s32.totalorder %s18, 1
      %s244 = scalar_select %p243, %s18, 1
      %s245 = smul.addr %s244, 56
      %s246 = smul.addr %s245, 4
      %s247 = scalar_lea.vmem %s0, %s246
      %p248 = pneg %p39
      %p249 = pneg %p36
      %p250 = pneg %p60
      %p251 = pneg %p57
      %p252 = pneg %p81
      %p253 = pneg %p78
      %p254 = pneg %p102
      %p255 = pneg %p99
      %p256 = pneg %p123
      %p257 = pneg %p120
      %p258 = pneg %p144
      %p259 = pneg %p141
      %p260 = pneg %p165
      %p261 = pneg %p162
      %p262 = pneg %p191
      %p263 = pneg %p188
      %p264 = scmp.lt.s32.totalorder %s18, 1
      %s265 = scalar_select %p264, %s18, 1
      %s266 = smul.addr %s265, 7
      %s267 = smul.addr %s266, 4
      %s268 = scalar_lea.vmem %s7, %s267
      %p269 = scmp.lt.s32.totalorder %s18, 1
      %s270 = scalar_select %p269, %s18, 1
      %s271 = smul.addr %s270, 56
      %s272 = smul.addr %s271, 4
      %s273 = scalar_lea.vmem %s0, %s272
      %p274 = scmp.lt.s32.totalorder %s18, 1
      %s275 = scalar_select %p274, %s18, 1
      %s276 = smul.addr %s275, 7
      %s277 = smul.addr %s276, 4
      %s278 = scalar_lea.vmem %s7, %s277
      %v280 = vld [vmem:[%s273] sm:$0xf]
      %v281 = vld [vmem:[%s273 + $0x4] sm:$0xf]
      %v282 = vld [vmem:[%s273 + $0x8] sm:$0xf]
      %v283 = vld [vmem:[%s273 + $0xc] sm:$0xf]
      %v284 = vld [vmem:[%s273 + $0x10] sm:$0xf]
      %v285 = vld [vmem:[%s273 + $0x14] sm:$0xf]
      %v286 = vld [vmem:[%s273 + $0x18] sm:$0xf]
      %v287 = vld [vmem:[%s273 + $0x1c] sm:$0xf]
      %v288 = vld [vmem:[%s273 + $0x20] sm:$0xf]
      %v289 = vld [vmem:[%s273 + $0x24] sm:$0xf]
      %v290 = vld [vmem:[%s273 + $0x28] sm:$0xf]
      %v291 = vld [vmem:[%s273 + $0x2c] sm:$0xf]
      %v292 = vld [vmem:[%s273 + $0x30] sm:$0xf]
      %v293 = vld [vmem:[%s273 + $0x34] sm:$0xf]
      %v294 = vld [vmem:[%s273 + $0x38] sm:$0xf]
      %v295 = vld [vmem:[%s273 + $0x3c] sm:$0xf]
      %v296 = vld [vmem:[%s273 + $0x40] sm:$0xf]
      %v297 = vld [vmem:[%s273 + $0x44] sm:$0xf]
      %v298 = vld [vmem:[%s273 + $0x48] sm:$0xf]
      %v299 = vld [vmem:[%s273 + $0x4c] sm:$0xf]
      %v300 = vld [vmem:[%s273 + $0x50] sm:$0xf]
      %v301 = vld [vmem:[%s273 + $0x54] sm:$0xf]
      %v302 = vld [vmem:[%s273 + $0x58] sm:$0xf]
      %v303 = vld [vmem:[%s273 + $0x5c] sm:$0xf]
      %v304 = vld [vmem:[%s273 + $0x60] sm:$0xf]
      %v305 = vld [vmem:[%s273 + $0x64] sm:$0xf]
      %v306 = vld [vmem:[%s273 + $0x68] sm:$0xf]
      %v307 = vld [vmem:[%s273 + $0x6c] sm:$0xf]
      %v308 = vld [vmem:[%s273 + $0x70] sm:$0xf]
      %v309 = vld [vmem:[%s273 + $0x74] sm:$0xf]
      %v310 = vld [vmem:[%s273 + $0x78] sm:$0xf]
      %v311 = vld [vmem:[%s273 + $0x7c] sm:$0xf]
      %v312 = vld [vmem:[%s273 + $0x80] sm:$0xf]
      %v313 = vld [vmem:[%s273 + $0x84] sm:$0xf]
      %v314 = vld [vmem:[%s273 + $0x88] sm:$0xf]
      %v315 = vld [vmem:[%s273 + $0x8c] sm:$0xf]
      %v316 = vld [vmem:[%s273 + $0x90] sm:$0xf]
      %v317 = vld [vmem:[%s273 + $0x94] sm:$0xf]
      %v318 = vld [vmem:[%s273 + $0x98] sm:$0xf]
      %v319 = vld [vmem:[%s273 + $0x9c] sm:$0xf]
      %v320 = vld [vmem:[%s273 + $0xa0] sm:$0xf]
      %v321 = vld [vmem:[%s273 + $0xa4] sm:$0xf]
      %v322 = vld [vmem:[%s273 + $0xa8] sm:$0xf]
      %v323 = vld [vmem:[%s273 + $0xac] sm:$0xf]
      %v324 = vld [vmem:[%s273 + $0xb0] sm:$0xf]
      %v325 = vld [vmem:[%s273 + $0xb4] sm:$0xf]
      %v326 = vld [vmem:[%s273 + $0xb8] sm:$0xf]
      %v327 = vld [vmem:[%s273 + $0xbc] sm:$0xf]
      %v328 = vld [vmem:[%s273 + $0xc0] sm:$0xf]
      %v329 = vld [vmem:[%s273 + $0xc4] sm:$0xf]
      %v330 = vld [vmem:[%s273 + $0xc8] sm:$0xf]
      %v331 = vld [vmem:[%s273 + $0xcc] sm:$0xf]
      %v332 = vld [vmem:[%s273 + $0xd0] sm:$0xf]
      %v333 = vld [vmem:[%s273 + $0xd4] sm:$0xf]
      %v334 = vld [vmem:[%s273 + $0xd8] sm:$0xf]
      %v335 = vld [vmem:[%s273 + $0xdc] sm:$0x1]
      %v389 = vunpack.c.l.b16 %v280
      %v390 = vunpack.c.l.b16 %v281
      %v391 = vunpack.c.l.b16 %v282
      %v392 = vunpack.c.l.b16 %v283
      %v393 = vunpack.c.l.b16 %v284
      %v394 = vunpack.c.l.b16 %v285
      %v395 = vunpack.c.l.b16 %v286
      %v396 = vunpack.c.l.b16 %v287
      %v397 = vunpack.c.l.b16 %v288
      %v398 = vunpack.c.l.b16 %v289
      %v399 = vunpack.c.l.b16 %v290
      %v400 = vunpack.c.l.b16 %v291
      %v401 = vunpack.c.l.b16 %v292
      %v402 = vunpack.c.l.b16 %v293
      %v403 = vunpack.c.l.b16 %v294
      %v404 = vunpack.c.l.b16 %v295
      %v405 = vunpack.c.l.b16 %v296
      %v406 = vunpack.c.l.b16 %v297
      %v407 = vunpack.c.l.b16 %v298
      %v408 = vunpack.c.l.b16 %v299
      %v409 = vunpack.c.l.b16 %v300
      %v410 = vunpack.c.l.b16 %v301
      %v411 = vunpack.c.l.b16 %v302
      %v412 = vunpack.c.l.b16 %v303
      %v413 = vunpack.c.l.b16 %v304
      %v414 = vunpack.c.l.b16 %v305
      %v415 = vunpack.c.l.b16 %v306
      %v416 = vunpack.c.l.b16 %v307
      %v417 = vunpack.c.l.b16 %v308
      %v418 = vunpack.c.l.b16 %v309
      %v419 = vunpack.c.l.b16 %v310
      %v420 = vunpack.c.l.b16 %v311
      %v421 = vunpack.c.l.b16 %v312
      %v422 = vunpack.c.l.b16 %v313
      %v423 = vunpack.c.l.b16 %v314
      %v424 = vunpack.c.l.b16 %v315
      %v425 = vunpack.c.l.b16 %v316
      %v426 = vunpack.c.l.b16 %v317
      %v427 = vunpack.c.l.b16 %v318
      %v428 = vunpack.c.l.b16 %v319
      %v429 = vunpack.c.l.b16 %v320
      %v430 = vunpack.c.l.b16 %v321
      %v431 = vunpack.c.l.b16 %v322
      %v432 = vunpack.c.l.b16 %v323
      %v433 = vunpack.c.l.b16 %v324
      %v434 = vunpack.c.l.b16 %v325
      %v435 = vunpack.c.l.b16 %v326
      %v436 = vunpack.c.l.b16 %v327
      %v437 = vunpack.c.l.b16 %v328
      %v438 = vunpack.c.l.b16 %v329
      %v439 = vunpack.c.l.b16 %v330
      %v440 = vunpack.c.l.b16 %v331
      %v441 = vunpack.c.l.b16 %v332
      %v442 = vpack.c.b16 %v390, %v389
      %v443 = vpack.c.b16 %v392, %v391
      %v444 = vpack.c.b16 %v394, %v393
      %v445 = vpack.c.b16 %v396, %v395
      %v446 = vpack.c.b16 %v398, %v397
      %v447 = vpack.c.b16 %v400, %v399
      %v448 = vpack.c.b16 %v402, %v401
      %v449 = vpack.c.b16 %v404, %v403
      %v450 = vpack.c.b16 %v406, %v405
      %v451 = vpack.c.b16 %v408, %v407
      %v452 = vpack.c.b16 %v410, %v409
      %v453 = vpack.c.b16 %v412, %v411
      %v454 = vpack.c.b16 %v414, %v413
      %v455 = vpack.c.b16 %v416, %v415
      %v456 = vpack.c.b16 %v418, %v417
      %v457 = vpack.c.b16 %v420, %v419
      %v458 = vpack.c.b16 %v422, %v421
      %v459 = vpack.c.b16 %v424, %v423
      %v460 = vpack.c.b16 %v426, %v425
      %v461 = vpack.c.b16 %v428, %v427
      %v462 = vpack.c.b16 %v430, %v429
      %v463 = vpack.c.b16 %v432, %v431
      %v464 = vpack.c.b16 %v434, %v433
      %v465 = vpack.c.b16 %v436, %v435
      %v466 = vpack.c.b16 %v438, %v437
      %v467 = vpack.c.b16 %v440, %v439
      %v468 = vpack.c.b16 %v441, %v441
      %vm469 = vsmask.f32 7424
      %v471 = vshrl.u32 %v442, 16
      %v473 = vshll.u32 %v442, 16
      %v475 = vrot.slane %v473, 1
      %v476 = vor.u32 %v471, %v475
      %v478 = vshll.u32 %v443, 16
      %v480 = vrot.slane %v478, 1
      %v481 = vsel %vm469, %v476, %v480
      %v482 = vshrl.u32 %v443, 16
      %v484 = vor.u32 %v482, %v480
      %v486 = vshll.u32 %v444, 16
      %v488 = vrot.slane %v486, 1
      %v489 = vsel %vm469, %v484, %v488
      %v490 = vshrl.u32 %v444, 16
      %v492 = vor.u32 %v490, %v488
      %v494 = vshll.u32 %v445, 16
      %v496 = vrot.slane %v494, 1
      %v497 = vsel %vm469, %v492, %v496
      %v498 = vshrl.u32 %v445, 16
      %v500 = vor.u32 %v498, %v496
      %v502 = vshll.u32 %v446, 16
      %v504 = vrot.slane %v502, 1
      %v505 = vsel %vm469, %v500, %v504
      %v506 = vshrl.u32 %v446, 16
      %v508 = vor.u32 %v506, %v504
      %v510 = vshll.u32 %v447, 16
      %v512 = vrot.slane %v510, 1
      %v513 = vsel %vm469, %v508, %v512
      %v514 = vshrl.u32 %v447, 16
      %v516 = vor.u32 %v514, %v512
      %v518 = vshll.u32 %v448, 16
      %v520 = vrot.slane %v518, 1
      %v521 = vsel %vm469, %v516, %v520
      %v522 = vshrl.u32 %v448, 16
      %v524 = vor.u32 %v522, %v520
      %v526 = vshll.u32 %v449, 16
      %v528 = vrot.slane %v526, 1
      %v529 = vsel %vm469, %v524, %v528
      %v530 = vshrl.u32 %v449, 16
      %v532 = vor.u32 %v530, %v528
      %v534 = vshll.u32 %v450, 16
      %v536 = vrot.slane %v534, 1
      %v537 = vsel %vm469, %v532, %v536
      %v538 = vshrl.u32 %v450, 16
      %v540 = vor.u32 %v538, %v536
      %v542 = vshll.u32 %v451, 16
      %v544 = vrot.slane %v542, 1
      %v545 = vsel %vm469, %v540, %v544
      %v546 = vshrl.u32 %v451, 16
      %v548 = vor.u32 %v546, %v544
      %v550 = vshll.u32 %v452, 16
      %v552 = vrot.slane %v550, 1
      %v553 = vsel %vm469, %v548, %v552
      %v554 = vshrl.u32 %v452, 16
      %v556 = vor.u32 %v554, %v552
      %v558 = vshll.u32 %v453, 16
      %v560 = vrot.slane %v558, 1
      %v561 = vsel %vm469, %v556, %v560
      %v562 = vshrl.u32 %v453, 16
      %v564 = vor.u32 %v562, %v560
      %v566 = vshll.u32 %v454, 16
      %v568 = vrot.slane %v566, 1
      %v569 = vsel %vm469, %v564, %v568
      %v570 = vshrl.u32 %v454, 16
      %v572 = vor.u32 %v570, %v568
      %v574 = vshll.u32 %v455, 16
      %v576 = vrot.slane %v574, 1
      %v577 = vsel %vm469, %v572, %v576
      %v578 = vshrl.u32 %v455, 16
      %v580 = vor.u32 %v578, %v576
      %v582 = vshll.u32 %v456, 16
      %v584 = vrot.slane %v582, 1
      %v585 = vsel %vm469, %v580, %v584
      %v586 = vshrl.u32 %v456, 16
      %v588 = vor.u32 %v586, %v584
      %v590 = vshll.u32 %v457, 16
      %v592 = vrot.slane %v590, 1
      %v593 = vsel %vm469, %v588, %v592
      %v594 = vshrl.u32 %v457, 16
      %v596 = vor.u32 %v594, %v592
      %v598 = vshll.u32 %v458, 16
      %v600 = vrot.slane %v598, 1
      %v601 = vsel %vm469, %v596, %v600
      %v602 = vshrl.u32 %v458, 16
      %v604 = vor.u32 %v602, %v600
      %v606 = vshll.u32 %v459, 16
      %v608 = vrot.slane %v606, 1
      %v609 = vsel %vm469, %v604, %v608
      %v610 = vshrl.u32 %v459, 16
      %v612 = vor.u32 %v610, %v608
      %v614 = vshll.u32 %v460, 16
      %v616 = vrot.slane %v614, 1
      %v617 = vsel %vm469, %v612, %v616
      %v618 = vshrl.u32 %v460, 16
      %v620 = vor.u32 %v618, %v616
      %v622 = vshll.u32 %v461, 16
      %v624 = vrot.slane %v622, 1
      %v625 = vsel %vm469, %v620, %v624
      %v626 = vshrl.u32 %v461, 16
      %v628 = vor.u32 %v626, %v624
      %v630 = vshll.u32 %v462, 16
      %v632 = vrot.slane %v630, 1
      %v633 = vsel %vm469, %v628, %v632
      %v634 = vshrl.u32 %v462, 16
      %v636 = vor.u32 %v634, %v632
      %v638 = vshll.u32 %v463, 16
      %v640 = vrot.slane %v638, 1
      %v641 = vsel %vm469, %v636, %v640
      %v642 = vshrl.u32 %v463, 16
      %v644 = vor.u32 %v642, %v640
      %v646 = vshll.u32 %v464, 16
      %v648 = vrot.slane %v646, 1
      %v649 = vsel %vm469, %v644, %v648
      %v650 = vshrl.u32 %v464, 16
      %v652 = vor.u32 %v650, %v648
      %v654 = vshll.u32 %v465, 16
      %v656 = vrot.slane %v654, 1
      %v657 = vsel %vm469, %v652, %v656
      %v658 = vshrl.u32 %v465, 16
      %v660 = vor.u32 %v658, %v656
      %v662 = vshll.u32 %v466, 16
      %v664 = vrot.slane %v662, 1
      %v665 = vsel %vm469, %v660, %v664
      %v666 = vshrl.u32 %v466, 16
      %v668 = vor.u32 %v666, %v664
      %v670 = vshll.u32 %v467, 16
      %v672 = vrot.slane %v670, 1
      %v673 = vsel %vm469, %v668, %v672
      %v674 = vshrl.u32 %v467, 16
      %v676 = vor.u32 %v674, %v672
      %v678 = vshll.u32 %v468, 16
      %v680 = vrot.slane %v678, 1
      %v681 = vsel %vm469, %v676, %v680
      %v682 = vshrl.u32 %v468, 16
      %v684 = vor.u32 %v682, %v680
      %685 = vrot.lane.b32.xlu0 %v481, 64
      %v686 = vpop.permute.xlu0 %685
      %687 = vrot.lane.b32.xlu0 %v489, 64
      %v688 = vpop.permute.xlu0 %687
      %689 = vrot.lane.b32.xlu0 %v497, 64
      %v690 = vpop.permute.xlu0 %689
      %691 = vrot.lane.b32.xlu0 %v505, 64
      %v692 = vpop.permute.xlu0 %691
      %693 = vrot.lane.b32.xlu0 %v513, 64
      %v694 = vpop.permute.xlu0 %693
      %695 = vrot.lane.b32.xlu0 %v521, 64
      %v696 = vpop.permute.xlu0 %695
      %697 = vrot.lane.b32.xlu0 %v529, 64
      %v698 = vpop.permute.xlu0 %697
      %699 = vrot.lane.b32.xlu0 %v537, 64
      %v700 = vpop.permute.xlu0 %699
      %701 = vrot.lane.b32.xlu0 %v545, 64
      %v702 = vpop.permute.xlu0 %701
      %703 = vrot.lane.b32.xlu0 %v553, 64
      %v704 = vpop.permute.xlu0 %703
      %705 = vrot.lane.b32.xlu0 %v561, 64
      %v706 = vpop.permute.xlu0 %705
      %707 = vrot.lane.b32.xlu0 %v569, 64
      %v708 = vpop.permute.xlu0 %707
      %709 = vrot.lane.b32.xlu0 %v577, 64
      %v710 = vpop.permute.xlu0 %709
      %711 = vrot.lane.b32.xlu0 %v585, 64
      %v712 = vpop.permute.xlu0 %711
      %713 = vrot.lane.b32.xlu0 %v593, 64
      %v714 = vpop.permute.xlu0 %713
      %715 = vrot.lane.b32.xlu0 %v601, 64
      %v716 = vpop.permute.xlu0 %715
      %717 = vrot.lane.b32.xlu0 %v609, 64
      %v718 = vpop.permute.xlu0 %717
      %719 = vrot.lane.b32.xlu0 %v617, 64
      %v720 = vpop.permute.xlu0 %719
      %721 = vrot.lane.b32.xlu0 %v625, 64
      %v722 = vpop.permute.xlu0 %721
      %723 = vrot.lane.b32.xlu0 %v633, 64
      %v724 = vpop.permute.xlu0 %723
      %725 = vrot.lane.b32.xlu0 %v641, 64
      %v726 = vpop.permute.xlu0 %725
      %727 = vrot.lane.b32.xlu0 %v649, 64
      %v728 = vpop.permute.xlu0 %727
      %729 = vrot.lane.b32.xlu0 %v657, 64
      %v730 = vpop.permute.xlu0 %729
      %731 = vrot.lane.b32.xlu0 %v665, 64
      %v732 = vpop.permute.xlu0 %731
      %733 = vrot.lane.b32.xlu0 %v673, 64
      %v734 = vpop.permute.xlu0 %733
      %735 = vrot.lane.b32.xlu0 %v681, 64
      %v736 = vpop.permute.xlu0 %735
      %737 = vrot.lane.b32.xlu0 %v684, 64
      %v738 = vpop.permute.xlu0 %737
      %v741 = vunpack.c.l.b16 %v333
      %v742 = vunpack.c.l.b16 %v334
      %v743 = vpack.c.b16 %v741, %v441
      %v744 = vpack.c.b16 %v742, %v742
      %vm745 = vsmask.f32 5376
      %v746 = vrot.slane %v482, 2
      %v747 = vrot.slane %v478, 3
      %v748 = vor.u32 %v746, %v747
      %v749 = vrot.slane %v490, 2
      %v750 = vrot.slane %v486, 3
      %v751 = vor.u32 %v749, %v750
      %v752 = vsel %vm745, %v748, %v751
      %v753 = vrot.slane %v498, 2
      %v754 = vrot.slane %v494, 3
      %v755 = vor.u32 %v753, %v754
      %v756 = vsel %vm745, %v751, %v755
      %v757 = vrot.slane %v506, 2
      %v758 = vrot.slane %v502, 3
      %v759 = vor.u32 %v757, %v758
      %v760 = vsel %vm745, %v755, %v759
      %v761 = vrot.slane %v514, 2
      %v762 = vrot.slane %v510, 3
      %v763 = vor.u32 %v761, %v762
      %v764 = vsel %vm745, %v759, %v763
      %v765 = vrot.slane %v522, 2
      %v766 = vrot.slane %v518, 3
      %v767 = vor.u32 %v765, %v766
      %v768 = vsel %vm745, %v763, %v767
      %v769 = vrot.slane %v530, 2
      %v770 = vrot.slane %v526, 3
      %v771 = vor.u32 %v769, %v770
      %v772 = vsel %vm745, %v767, %v771
      %v773 = vrot.slane %v538, 2
      %v774 = vrot.slane %v534, 3
      %v775 = vor.u32 %v773, %v774
      %v776 = vsel %vm745, %v771, %v775
      %v777 = vrot.slane %v546, 2
      %v778 = vrot.slane %v542, 3
      %v779 = vor.u32 %v777, %v778
      %v780 = vsel %vm745, %v775, %v779
      %v781 = vrot.slane %v554, 2
      %v782 = vrot.slane %v550, 3
      %v783 = vor.u32 %v781, %v782
      %v784 = vsel %vm745, %v779, %v783
      %v785 = vrot.slane %v562, 2
      %v786 = vrot.slane %v558, 3
      %v787 = vor.u32 %v785, %v786
      %v788 = vsel %vm745, %v783, %v787
      %v789 = vrot.slane %v570, 2
      %v790 = vrot.slane %v566, 3
      %v791 = vor.u32 %v789, %v790
      %v792 = vsel %vm745, %v787, %v791
      %v793 = vrot.slane %v578, 2
      %v794 = vrot.slane %v574, 3
      %v795 = vor.u32 %v793, %v794
      %v796 = vsel %vm745, %v791, %v795
      %v797 = vrot.slane %v586, 2
      %v798 = vrot.slane %v582, 3
      %v799 = vor.u32 %v797, %v798
      %v800 = vsel %vm745, %v795, %v799
      %v801 = vrot.slane %v594, 2
      %v802 = vrot.slane %v590, 3
      %v803 = vor.u32 %v801, %v802
      %v804 = vsel %vm745, %v799, %v803
      %v805 = vrot.slane %v602, 2
      %v806 = vrot.slane %v598, 3
      %v807 = vor.u32 %v805, %v806
      %v808 = vsel %vm745, %v803, %v807
      %v809 = vrot.slane %v610, 2
      %v810 = vrot.slane %v606, 3
      %v811 = vor.u32 %v809, %v810
      %v812 = vsel %vm745, %v807, %v811
      %v813 = vrot.slane %v618, 2
      %v814 = vrot.slane %v614, 3
      %v815 = vor.u32 %v813, %v814
      %v816 = vsel %vm745, %v811, %v815
      %v817 = vrot.slane %v626, 2
      %v818 = vrot.slane %v622, 3
      %v819 = vor.u32 %v817, %v818
      %v820 = vsel %vm745, %v815, %v819
      %v821 = vrot.slane %v634, 2
      %v822 = vrot.slane %v630, 3
      %v823 = vor.u32 %v821, %v822
      %v824 = vsel %vm745, %v819, %v823
      %v825 = vrot.slane %v642, 2
      %v826 = vrot.slane %v638, 3
      %v827 = vor.u32 %v825, %v826
      %v828 = vsel %vm745, %v823, %v827
      %v829 = vrot.slane %v650, 2
      %v830 = vrot.slane %v646, 3
      %v831 = vor.u32 %v829, %v830
      %v832 = vsel %vm745, %v827, %v831
      %v833 = vrot.slane %v658, 2
      %v834 = vrot.slane %v654, 3
      %v835 = vor.u32 %v833, %v834
      %v836 = vsel %vm745, %v831, %v835
      %v837 = vrot.slane %v666, 2
      %v838 = vrot.slane %v662, 3
      %v839 = vor.u32 %v837, %v838
      %v840 = vsel %vm745, %v835, %v839
      %v841 = vrot.slane %v674, 2
      %v842 = vrot.slane %v670, 3
      %v843 = vor.u32 %v841, %v842
      %v844 = vsel %vm745, %v839, %v843
      %v846 = vshrl.u32 %v743, 16
      %v848 = vrot.slane %v846, 2
      %v849 = vshll.u32 %v743, 16
      %v851 = vrot.slane %v849, 3
      %v852 = vor.u32 %v848, %v851
      %v853 = vsel %vm745, %v843, %v852
      %v855 = vshrl.u32 %v744, 16
      %v857 = vrot.slane %v855, 2
      %v858 = vshll.u32 %v744, 16
      %v860 = vrot.slane %v858, 3
      %v861 = vor.u32 %v857, %v860
      %v862 = vsel %vm745, %v852, %v861
      %v864 = vunpack.c.l.b16 %v335
      %v865 = vpack.c.b16 %v864, %v742
      %vm866 = vcmask 1044480
      %v867 = vrot.slane %v443, 3
      %v868 = vrot.slane %v444, 3
      %v869 = vsel %vm866, %v867, %v868
      %v870 = vrot.slane %v445, 3
      %v871 = vsel %vm866, %v868, %v870
      %v872 = vrot.slane %v446, 3
      %v873 = vsel %vm866, %v870, %v872
      %v874 = vrot.slane %v447, 3
      %v875 = vsel %vm866, %v872, %v874
      %v876 = vrot.slane %v448, 3
      %v877 = vsel %vm866, %v874, %v876
      %v878 = vrot.slane %v449, 3
      %v879 = vsel %vm866, %v876, %v878
      %v880 = vrot.slane %v450, 3
      %v881 = vsel %vm866, %v878, %v880
      %v882 = vrot.slane %v451, 3
      %v883 = vsel %vm866, %v880, %v882
      %v884 = vrot.slane %v452, 3
      %v885 = vsel %vm866, %v882, %v884
      %v886 = vrot.slane %v453, 3
      %v887 = vsel %vm866, %v884, %v886
      %v888 = vrot.slane %v454, 3
      %v889 = vsel %vm866, %v886, %v888
      %v890 = vrot.slane %v455, 3
      %v891 = vsel %vm866, %v888, %v890
      %v892 = vrot.slane %v456, 3
      %v893 = vsel %vm866, %v890, %v892
      %v894 = vrot.slane %v457, 3
      %v895 = vsel %vm866, %v892, %v894
      %v896 = vrot.slane %v458, 3
      %v897 = vsel %vm866, %v894, %v896
      %v898 = vrot.slane %v459, 3
      %v899 = vsel %vm866, %v896, %v898
      %v900 = vrot.slane %v460, 3
      %v901 = vsel %vm866, %v898, %v900
      %v902 = vrot.slane %v461, 3
      %v903 = vsel %vm866, %v900, %v902
      %v904 = vrot.slane %v462, 3
      %v905 = vsel %vm866, %v902, %v904
      %v906 = vrot.slane %v463, 3
      %v907 = vsel %vm866, %v904, %v906
      %v908 = vrot.slane %v464, 3
      %v909 = vsel %vm866, %v906, %v908
      %v910 = vrot.slane %v465, 3
      %v911 = vsel %vm866, %v908, %v910
      %v912 = vrot.slane %v466, 3
      %v913 = vsel %vm866, %v910, %v912
      %v914 = vrot.slane %v467, 3
      %v915 = vsel %vm866, %v912, %v914
      %v916 = vrot.slane %v743, 3
      %v917 = vsel %vm866, %v914, %v916
      %v918 = vrot.slane %v865, 3
      %v919 = vsel %vm866, %v916, %v918
      %920 = vrot.lane.b32.xlu0 %v869, 64
      %v921 = vpop.permute.xlu0 %920
      %922 = vrot.lane.b32.xlu0 %v871, 64
      %v923 = vpop.permute.xlu0 %922
      %924 = vrot.lane.b32.xlu0 %v873, 64
      %v925 = vpop.permute.xlu0 %924
      %926 = vrot.lane.b32.xlu0 %v875, 64
      %v927 = vpop.permute.xlu0 %926
      %928 = vrot.lane.b32.xlu0 %v877, 64
      %v929 = vpop.permute.xlu0 %928
      %930 = vrot.lane.b32.xlu0 %v879, 64
      %v931 = vpop.permute.xlu0 %930
      %932 = vrot.lane.b32.xlu0 %v881, 64
      %v933 = vpop.permute.xlu0 %932
      %934 = vrot.lane.b32.xlu0 %v883, 64
      %v935 = vpop.permute.xlu0 %934
      %936 = vrot.lane.b32.xlu0 %v885, 64
      %v937 = vpop.permute.xlu0 %936
      %938 = vrot.lane.b32.xlu0 %v887, 64
      %v939 = vpop.permute.xlu0 %938
      %940 = vrot.lane.b32.xlu0 %v889, 64
      %v941 = vpop.permute.xlu0 %940
      %942 = vrot.lane.b32.xlu0 %v891, 64
      %v943 = vpop.permute.xlu0 %942
      %944 = vrot.lane.b32.xlu0 %v893, 64
      %v945 = vpop.permute.xlu0 %944
      %946 = vrot.lane.b32.xlu0 %v895, 64
      %v947 = vpop.permute.xlu0 %946
      %948 = vrot.lane.b32.xlu0 %v897, 64
      %v949 = vpop.permute.xlu0 %948
      %950 = vrot.lane.b32.xlu0 %v899, 64
      %v951 = vpop.permute.xlu0 %950
      %952 = vrot.lane.b32.xlu0 %v901, 64
      %v953 = vpop.permute.xlu0 %952
      %954 = vrot.lane.b32.xlu0 %v903, 64
      %v955 = vpop.permute.xlu0 %954
      %956 = vrot.lane.b32.xlu0 %v905, 64
      %v957 = vpop.permute.xlu0 %956
      %958 = vrot.lane.b32.xlu0 %v907, 64
      %v959 = vpop.permute.xlu0 %958
      %960 = vrot.lane.b32.xlu0 %v909, 64
      %v961 = vpop.permute.xlu0 %960
      %962 = vrot.lane.b32.xlu0 %v911, 64
      %v963 = vpop.permute.xlu0 %962
      %964 = vrot.lane.b32.xlu0 %v913, 64
      %v965 = vpop.permute.xlu0 %964
      %966 = vrot.lane.b32.xlu0 %v915, 64
      %v967 = vpop.permute.xlu0 %966
      %968 = vrot.lane.b32.xlu0 %v917, 64
      %v969 = vpop.permute.xlu0 %968
      %970 = vrot.lane.b32.xlu0 %v919, 64
      %v971 = vpop.permute.xlu0 %970
      %972 = vrot.lane.b32.xlu0 %v918, 64
      %v973 = vpop.permute.xlu0 %972
      %vm974 = vcmask 523264
      %v976 = vsel %vm974, %v442, %v686
      %v979 = vsel %vm974, %v443, %v688
      %v982 = vsel %vm974, %v444, %v690
      %v985 = vsel %vm974, %v445, %v692
      %v988 = vsel %vm974, %v446, %v694
      %v991 = vsel %vm974, %v447, %v696
      %v994 = vsel %vm974, %v448, %v698
      %v997 = vsel %vm974, %v449, %v700
      %v1000 = vsel %vm974, %v450, %v702
      %v1003 = vsel %vm974, %v451, %v704
      %v1006 = vsel %vm974, %v452, %v706
      %v1009 = vsel %vm974, %v453, %v708
      %v1012 = vsel %vm974, %v454, %v710
      %v1015 = vsel %vm974, %v455, %v712
      %v1018 = vsel %vm974, %v456, %v714
      %v1021 = vsel %vm974, %v457, %v716
      %v1024 = vsel %vm974, %v458, %v718
      %v1027 = vsel %vm974, %v459, %v720
      %v1030 = vsel %vm974, %v460, %v722
      %v1033 = vsel %vm974, %v461, %v724
      %v1036 = vsel %vm974, %v462, %v726
      %v1039 = vsel %vm974, %v463, %v728
      %v1042 = vsel %vm974, %v464, %v730
      %v1045 = vsel %vm974, %v465, %v732
      %v1048 = vsel %vm974, %v466, %v734
      %v1051 = vsel %vm974, %v467, %v736
      %v1054 = vsel %vm974, %v468, %v738
      %v1058 = vsel %vm974, %v752, %v921
      %v1062 = vsel %vm974, %v756, %v923
      %v1066 = vsel %vm974, %v760, %v925
      %v1070 = vsel %vm974, %v764, %v927
      %v1074 = vsel %vm974, %v768, %v929
      %v1078 = vsel %vm974, %v772, %v931
      %v1082 = vsel %vm974, %v776, %v933
      %v1086 = vsel %vm974, %v780, %v935
      %v1090 = vsel %vm974, %v784, %v937
      %v1094 = vsel %vm974, %v788, %v939
      %v1098 = vsel %vm974, %v792, %v941
      %v1102 = vsel %vm974, %v796, %v943
      %v1106 = vsel %vm974, %v800, %v945
      %v1110 = vsel %vm974, %v804, %v947
      %v1114 = vsel %vm974, %v808, %v949
      %v1118 = vsel %vm974, %v812, %v951
      %v1122 = vsel %vm974, %v816, %v953
      %v1126 = vsel %vm974, %v820, %v955
      %v1130 = vsel %vm974, %v824, %v957
      %v1134 = vsel %vm974, %v828, %v959
      %v1138 = vsel %vm974, %v832, %v961
      %v1142 = vsel %vm974, %v836, %v963
      %v1146 = vsel %vm974, %v840, %v965
      %v1150 = vsel %vm974, %v844, %v967
      %v1154 = vsel %vm974, %v853, %v969
      %v1158 = vsel %vm974, %v862, %v971
      %v1162 = vsel %vm974, %v861, %v973
      %v1164 = vld [vmem:[%s1] sm:$0xf]
      %v1165 = vld [vmem:[%s1 + $0x4] sm:$0xf]
      %v1166 = vld [vmem:[%s1 + $0x8] sm:$0xf]
      %v1167 = vld [vmem:[%s1 + $0xc] sm:$0xf]
      %v1168 = vld [vmem:[%s1 + $0x10] sm:$0xf]
      %v1169 = vld [vmem:[%s1 + $0x14] sm:$0xf]
      %v1170 = vld [vmem:[%s1 + $0x18] sm:$0xf]
      %v1171 = vld [vmem:[%s1 + $0x1c] sm:$0xf]
      %v1172 = vld [vmem:[%s1 + $0x20] sm:$0xf]
      %v1173 = vld [vmem:[%s1 + $0x24] sm:$0xf]
      %v1174 = vld [vmem:[%s1 + $0x28] sm:$0xf]
      %v1175 = vld [vmem:[%s1 + $0x2c] sm:$0xf]
      %v1176 = vld [vmem:[%s1 + $0x30] sm:$0xf]
      %v1177 = vld [vmem:[%s1 + $0x34] sm:$0xf]
      %v1178 = vld [vmem:[%s1 + $0x38] sm:$0xf]
      %v1179 = vld [vmem:[%s1 + $0x3c] sm:$0xf]
      %v1180 = vld [vmem:[%s1 + $0x40] sm:$0xf]
      %v1181 = vld [vmem:[%s1 + $0x44] sm:$0xf]
      %v1182 = vld [vmem:[%s1 + $0x48] sm:$0xf]
      %v1183 = vld [vmem:[%s1 + $0x4c] sm:$0xf]
      %v1184 = vld [vmem:[%s1 + $0x50] sm:$0xf]
      %v1185 = vld [vmem:[%s1 + $0x54] sm:$0xf]
      %v1186 = vld [vmem:[%s1 + $0x58] sm:$0xf]
      %v1187 = vld [vmem:[%s1 + $0x5c] sm:$0xf]
      %v1188 = vld [vmem:[%s1 + $0x60] sm:$0xf]
      %v1189 = vld [vmem:[%s1 + $0x64] sm:$0xf]
      %v1190 = vld [vmem:[%s1 + $0x68] sm:$0xf]
      %v1191 = vld [vmem:[%s1 + $0x6c] sm:$0xf]
      %v1192 = vld [vmem:[%s1 + $0x70] sm:$0xf]
      %v1193 = vld [vmem:[%s1 + $0x74] sm:$0xf]
      %v1194 = vld [vmem:[%s1 + $0x78] sm:$0xf]
      %v1195 = vld [vmem:[%s1 + $0x7c] sm:$0xf]
      %v1196 = vld [vmem:[%s2] sm:$0x1]
      %v1198 = vlaneseq
      %v1199 = vshrl.u32 %v1198, 7
      %v1200 = vsub.s32 0, %v1199
      %v1201 = vrot.slane %v1196, %v1200
      %v1235 = vunpack.c.l.b16 %v1164
      %v1236 = vunpack.c.l.b16 %v1165
      %v1237 = vunpack.c.l.b16 %v1166
      %v1238 = vunpack.c.l.b16 %v1167
      %v1239 = vunpack.c.l.b16 %v1168
      %v1240 = vunpack.c.l.b16 %v1169
      %v1241 = vunpack.c.l.b16 %v1170
      %v1242 = vunpack.c.l.b16 %v1171
      %v1243 = vunpack.c.l.b16 %v1172
      %v1244 = vunpack.c.l.b16 %v1173
      %v1245 = vunpack.c.l.b16 %v1174
      %v1246 = vunpack.c.l.b16 %v1175
      %v1247 = vunpack.c.l.b16 %v1176
      %v1248 = vunpack.c.l.b16 %v1177
      %v1249 = vunpack.c.l.b16 %v1178
      %v1250 = vunpack.c.l.b16 %v1179
      %v1251 = vunpack.c.l.b16 %v1180
      %v1252 = vunpack.c.l.b16 %v1181
      %v1253 = vunpack.c.l.b16 %v1182
      %v1254 = vunpack.c.l.b16 %v1183
      %v1255 = vunpack.c.l.b16 %v1184
      %v1256 = vunpack.c.l.b16 %v1185
      %v1257 = vunpack.c.l.b16 %v1186
      %v1258 = vunpack.c.l.b16 %v1187
      %v1259 = vunpack.c.l.b16 %v1188
      %v1260 = vunpack.c.l.b16 %v1189
      %v1261 = vunpack.c.l.b16 %v1190
      %v1262 = vunpack.c.l.b16 %v1191
      %v1263 = vunpack.c.l.b16 %v1192
      %v1264 = vunpack.c.l.b16 %v1193
      %v1265 = vunpack.c.l.b16 %v1194
      %v1266 = vunpack.c.l.b16 %v1195
      %v1267 = vpack.c.b16 %v1236, %v1235
      %v1268 = vpack.c.b16 %v1238, %v1237
      %v1269 = vpack.c.b16 %v1240, %v1239
      %v1270 = vpack.c.b16 %v1242, %v1241
      %v1271 = vpack.c.b16 %v1244, %v1243
      %v1272 = vpack.c.b16 %v1246, %v1245
      %v1273 = vpack.c.b16 %v1248, %v1247
      %v1274 = vpack.c.b16 %v1250, %v1249
      %v1275 = vpack.c.b16 %v1252, %v1251
      %v1276 = vpack.c.b16 %v1254, %v1253
      %v1277 = vpack.c.b16 %v1256, %v1255
      %v1278 = vpack.c.b16 %v1258, %v1257
      %v1279 = vpack.c.b16 %v1260, %v1259
      %v1280 = vpack.c.b16 %v1262, %v1261
      %v1281 = vpack.c.b16 %v1264, %v1263
      %v1282 = vpack.c.b16 %v1266, %v1265
      %1299 = vmatprep.subr.bf16.mxu0 0
      %1300 = vmatpush1.bf16.msra.mxu0 %v1267
      %1301 = vmatprep.subr.bf16.mxu0 0
      %1302 = vmatpush1.bf16.msra.mxu0 %v1268
      %1303 = vmatprep.subr.bf16.mxu0 0
      %1304 = vmatpush1.bf16.msra.mxu0 %v1269
      %1305 = vmatprep.subr.bf16.mxu0 0
      %1306 = vmatpush1.bf16.msra.mxu0 %v1270
      %1307 = vmatprep.subr.bf16.mxu0 0
      %1308 = vmatpush1.bf16.msra.mxu0 %v1271
      %1309 = vmatprep.subr.bf16.mxu0 0
      %1310 = vmatpush1.bf16.msra.mxu0 %v1272
      %1311 = vmatprep.subr.bf16.mxu0 0
      %1312 = vmatpush1.bf16.msra.mxu0 %v1273
      %1313 = vmatprep.subr.bf16.mxu0 0
      %1314 = vmatpush1.bf16.msra.mxu0 %v1274
      %1315 = vmatprep.subr.bf16.mxu0 0
      %1316 = vmatpush1.bf16.msra.mxu0 %v1275
      %1317 = vmatprep.subr.bf16.mxu0 0
      %1318 = vmatpush1.bf16.msra.mxu0 %v1276
      %1319 = vmatprep.subr.bf16.mxu0 0
      %1320 = vmatpush1.bf16.msra.mxu0 %v1277
      %1321 = vmatprep.subr.bf16.mxu0 0
      %1322 = vmatpush1.bf16.msra.mxu0 %v1278
      %1323 = vmatprep.subr.bf16.mxu0 0
      %1324 = vmatpush1.bf16.msra.mxu0 %v1279
      %1325 = vmatprep.subr.bf16.mxu0 0
      %1326 = vmatpush1.bf16.msra.mxu0 %v1280
      %1327 = vmatprep.subr.bf16.mxu0 0
      %1328 = vmatpush1.bf16.msra.mxu0 %v1281
      %1329 = vmatprep.subr.bf16.mxu0 0
      %1330 = vmatpush1.bf16.msra.mxu0 %v1282
      %1331 = vmatprep.mubr.bf16.mxu0 %v1058
      %1332 = vmatmul.mubr.bf16.gmra.mrb[0].mxu0 %v976
      %v1333 = vpop.f32.mrb[0].mxu0
      %v1334 = vadd.f32 %v1201, %v1333
      %v1335 = vpop.f32.mrb[0].mxu0
      %v1336 = vpop.f32.mrb[0].mxu0
      %v1337 = vadd.f32 %v1201, %v1336
      %v1338 = vpop.f32.mrb[0].mxu0
      %1339 = vmatprep.mubr.bf16.mxu0 %v1062
      %1340 = vmatmul.mubr.bf16.gmra.mrb[0].mxu0 %v979
      %v1341 = vpop.f32.mrb[0].mxu0
      %v1342 = vadd.f32 %v1201, %v1341
      %v1343 = vpop.f32.mrb[0].mxu0
      %v1344 = vpop.f32.mrb[0].mxu0
      %v1345 = vadd.f32 %v1201, %v1344
      %v1346 = vpop.f32.mrb[0].mxu0
      %1347 = vmatprep.mubr.bf16.mxu0 %v1066
      %1348 = vmatmul.mubr.bf16.gmra.mrb[0].mxu0 %v982
      %v1349 = vpop.f32.mrb[0].mxu0
      %v1350 = vadd.f32 %v1201, %v1349
      %v1351 = vpop.f32.mrb[0].mxu0
      %v1352 = vpop.f32.mrb[0].mxu0
      %v1353 = vadd.f32 %v1201, %v1352
      %v1354 = vpop.f32.mrb[0].mxu0
      %1355 = vmatprep.mubr.bf16.mxu0 %v1070
      %1356 = vmatmul.mubr.bf16.gmra.mrb[0].mxu0 %v985
      %v1357 = vpop.f32.mrb[0].mxu0
      %v1358 = vadd.f32 %v1201, %v1357
      %v1359 = vpop.f32.mrb[0].mxu0
      %v1360 = vpop.f32.mrb[0].mxu0
      %v1361 = vadd.f32 %v1201, %v1360
      %v1362 = vpop.f32.mrb[0].mxu0
      %1363 = vmatprep.mubr.bf16.mxu0 %v1074
      %1364 = vmatmul.mubr.bf16.gmra.mrb[0].mxu0 %v988
      %v1365 = vpop.f32.mrb[0].mxu0
      %v1366 = vadd.f32 %v1201, %v1365
      %v1367 = vpop.f32.mrb[0].mxu0
      %v1368 = vpop.f32.mrb[0].mxu0
      %v1369 = vadd.f32 %v1201, %v1368
      %v1370 = vpop.f32.mrb[0].mxu0
      %1371 = vmatprep.mubr.bf16.mxu0 %v1078
      %1372 = vmatmul.mubr.bf16.gmra.mrb[0].mxu0 %v991
      %v1373 = vpop.f32.mrb[0].mxu0
      %v1374 = vadd.f32 %v1201, %v1373
      %v1375 = vpop.f32.mrb[0].mxu0
      %v1376 = vpop.f32.mrb[0].mxu0
      %v1377 = vadd.f32 %v1201, %v1376
      %v1378 = vpop.f32.mrb[0].mxu0
      %1379 = vmatprep.mubr.bf16.mxu0 %v1082
      %1380 = vmatmul.mubr.bf16.gmra.mrb[0].mxu0 %v994
      %v1381 = vpop.f32.mrb[0].mxu0
      %v1382 = vadd.f32 %v1201, %v1381
      %v1383 = vpop.f32.mrb[0].mxu0
      %v1384 = vpop.f32.mrb[0].mxu0
      %v1385 = vadd.f32 %v1201, %v1384
      %v1386 = vpop.f32.mrb[0].mxu0
      %1387 = vmatprep.mubr.bf16.mxu0 %v1086
      %1388 = vmatmul.mubr.bf16.gmra.mrb[0].mxu0 %v997
      %v1389 = vpop.f32.mrb[0].mxu0
      %v1390 = vadd.f32 %v1201, %v1389
      %v1391 = vpop.f32.mrb[0].mxu0
      %v1392 = vpop.f32.mrb[0].mxu0
      %v1393 = vadd.f32 %v1201, %v1392
      %v1394 = vpop.f32.mrb[0].mxu0
      %1395 = vmatprep.mubr.bf16.mxu0 %v1090
      %1396 = vmatmul.mubr.bf16.gmra.mrb[0].mxu0 %v1000
      %v1397 = vpop.f32.mrb[0].mxu0
      %v1398 = vadd.f32 %v1201, %v1397
      %v1399 = vpop.f32.mrb[0].mxu0
      %v1400 = vpop.f32.mrb[0].mxu0
      %v1401 = vadd.f32 %v1201, %v1400
      %v1402 = vpop.f32.mrb[0].mxu0
      %1403 = vmatprep.mubr.bf16.mxu0 %v1094
      %1404 = vmatmul.mubr.bf16.gmra.mrb[0].mxu0 %v1003
      %v1405 = vpop.f32.mrb[0].mxu0
      %v1406 = vadd.f32 %v1201, %v1405
      %v1407 = vpop.f32.mrb[0].mxu0
      %v1408 = vpop.f32.mrb[0].mxu0
      %v1409 = vadd.f32 %v1201, %v1408
      %v1410 = vpop.f32.mrb[0].mxu0
      %1411 = vmatprep.mubr.bf16.mxu0 %v1098
      %1412 = vmatmul.mubr.bf16.gmra.mrb[0].mxu0 %v1006
      %v1413 = vpop.f32.mrb[0].mxu0
      %v1414 = vadd.f32 %v1201, %v1413
      %v1415 = vpop.f32.mrb[0].mxu0
      %v1416 = vpop.f32.mrb[0].mxu0
      %v1417 = vadd.f32 %v1201, %v1416
      %v1418 = vpop.f32.mrb[0].mxu0
      %1419 = vmatprep.mubr.bf16.mxu0 %v1102
      %1420 = vmatmul.mubr.bf16.gmra.mrb[0].mxu0 %v1009
      %v1421 = vpop.f32.mrb[0].mxu0
      %v1422 = vadd.f32 %v1201, %v1421
      %v1423 = vpop.f32.mrb[0].mxu0
      %v1424 = vpop.f32.mrb[0].mxu0
      %v1425 = vadd.f32 %v1201, %v1424
      %v1426 = vpop.f32.mrb[0].mxu0
      %1427 = vmatprep.mubr.bf16.mxu0 %v1106
      %1428 = vmatmul.mubr.bf16.gmra.mrb[0].mxu0 %v1012
      %v1429 = vpop.f32.mrb[0].mxu0
      %v1430 = vadd.f32 %v1201, %v1429
      %v1431 = vpop.f32.mrb[0].mxu0
      %v1432 = vpop.f32.mrb[0].mxu0
      %v1433 = vadd.f32 %v1201, %v1432
      %v1434 = vpop.f32.mrb[0].mxu0
      %1435 = vmatprep.mubr.bf16.mxu0 %v1110
      %1436 = vmatmul.mubr.bf16.gmra.mrb[0].mxu0 %v1015
      %v1437 = vpop.f32.mrb[0].mxu0
      %v1438 = vadd.f32 %v1201, %v1437
      %v1439 = vpop.f32.mrb[0].mxu0
      %v1440 = vpop.f32.mrb[0].mxu0
      %v1441 = vadd.f32 %v1201, %v1440
      %v1442 = vpop.f32.mrb[0].mxu0
      %1443 = vmatprep.mubr.bf16.mxu0 %v1114
      %1444 = vmatmul.mubr.bf16.gmra.mrb[0].mxu0 %v1018
      %v1445 = vpop.f32.mrb[0].mxu0
      %v1446 = vadd.f32 %v1201, %v1445
      %v1447 = vpop.f32.mrb[0].mxu0
      %v1448 = vpop.f32.mrb[0].mxu0
      %v1449 = vadd.f32 %v1201, %v1448
      %v1450 = vpop.f32.mrb[0].mxu0
      %1451 = vmatprep.mubr.bf16.mxu0 %v1118
      %1452 = vmatmul.mubr.bf16.gmra.mrb[0].mxu0 %v1021
      %v1453 = vpop.f32.mrb[0].mxu0
      %v1454 = vadd.f32 %v1201, %v1453
      %v1455 = vpop.f32.mrb[0].mxu0
      %v1456 = vpop.f32.mrb[0].mxu0
      %v1457 = vadd.f32 %v1201, %v1456
      %v1458 = vpop.f32.mrb[0].mxu0
      %1459 = vmatprep.mubr.bf16.mxu0 %v1122
      %1460 = vmatmul.mubr.bf16.gmra.mrb[0].mxu0 %v1024
      %v1461 = vpop.f32.mrb[0].mxu0
      %v1462 = vadd.f32 %v1201, %v1461
      %v1463 = vpop.f32.mrb[0].mxu0
      %v1464 = vpop.f32.mrb[0].mxu0
      %v1465 = vadd.f32 %v1201, %v1464
      %v1466 = vpop.f32.mrb[0].mxu0
      %1467 = vmatprep.mubr.bf16.mxu0 %v1126
      %1468 = vmatmul.mubr.bf16.gmra.mrb[0].mxu0 %v1027
      %v1469 = vpop.f32.mrb[0].mxu0
      %v1470 = vadd.f32 %v1201, %v1469
      %v1471 = vpop.f32.mrb[0].mxu0
      %v1472 = vpop.f32.mrb[0].mxu0
      %v1473 = vadd.f32 %v1201, %v1472
      %v1474 = vpop.f32.mrb[0].mxu0
      %1475 = vmatprep.mubr.bf16.mxu0 %v1130
      %1476 = vmatmul.mubr.bf16.gmra.mrb[0].mxu0 %v1030
      %v1477 = vpop.f32.mrb[0].mxu0
      %v1478 = vadd.f32 %v1201, %v1477
      %v1479 = vpop.f32.mrb[0].mxu0
      %v1480 = vpop.f32.mrb[0].mxu0
      %v1481 = vadd.f32 %v1201, %v1480
      %v1482 = vpop.f32.mrb[0].mxu0
      %1483 = vmatprep.mubr.bf16.mxu0 %v1134
      %1484 = vmatmul.mubr.bf16.gmra.mrb[0].mxu0 %v1033
      %v1485 = vpop.f32.mrb[0].mxu0
      %v1486 = vadd.f32 %v1201, %v1485
      %v1487 = vpop.f32.mrb[0].mxu0
      %v1488 = vpop.f32.mrb[0].mxu0
      %v1489 = vadd.f32 %v1201, %v1488
      %v1490 = vpop.f32.mrb[0].mxu0
      %1491 = vmatprep.mubr.bf16.mxu0 %v1138
      %1492 = vmatmul.mubr.bf16.gmra.mrb[0].mxu0 %v1036
      %v1493 = vpop.f32.mrb[0].mxu0
      %v1494 = vadd.f32 %v1201, %v1493
      %v1495 = vpop.f32.mrb[0].mxu0
      %v1496 = vpop.f32.mrb[0].mxu0
      %v1497 = vadd.f32 %v1201, %v1496
      %v1498 = vpop.f32.mrb[0].mxu0
      %1499 = vmatprep.mubr.bf16.mxu0 %v1142
      %1500 = vmatmul.mubr.bf16.gmra.mrb[0].mxu0 %v1039
      %v1501 = vpop.f32.mrb[0].mxu0
      %v1502 = vadd.f32 %v1201, %v1501
      %v1503 = vpop.f32.mrb[0].mxu0
      %v1504 = vpop.f32.mrb[0].mxu0
      %v1505 = vadd.f32 %v1201, %v1504
      %v1506 = vpop.f32.mrb[0].mxu0
      %1507 = vmatprep.mubr.bf16.mxu0 %v1146
      %1508 = vmatmul.mubr.bf16.gmra.mrb[0].mxu0 %v1042
      %v1509 = vpop.f32.mrb[0].mxu0
      %v1510 = vadd.f32 %v1201, %v1509
      %v1511 = vpop.f32.mrb[0].mxu0
      %v1512 = vpop.f32.mrb[0].mxu0
      %v1513 = vadd.f32 %v1201, %v1512
      %v1514 = vpop.f32.mrb[0].mxu0
      %1515 = vmatprep.mubr.bf16.mxu0 %v1150
      %1516 = vmatmul.mubr.bf16.gmra.mrb[0].mxu0 %v1045
      %v1517 = vpop.f32.mrb[0].mxu0
      %v1518 = vadd.f32 %v1201, %v1517
      %v1519 = vpop.f32.mrb[0].mxu0
      %v1520 = vpop.f32.mrb[0].mxu0
      %v1521 = vadd.f32 %v1201, %v1520
      %v1522 = vpop.f32.mrb[0].mxu0
      %1523 = vmatprep.mubr.bf16.mxu0 %v1154
      %1524 = vmatmul.mubr.bf16.gmra.mrb[0].mxu0 %v1048
      %v1525 = vpop.f32.mrb[0].mxu0
      %v1526 = vadd.f32 %v1201, %v1525
      %v1527 = vpop.f32.mrb[0].mxu0
      %v1528 = vpop.f32.mrb[0].mxu0
      %v1529 = vadd.f32 %v1201, %v1528
      %v1530 = vpop.f32.mrb[0].mxu0
      %1531 = vmatprep.mubr.bf16.mxu0 %v1158
      %1532 = vmatmul.mubr.bf16.gmra.mrb[0].mxu0 %v1051
      %v1533 = vpop.f32.mrb[0].mxu0
      %v1534 = vadd.f32 %v1201, %v1533
      %v1535 = vpop.f32.mrb[0].mxu0
      %v1536 = vpop.f32.mrb[0].mxu0
      %v1537 = vadd.f32 %v1201, %v1536
      %v1538 = vpop.f32.mrb[0].mxu0
      %1539 = vmatprep.mubr.bf16.mxu0 %v1162
      %1540 = vmatmul.mubr.bf16.gmra.mrb[0].mxu0 %v1054
      %v1541 = vpop.f32.mrb[0].mxu0
      %v1542 = vadd.f32 %v1201, %v1541
      %v1543 = vpop.f32.mrb[0].mxu0
      %v1544 = vpop.f32.mrb[0].mxu0
      %v1545 = vpop.f32.mrb[0].mxu0
      %1546 = vdwg.mxu0
      %v1547 = vmax.f32 %v1334, 0.0
      %v1548 = vmax.f32 %v1337, 0.0
      %v1549 = vmax.f32 %v1342, 0.0
      %v1550 = vmax.f32 %v1345, 0.0
      %v1551 = vmax.f32 %v1350, 0.0
      %v1552 = vmax.f32 %v1353, 0.0
      %v1553 = vmax.f32 %v1358, 0.0
      %v1554 = vmax.f32 %v1361, 0.0
      %v1555 = vmax.f32 %v1366, 0.0
      %v1556 = vmax.f32 %v1369, 0.0
      %v1557 = vmax.f32 %v1374, 0.0
      %v1558 = vmax.f32 %v1377, 0.0
      %v1559 = vmax.f32 %v1382, 0.0
      %v1560 = vmax.f32 %v1385, 0.0
      %v1561 = vmax.f32 %v1390, 0.0
      %v1562 = vmax.f32 %v1393, 0.0
      %v1563 = vmax.f32 %v1398, 0.0
      %v1564 = vmax.f32 %v1401, 0.0
      %v1565 = vmax.f32 %v1406, 0.0
      %v1566 = vmax.f32 %v1409, 0.0
      %v1567 = vmax.f32 %v1414, 0.0
      %v1568 = vmax.f32 %v1417, 0.0
      %v1569 = vmax.f32 %v1422, 0.0
      %v1570 = vmax.f32 %v1425, 0.0
      %v1571 = vmax.f32 %v1430, 0.0
      %v1572 = vmax.f32 %v1433, 0.0
      %v1573 = vmax.f32 %v1438, 0.0
      %v1574 = vmax.f32 %v1441, 0.0
      %v1575 = vmax.f32 %v1446, 0.0
      %v1576 = vmax.f32 %v1449, 0.0
      %v1577 = vmax.f32 %v1454, 0.0
      %v1578 = vmax.f32 %v1457, 0.0
      %v1579 = vmax.f32 %v1462, 0.0
      %v1580 = vmax.f32 %v1465, 0.0
      %v1581 = vmax.f32 %v1470, 0.0
      %v1582 = vmax.f32 %v1473, 0.0
      %v1583 = vmax.f32 %v1478, 0.0
      %v1584 = vmax.f32 %v1481, 0.0
      %v1585 = vmax.f32 %v1486, 0.0
      %v1586 = vmax.f32 %v1489, 0.0
      %v1587 = vmax.f32 %v1494, 0.0
      %v1588 = vmax.f32 %v1497, 0.0
      %v1589 = vmax.f32 %v1502, 0.0
      %v1590 = vmax.f32 %v1505, 0.0
      %v1591 = vmax.f32 %v1510, 0.0
      %v1592 = vmax.f32 %v1513, 0.0
      %v1593 = vmax.f32 %v1518, 0.0
      %v1594 = vmax.f32 %v1521, 0.0
      %v1595 = vmax.f32 %v1526, 0.0
      %v1596 = vmax.f32 %v1529, 0.0
      %v1597 = vmax.f32 %v1534, 0.0
      %v1598 = vmax.f32 %v1537, 0.0
      %v1599 = vmax.f32 %v1542, 0.0
      %vm1600 = vcmask 261120
      %1601 = vst.msk [vmem:[#allocation2] sm:$0xff] %vm1600, %v1547
      %1602 = vst.msk [vmem:[#allocation2 + $0x8] sm:$0xff] %vm1600, %v1548
      %1603 = vst.msk [vmem:[#allocation2 + $0x10] sm:$0xff] %vm1600, %v1549
      %1604 = vst.msk [vmem:[#allocation2 + $0x18] sm:$0xff] %vm1600, %v1550
      %1605 = vst.msk [vmem:[#allocation2 + $0x20] sm:$0xff] %vm1600, %v1551
      %1606 = vst.msk [vmem:[#allocation2 + $0x28] sm:$0xff] %vm1600, %v1552
      %1607 = vst.msk [vmem:[#allocation2 + $0x30] sm:$0xff] %vm1600, %v1553
      %1608 = vst.msk [vmem:[#allocation2 + $0x38] sm:$0xff] %vm1600, %v1554
      %1609 = vst.msk [vmem:[#allocation2 + $0x40] sm:$0xff] %vm1600, %v1555
      %1610 = vst.msk [vmem:[#allocation2 + $0x48] sm:$0xff] %vm1600, %v1556
      %1611 = vst.msk [vmem:[#allocation2 + $0x50] sm:$0xff] %vm1600, %v1557
      %1612 = vst.msk [vmem:[#allocation2 + $0x58] sm:$0xff] %vm1600, %v1558
      %1613 = vst.msk [vmem:[#allocation2 + $0x60] sm:$0xff] %vm1600, %v1559
      %1614 = vst.msk [vmem:[#allocation2 + $0x68] sm:$0xff] %vm1600, %v1560
      %1615 = vst.msk [vmem:[#allocation2 + $0x70] sm:$0xff] %vm1600, %v1561
      %1616 = vst.msk [vmem:[#allocation2 + $0x78] sm:$0xff] %vm1600, %v1562
      %1617 = vst.msk [vmem:[#allocation2 + $0x80] sm:$0xff] %vm1600, %v1563
      %1618 = vst.msk [vmem:[#allocation2 + $0x88] sm:$0xff] %vm1600, %v1564
      %1619 = vst.msk [vmem:[#allocation2 + $0x90] sm:$0xff] %vm1600, %v1565
      %1620 = vst.msk [vmem:[#allocation2 + $0x98] sm:$0xff] %vm1600, %v1566
      %1621 = vst.msk [vmem:[#allocation2 + $0xa0] sm:$0xff] %vm1600, %v1567
      %1622 = vst.msk [vmem:[#allocation2 + $0xa8] sm:$0xff] %vm1600, %v1568
      %1623 = vst.msk [vmem:[#allocation2 + $0xb0] sm:$0xff] %vm1600, %v1569
      %1624 = vst.msk [vmem:[#allocation2 + $0xb8] sm:$0xff] %vm1600, %v1570
      %1625 = vst.msk [vmem:[#allocation2 + $0xc0] sm:$0xff] %vm1600, %v1571
      %1626 = vst.msk [vmem:[#allocation2 + $0xc8] sm:$0xff] %vm1600, %v1572
      %1627 = vst.msk [vmem:[#allocation2 + $0xd0] sm:$0xff] %vm1600, %v1573
      %1628 = vst.msk [vmem:[#allocation2 + $0xd8] sm:$0xff] %vm1600, %v1574
      %1629 = vst.msk [vmem:[#allocation2 + $0xe0] sm:$0xff] %vm1600, %v1575
      %1630 = vst.msk [vmem:[#allocation2 + $0xe8] sm:$0xff] %vm1600, %v1576
      %1631 = vst.msk [vmem:[#allocation2 + $0xf0] sm:$0xff] %vm1600, %v1577
      %1632 = vst.msk [vmem:[#allocation2 + $0xf8] sm:$0xff] %vm1600, %v1578
      %1633 = vst.msk [vmem:[#allocation2 + $0x100] sm:$0xff] %vm1600, %v1579
      %1634 = vst.msk [vmem:[#allocation2 + $0x108] sm:$0xff] %vm1600, %v1580
      %1635 = vst.msk [vmem:[#allocation2 + $0x110] sm:$0xff] %vm1600, %v1581
      %1636 = vst.msk [vmem:[#allocation2 + $0x118] sm:$0xff] %vm1600, %v1582
      %1637 = vst.msk [vmem:[#allocation2 + $0x120] sm:$0xff] %vm1600, %v1583
      %1638 = vst.msk [vmem:[#allocation2 + $0x128] sm:$0xff] %vm1600, %v1584
      %1639 = vst.msk [vmem:[#allocation2 + $0x130] sm:$0xff] %vm1600, %v1585
      %1640 = vst.msk [vmem:[#allocation2 + $0x138] sm:$0xff] %vm1600, %v1586
      %1641 = vst.msk [vmem:[#allocation2 + $0x140] sm:$0xff] %vm1600, %v1587
      %1642 = vst.msk [vmem:[#allocation2 + $0x148] sm:$0xff] %vm1600, %v1588
      %1643 = vst.msk [vmem:[#allocation2 + $0x150] sm:$0xff] %vm1600, %v1589
      %1644 = vst.msk [vmem:[#allocation2 + $0x158] sm:$0xff] %vm1600, %v1590
      %1645 = vst.msk [vmem:[#allocation2 + $0x160] sm:$0xff] %vm1600, %v1591
      %1646 = vst.msk [vmem:[#allocation2 + $0x168] sm:$0xff] %vm1600, %v1592
      %1647 = vst.msk [vmem:[#allocation2 + $0x170] sm:$0xff] %vm1600, %v1593
      %1648 = vst.msk [vmem:[#allocation2 + $0x178] sm:$0xff] %vm1600, %v1594
      %1649 = vst.msk [vmem:[#allocation2 + $0x180] sm:$0xff] %vm1600, %v1595
      %1650 = vst.msk [vmem:[#allocation2 + $0x188] sm:$0xff] %vm1600, %v1596
      %1651 = vst.msk [vmem:[#allocation2 + $0x190] sm:$0xff] %vm1600, %v1597
      %1652 = vst.msk [vmem:[#allocation2 + $0x198] sm:$0xff] %vm1600, %v1598
      %vm1653 = vcmask 256000
      %1654 = vst.msk [vmem:[#allocation2 + $0x1a0] sm:$0x7] %vm1653, %v1599
      %v1655 = vld [vmem:[#allocation2] ss:$2 sm:$0xff]
      %s1656 = scalar_lea.vmem [#allocation2], 16
      %v1657 = vld [vmem:[%s1656] ss:$2 sm:$0x3]
      %s1658 = scalar_lea.vmem [#allocation2], 1
      %v1659 = vld [vmem:[%s1658] ss:$2 sm:$0xff]
      %s1660 = scalar_lea.vmem [#allocation2], 17
      %v1661 = vld [vmem:[%s1660] ss:$2 sm:$0x3]
      %s1662 = scalar_lea.vmem [#allocation2], 21
      %v1663 = vld [vmem:[%s1662] ss:$2 sm:$0xff]
      %s1664 = scalar_lea.vmem [#allocation2], 37
      %v1665 = vld [vmem:[%s1664] ss:$2 sm:$0x3]
      %s1666 = scalar_lea.vmem [#allocation2], 22
      %v1667 = vld [vmem:[%s1666] ss:$2 sm:$0xff]
      %s1668 = scalar_lea.vmem [#allocation2], 38
      %v1669 = vld [vmem:[%s1668] ss:$2 sm:$0x3]
      %1672 = vrot.lane.b32.xlu0 %v1659, 32
      %v1673 = vpop.permute.xlu0 %1672
      %1674 = vrot.lane.b32.xlu0 %v1661, 32
      %v1675 = vpop.permute.xlu0 %1674
      %1680 = vrot.lane.b32.xlu0 %v1663, 64
      %v1681 = vpop.permute.xlu0 %1680
      %1682 = vrot.lane.b32.xlu0 %v1665, 64
      %v1683 = vpop.permute.xlu0 %1682
      %1688 = vrot.lane.b32.xlu0 %v1667, 96
      %v1689 = vpop.permute.xlu0 %1688
      %1690 = vrot.lane.b32.xlu0 %v1669, 96
      %v1691 = vpop.permute.xlu0 %1690
      %v1694 = vsel %vm1600, %v1655, %v1673
      %v1695 = vsel %vm1600, %v1657, %v1675
      %v1696 = vsel %vm974, %v1694, %v1681
      %v1697 = vsel %vm974, %v1695, %v1683
      %vm1698 = vcmask 785408
      %v1699 = vsel %vm1698, %v1696, %v1689
      %v1700 = vsel %vm1698, %v1697, %v1691
      %v1701 = vpack.c.bf16 %v1700, %v1699
      %v1703 = vunpack.c.l.b16 %v1701
      %v1704 = vunpack.c.h.b16 %v1701
      %v1705 = vpack.c.b16 %v1703, %v1703
      %v1706 = vpack.c.b16 %v1704, %v1704
      %1709 = vst [vmem:[#allocation3] sm:$0xf] %v1705
      %1710 = vst [vmem:[#allocation3 + $0x4] sm:$0x1] %v1706
      %s1711 = scalar_lea.vmem [#allocation2], 42
      %v1712 = vld [vmem:[%s1711] ss:$2 sm:$0xff]
      %s1713 = scalar_lea.vmem [#allocation2], 58
      %v1714 = vld [vmem:[%s1713] ss:$2 sm:$0x3]
      %s1715 = scalar_lea.vmem [#allocation2], 43
      %v1716 = vld [vmem:[%s1715] ss:$2 sm:$0xff]
      %s1717 = scalar_lea.vmem [#allocation2], 59
      %v1718 = vld [vmem:[%s1717] ss:$2 sm:$0x3]
      %s1719 = scalar_lea.vmem [#allocation2], 63
      %v1720 = vld [vmem:[%s1719] ss:$2 sm:$0xff]
      %s1721 = scalar_lea.vmem [#allocation2], 79
      %v1722 = vld [vmem:[%s1721] ss:$2 sm:$0x3]
      %s1723 = scalar_lea.vmem [#allocation2], 64
      %v1724 = vld [vmem:[%s1723] ss:$2 sm:$0xff]
      %s1725 = scalar_lea.vmem [#allocation2], 80
      %v1726 = vld [vmem:[%s1725] ss:$2 sm:$0x3]
      %1729 = vrot.lane.b32.xlu0 %v1716, 32
      %v1730 = vpop.permute.xlu0 %1729
      %1731 = vrot.lane.b32.xlu0 %v1718, 32
      %v1732 = vpop.permute.xlu0 %1731
      %1737 = vrot.lane.b32.xlu0 %v1720, 64
      %v1738 = vpop.permute.xlu0 %1737
      %1739 = vrot.lane.b32.xlu0 %v1722, 64
      %v1740 = vpop.permute.xlu0 %1739
      %1745 = vrot.lane.b32.xlu0 %v1724, 96
      %v1746 = vpop.permute.xlu0 %1745
      %1747 = vrot.lane.b32.xlu0 %v1726, 96
      %v1748 = vpop.permute.xlu0 %1747
      %v1751 = vsel %vm1600, %v1712, %v1730
      %v1752 = vsel %vm1600, %v1714, %v1732
      %v1753 = vsel %vm974, %v1751, %v1738
      %v1754 = vsel %vm974, %v1752, %v1740
      %v1755 = vsel %vm1698, %v1753, %v1746
      %v1756 = vsel %vm1698, %v1754, %v1748
      %v1757 = vpack.c.bf16 %v1756, %v1755
      %v1759 = vunpack.c.l.b16 %v1757
      %v1760 = vunpack.c.h.b16 %v1757
      %v1761 = vpack.c.b16 %v1759, %v1759
      %v1762 = vpack.c.b16 %v1760, %v1760
      %vm1763 = vcmask 1040384
      %vm1764 = vcmask 1044484
      %vm1765 = vmor %vm1763, %vm1764
      %v1766 = vrot.slane %v1761, 7
      %v1767 = vrot.slane %v1766, 4
      %v1768 = vrot.slane %v1762, 7
      %v1769 = vsel %vm1765, %v1767, %v1768
      %1772 = vst [vmem:[#allocation3 + $0x4] sm:$0xe] %v1766
      %1773 = vst [vmem:[#allocation3 + $0x8] sm:$0x3] %v1769
      %s1774 = scalar_lea.vmem [#allocation2], 84
      %v1775 = vld [vmem:[%s1774] ss:$2 sm:$0xff]
      %s1776 = scalar_lea.vmem [#allocation2], 100
      %v1777 = vld [vmem:[%s1776] ss:$2 sm:$0x3]
      %s1778 = scalar_lea.vmem [#allocation2], 85
      %v1779 = vld [vmem:[%s1778] ss:$2 sm:$0xff]
      %s1780 = scalar_lea.vmem [#allocation2], 101
      %v1781 = vld [vmem:[%s1780] ss:$2 sm:$0x3]
      %s1782 = scalar_lea.vmem [#allocation2], 105
      %v1783 = vld [vmem:[%s1782] ss:$2 sm:$0xff]
      %s1784 = scalar_lea.vmem [#allocation2], 121
      %v1785 = vld [vmem:[%s1784] ss:$2 sm:$0x3]
      %s1786 = scalar_lea.vmem [#allocation2], 106
      %v1787 = vld [vmem:[%s1786] ss:$2 sm:$0xff]
      %s1788 = scalar_lea.vmem [#allocation2], 122
      %v1789 = vld [vmem:[%s1788] ss:$2 sm:$0x3]
      %1792 = vrot.lane.b32.xlu0 %v1779, 32
      %v1793 = vpop.permute.xlu0 %1792
      %1794 = vrot.lane.b32.xlu0 %v1781, 32
      %v1795 = vpop.permute.xlu0 %1794
      %1800 = vrot.lane.b32.xlu0 %v1783, 64
      %v1801 = vpop.permute.xlu0 %1800
      %1802 = vrot.lane.b32.xlu0 %v1785, 64
      %v1803 = vpop.permute.xlu0 %1802
      %1808 = vrot.lane.b32.xlu0 %v1787, 96
      %v1809 = vpop.permute.xlu0 %1808
      %1810 = vrot.lane.b32.xlu0 %v1789, 96
      %v1811 = vpop.permute.xlu0 %1810
      %v1814 = vsel %vm1600, %v1775, %v1793
      %v1815 = vsel %vm1600, %v1777, %v1795
      %v1816 = vsel %vm974, %v1814, %v1801
      %v1817 = vsel %vm974, %v1815, %v1803
      %v1818 = vsel %vm1698, %v1816, %v1809
      %v1819 = vsel %vm1698, %v1817, %v1811
      %v1820 = vpack.c.bf16 %v1819, %v1818
      %v1822 = vunpack.c.l.b16 %v1820
      %v1823 = vunpack.c.h.b16 %v1820
      %v1824 = vpack.c.b16 %v1822, %v1822
      %v1825 = vpack.c.b16 %v1823, %v1823
      %vm1826 = vcmask 1041408
      %vm1827 = vcmask 1045508
      %vm1828 = vmor %vm1826, %vm1827
      %v1829 = vrot.slane %v1824, 6
      %v1830 = vrot.slane %v1829, 4
      %v1831 = vrot.slane %v1825, 6
      %v1832 = vsel %vm1828, %v1830, %v1831
      %1835 = vst [vmem:[#allocation3 + $0x8] sm:$0xc] %v1829
      %1836 = vst [vmem:[#allocation3 + $0xc] sm:$0x7] %v1832
      %s1837 = scalar_lea.vmem [#allocation2], 126
      %v1838 = vld [vmem:[%s1837] ss:$2 sm:$0xff]
      %s1839 = scalar_lea.vmem [#allocation2], 142
      %v1840 = vld [vmem:[%s1839] ss:$2 sm:$0x3]
      %s1841 = scalar_lea.vmem [#allocation2], 127
      %v1842 = vld [vmem:[%s1841] ss:$2 sm:$0xff]
      %s1843 = scalar_lea.vmem [#allocation2], 143
      %v1844 = vld [vmem:[%s1843] ss:$2 sm:$0x3]
      %s1845 = scalar_lea.vmem [#allocation2], 147
      %v1846 = vld [vmem:[%s1845] ss:$2 sm:$0xff]
      %s1847 = scalar_lea.vmem [#allocation2], 163
      %v1848 = vld [vmem:[%s1847] ss:$2 sm:$0x3]
      %s1849 = scalar_lea.vmem [#allocation2], 148
      %v1850 = vld [vmem:[%s1849] ss:$2 sm:$0xff]
      %s1851 = scalar_lea.vmem [#allocation2], 164
      %v1852 = vld [vmem:[%s1851] ss:$2 sm:$0x3]
      %1855 = vrot.lane.b32.xlu0 %v1842, 32
      %v1856 = vpop.permute.xlu0 %1855
      %1857 = vrot.lane.b32.xlu0 %v1844, 32
      %v1858 = vpop.permute.xlu0 %1857
      %1863 = vrot.lane.b32.xlu0 %v1846, 64
      %v1864 = vpop.permute.xlu0 %1863
      %1865 = vrot.lane.b32.xlu0 %v1848, 64
      %v1866 = vpop.permute.xlu0 %1865
      %1871 = vrot.lane.b32.xlu0 %v1850, 96
      %v1872 = vpop.permute.xlu0 %1871
      %1873 = vrot.lane.b32.xlu0 %v1852, 96
      %v1874 = vpop.permute.xlu0 %1873
      %v1877 = vsel %vm1600, %v1838, %v1856
      %v1878 = vsel %vm1600, %v1840, %v1858
      %v1879 = vsel %vm974, %v1877, %v1864
      %v1880 = vsel %vm974, %v1878, %v1866
      %v1881 = vsel %vm1698, %v1879, %v1872
      %v1882 = vsel %vm1698, %v1880, %v1874
      %v1883 = vpack.c.bf16 %v1882, %v1881
      %v1885 = vunpack.c.l.b16 %v1883
      %v1886 = vunpack.c.h.b16 %v1883
      %v1887 = vpack.c.b16 %v1885, %v1885
      %v1888 = vpack.c.b16 %v1886, %v1886
      %vm1889 = vcmask 1042432
      %vm1890 = vcmask 1046532
      %vm1891 = vmor %vm1889, %vm1890
      %v1892 = vrot.slane %v1887, 5
      %v1893 = vrot.slane %v1892, 4
      %v1894 = vrot.slane %v1888, 5
      %v1895 = vsel %vm1891, %v1893, %v1894
      %1898 = vst [vmem:[#allocation3 + $0xc] sm:$0x8] %v1892
      %1899 = vst [vmem:[#allocation3 + $0x10] sm:$0xf] %v1895
      %s1900 = scalar_lea.vmem [#allocation2], 168
      %v1901 = vld [vmem:[%s1900] ss:$2 sm:$0xff]
      %s1902 = scalar_lea.vmem [#allocation2], 184
      %v1903 = vld [vmem:[%s1902] ss:$2 sm:$0x3]
      %s1904 = scalar_lea.vmem [#allocation2], 169
      %v1905 = vld [vmem:[%s1904] ss:$2 sm:$0xff]
      %s1906 = scalar_lea.vmem [#allocation2], 185
      %v1907 = vld [vmem:[%s1906] ss:$2 sm:$0x3]
      %s1908 = scalar_lea.vmem [#allocation2], 189
      %v1909 = vld [vmem:[%s1908] ss:$2 sm:$0xff]
      %s1910 = scalar_lea.vmem [#allocation2], 205
      %v1911 = vld [vmem:[%s1910] ss:$2 sm:$0x3]
      %s1912 = scalar_lea.vmem [#allocation2], 190
      %v1913 = vld [vmem:[%s1912] ss:$2 sm:$0xff]
      %s1914 = scalar_lea.vmem [#allocation2], 206
      %v1915 = vld [vmem:[%s1914] ss:$2 sm:$0x3]
      %1918 = vrot.lane.b32.xlu0 %v1905, 32
      %v1919 = vpop.permute.xlu0 %1918
      %1920 = vrot.lane.b32.xlu0 %v1907, 32
      %v1921 = vpop.permute.xlu0 %1920
      %1926 = vrot.lane.b32.xlu0 %v1909, 64
      %v1927 = vpop.permute.xlu0 %1926
      %1928 = vrot.lane.b32.xlu0 %v1911, 64
      %v1929 = vpop.permute.xlu0 %1928
      %1934 = vrot.lane.b32.xlu0 %v1913, 96
      %v1935 = vpop.permute.xlu0 %1934
      %1936 = vrot.lane.b32.xlu0 %v1915, 96
      %v1937 = vpop.permute.xlu0 %1936
      %v1940 = vsel %vm1600, %v1901, %v1919
      %v1941 = vsel %vm1600, %v1903, %v1921
      %v1942 = vsel %vm974, %v1940, %v1927
      %v1943 = vsel %vm974, %v1941, %v1929
      %v1944 = vsel %vm1698, %v1942, %v1935
      %v1945 = vsel %vm1698, %v1943, %v1937
      %v1946 = vpack.c.bf16 %v1945, %v1944
      %v1948 = vunpack.c.l.b16 %v1946
      %v1949 = vunpack.c.h.b16 %v1946
      %v1950 = vpack.c.b16 %v1948, %v1948
      %v1951 = vpack.c.b16 %v1949, %v1949
      %1954 = vst [vmem:[#allocation3 + $0x14] sm:$0xf] %v1950
      %1955 = vst [vmem:[#allocation3 + $0x18] sm:$0x1] %v1951
      %s1956 = scalar_lea.vmem [#allocation2], 210
      %v1957 = vld [vmem:[%s1956] ss:$2 sm:$0xff]
      %s1958 = scalar_lea.vmem [#allocation2], 226
      %v1959 = vld [vmem:[%s1958] ss:$2 sm:$0x3]
      %s1960 = scalar_lea.vmem [#allocation2], 211
      %v1961 = vld [vmem:[%s1960] ss:$2 sm:$0xff]
      %s1962 = scalar_lea.vmem [#allocation2], 227
      %v1963 = vld [vmem:[%s1962] ss:$2 sm:$0x3]
      %s1964 = scalar_lea.vmem [#allocation2], 231
      %v1965 = vld [vmem:[%s1964] ss:$2 sm:$0xff]
      %s1966 = scalar_lea.vmem [#allocation2], 247
      %v1967 = vld [vmem:[%s1966] ss:$2 sm:$0x3]
      %s1968 = scalar_lea.vmem [#allocation2], 232
      %v1969 = vld [vmem:[%s1968] ss:$2 sm:$0xff]
      %s1970 = scalar_lea.vmem [#allocation2], 248
      %v1971 = vld [vmem:[%s1970] ss:$2 sm:$0x3]
      %1974 = vrot.lane.b32.xlu0 %v1961, 32
      %v1975 = vpop.permute.xlu0 %1974
      %1976 = vrot.lane.b32.xlu0 %v1963, 32
      %v1977 = vpop.permute.xlu0 %1976
      %1982 = vrot.lane.b32.xlu0 %v1965, 64
      %v1983 = vpop.permute.xlu0 %1982
      %1984 = vrot.lane.b32.xlu0 %v1967, 64
      %v1985 = vpop.permute.xlu0 %1984
      %1990 = vrot.lane.b32.xlu0 %v1969, 96
      %v1991 = vpop.permute.xlu0 %1990
      %1992 = vrot.lane.b32.xlu0 %v1971, 96
      %v1993 = vpop.permute.xlu0 %1992
      %v1996 = vsel %vm1600, %v1957, %v1975
      %v1997 = vsel %vm1600, %v1959, %v1977
      %v1998 = vsel %vm974, %v1996, %v1983
      %v1999 = vsel %vm974, %v1997, %v1985
      %v2000 = vsel %vm1698, %v1998, %v1991
      %v2001 = vsel %vm1698, %v1999, %v1993
      %v2002 = vpack.c.bf16 %v2001, %v2000
      %v2004 = vunpack.c.l.b16 %v2002
      %v2005 = vunpack.c.h.b16 %v2002
      %v2006 = vpack.c.b16 %v2004, %v2004
      %v2007 = vpack.c.b16 %v2005, %v2005
      %v2008 = vrot.slane %v2006, 7
      %v2009 = vrot.slane %v2008, 4
      %v2010 = vrot.slane %v2007, 7
      %v2011 = vsel %vm1765, %v2009, %v2010
      %2014 = vst [vmem:[#allocation3 + $0x18] sm:$0xe] %v2008
      %2015 = vst [vmem:[#allocation3 + $0x1c] sm:$0x3] %v2011
      %s2016 = scalar_lea.vmem [#allocation2], 252
      %v2017 = vld [vmem:[%s2016] ss:$2 sm:$0xff]
      %s2018 = scalar_lea.vmem [#allocation2], 268
      %v2019 = vld [vmem:[%s2018] ss:$2 sm:$0x3]
      %s2020 = scalar_lea.vmem [#allocation2], 253
      %v2021 = vld [vmem:[%s2020] ss:$2 sm:$0xff]
      %s2022 = scalar_lea.vmem [#allocation2], 269
      %v2023 = vld [vmem:[%s2022] ss:$2 sm:$0x3]
      %s2024 = scalar_lea.vmem [#allocation2], 273
      %v2025 = vld [vmem:[%s2024] ss:$2 sm:$0xff]
      %s2026 = scalar_lea.vmem [#allocation2], 289
      %v2027 = vld [vmem:[%s2026] ss:$2 sm:$0x3]
      %s2028 = scalar_lea.vmem [#allocation2], 274
      %v2029 = vld [vmem:[%s2028] ss:$2 sm:$0xff]
      %s2030 = scalar_lea.vmem [#allocation2], 290
      %v2031 = vld [vmem:[%s2030] ss:$2 sm:$0x3]
      %2034 = vrot.lane.b32.xlu0 %v2021, 32
      %v2035 = vpop.permute.xlu0 %2034
      %2036 = vrot.lane.b32.xlu0 %v2023, 32
      %v2037 = vpop.permute.xlu0 %2036
      %2042 = vrot.lane.b32.xlu0 %v2025, 64
      %v2043 = vpop.permute.xlu0 %2042
      %2044 = vrot.lane.b32.xlu0 %v2027, 64
      %v2045 = vpop.permute.xlu0 %2044
      %2050 = vrot.lane.b32.xlu0 %v2029, 96
      %v2051 = vpop.permute.xlu0 %2050
      %2052 = vrot.lane.b32.xlu0 %v2031, 96
      %v2053 = vpop.permute.xlu0 %2052
      %v2056 = vsel %vm1600, %v2017, %v2035
      %v2057 = vsel %vm1600, %v2019, %v2037
      %v2058 = vsel %vm974, %v2056, %v2043
      %v2059 = vsel %vm974, %v2057, %v2045
      %v2060 = vsel %vm1698, %v2058, %v2051
      %v2061 = vsel %vm1698, %v2059, %v2053
      %v2062 = vpack.c.bf16 %v2061, %v2060
      %v2064 = vunpack.c.l.b16 %v2062
      %v2065 = vunpack.c.h.b16 %v2062
      %v2066 = vpack.c.b16 %v2064, %v2064
      %v2067 = vpack.c.b16 %v2065, %v2065
      %v2068 = vrot.slane %v2066, 6
      %v2069 = vrot.slane %v2068, 4
      %v2070 = vrot.slane %v2067, 6
      %v2071 = vsel %vm1828, %v2069, %v2070
      %2074 = vst [vmem:[#allocation3 + $0x1c] sm:$0xc] %v2068
      %2075 = vst [vmem:[#allocation3 + $0x20] sm:$0x7] %v2071
      %s2076 = scalar_lea.vmem [#allocation2], 294
      %v2077 = vld [vmem:[%s2076] ss:$2 sm:$0xff]
      %s2078 = scalar_lea.vmem [#allocation2], 310
      %v2079 = vld [vmem:[%s2078] ss:$2 sm:$0x3]
      %s2080 = scalar_lea.vmem [#allocation2], 295
      %v2081 = vld [vmem:[%s2080] ss:$2 sm:$0xff]
      %s2082 = scalar_lea.vmem [#allocation2], 311
      %v2083 = vld [vmem:[%s2082] ss:$2 sm:$0x3]
      %s2084 = scalar_lea.vmem [#allocation2], 315
      %v2085 = vld [vmem:[%s2084] ss:$2 sm:$0xff]
      %s2086 = scalar_lea.vmem [#allocation2], 331
      %v2087 = vld [vmem:[%s2086] ss:$2 sm:$0x3]
      %s2088 = scalar_lea.vmem [#allocation2], 316
      %v2089 = vld [vmem:[%s2088] ss:$2 sm:$0xff]
      %s2090 = scalar_lea.vmem [#allocation2], 332
      %v2091 = vld [vmem:[%s2090] ss:$2 sm:$0x3]
      %2094 = vrot.lane.b32.xlu0 %v2081, 32
      %v2095 = vpop.permute.xlu0 %2094
      %2096 = vrot.lane.b32.xlu0 %v2083, 32
      %v2097 = vpop.permute.xlu0 %2096
      %2102 = vrot.lane.b32.xlu0 %v2085, 64
      %v2103 = vpop.permute.xlu0 %2102
      %2104 = vrot.lane.b32.xlu0 %v2087, 64
      %v2105 = vpop.permute.xlu0 %2104
      %2110 = vrot.lane.b32.xlu0 %v2089, 96
      %v2111 = vpop.permute.xlu0 %2110
      %2112 = vrot.lane.b32.xlu0 %v2091, 96
      %v2113 = vpop.permute.xlu0 %2112
      %v2116 = vsel %vm1600, %v2077, %v2095
      %v2117 = vsel %vm1600, %v2079, %v2097
      %v2118 = vsel %vm974, %v2116, %v2103
      %v2119 = vsel %vm974, %v2117, %v2105
      %v2120 = vsel %vm1698, %v2118, %v2111
      %v2121 = vsel %vm1698, %v2119, %v2113
      %v2122 = vpack.c.bf16 %v2121, %v2120
      %v2124 = vunpack.c.l.b16 %v2122
      %v2125 = vunpack.c.h.b16 %v2122
      %v2126 = vpack.c.b16 %v2124, %v2124
      %v2127 = vpack.c.b16 %v2125, %v2125
      %v2128 = vrot.slane %v2126, 5
      %v2129 = vrot.slane %v2128, 4
      %v2130 = vrot.slane %v2127, 5
      %v2131 = vsel %vm1891, %v2129, %v2130
      %2134 = vst [vmem:[#allocation3 + $0x20] sm:$0x8] %v2128
      %2135 = vst [vmem:[#allocation3 + $0x24] sm:$0xf] %v2131
      %s2136 = scalar_lea.vmem [#allocation2], 336
      %v2137 = vld [vmem:[%s2136] ss:$2 sm:$0xff]
      %s2138 = scalar_lea.vmem [#allocation2], 352
      %v2139 = vld [vmem:[%s2138] ss:$2 sm:$0x3]
      %s2140 = scalar_lea.vmem [#allocation2], 337
      %v2141 = vld [vmem:[%s2140] ss:$2 sm:$0xff]
      %s2142 = scalar_lea.vmem [#allocation2], 353
      %v2143 = vld [vmem:[%s2142] ss:$2 sm:$0x3]
      %s2144 = scalar_lea.vmem [#allocation2], 357
      %v2145 = vld [vmem:[%s2144] ss:$2 sm:$0xff]
      %s2146 = scalar_lea.vmem [#allocation2], 373
      %v2147 = vld [vmem:[%s2146] ss:$2 sm:$0x3]
      %s2148 = scalar_lea.vmem [#allocation2], 358
      %v2149 = vld [vmem:[%s2148] ss:$2 sm:$0xff]
      %s2150 = scalar_lea.vmem [#allocation2], 374
      %v2151 = vld [vmem:[%s2150] ss:$2 sm:$0x3]
      %2154 = vrot.lane.b32.xlu0 %v2141, 32
      %v2155 = vpop.permute.xlu0 %2154
      %2156 = vrot.lane.b32.xlu0 %v2143, 32
      %v2157 = vpop.permute.xlu0 %2156
      %2162 = vrot.lane.b32.xlu0 %v2145, 64
      %v2163 = vpop.permute.xlu0 %2162
      %2164 = vrot.lane.b32.xlu0 %v2147, 64
      %v2165 = vpop.permute.xlu0 %2164
      %2170 = vrot.lane.b32.xlu0 %v2149, 96
      %v2171 = vpop.permute.xlu0 %2170
      %2172 = vrot.lane.b32.xlu0 %v2151, 96
      %v2173 = vpop.permute.xlu0 %2172
      %v2176 = vsel %vm1600, %v2137, %v2155
      %v2177 = vsel %vm1600, %v2139, %v2157
      %v2178 = vsel %vm974, %v2176, %v2163
      %v2179 = vsel %vm974, %v2177, %v2165
      %v2180 = vsel %vm1698, %v2178, %v2171
      %v2181 = vsel %vm1698, %v2179, %v2173
      %v2182 = vpack.c.bf16 %v2181, %v2180
      %v2184 = vunpack.c.l.b16 %v2182
      %v2185 = vunpack.c.h.b16 %v2182
      %v2186 = vpack.c.b16 %v2184, %v2184
      %v2187 = vpack.c.b16 %v2185, %v2185
      %2190 = vst [vmem:[#allocation3 + $0x28] sm:$0xf] %v2186
      %2191 = vst [vmem:[#allocation3 + $0x2c] sm:$0x1] %v2187
      %s2192 = scalar_lea.vmem [#allocation2], 378
      %v2193 = vld [vmem:[%s2192] ss:$2 sm:$0xff]
      %s2194 = scalar_lea.vmem [#allocation2], 394
      %v2195 = vld [vmem:[%s2194] ss:$2 sm:$0x3]
      %s2196 = scalar_lea.vmem [#allocation2], 379
      %v2197 = vld [vmem:[%s2196] ss:$2 sm:$0xff]
      %s2198 = scalar_lea.vmem [#allocation2], 395
      %v2199 = vld [vmem:[%s2198] ss:$2 sm:$0x3]
      %s2200 = scalar_lea.vmem [#allocation2], 399
      %v2201 = vld [vmem:[%s2200] ss:$2 sm:$0xff]
      %s2202 = scalar_lea.vmem [#allocation2], 415
      %v2203 = vld [vmem:[%s2202] ss:$2 sm:$0x3]
      %s2204 = scalar_lea.vmem [#allocation2], 400
      %v2205 = vld [vmem:[%s2204] ss:$2 sm:$0xff]
      %s2206 = scalar_lea.vmem [#allocation2], 416
      %v2207 = vld [vmem:[%s2206] ss:$2 sm:$0x3]
      %2210 = vrot.lane.b32.xlu0 %v2197, 32
      %v2211 = vpop.permute.xlu0 %2210
      %2212 = vrot.lane.b32.xlu0 %v2199, 32
      %v2213 = vpop.permute.xlu0 %2212
      %2218 = vrot.lane.b32.xlu0 %v2201, 64
      %v2219 = vpop.permute.xlu0 %2218
      %2220 = vrot.lane.b32.xlu0 %v2203, 64
      %v2221 = vpop.permute.xlu0 %2220
      %2226 = vrot.lane.b32.xlu0 %v2205, 96
      %v2227 = vpop.permute.xlu0 %2226
      %2228 = vrot.lane.b32.xlu0 %v2207, 96
      %v2229 = vpop.permute.xlu0 %2228
      %v2232 = vsel %vm1600, %v2193, %v2211
      %v2233 = vsel %vm1600, %v2195, %v2213
      %v2234 = vsel %vm974, %v2232, %v2219
      %v2235 = vsel %vm974, %v2233, %v2221
      %v2236 = vsel %vm1698, %v2234, %v2227
      %v2237 = vsel %vm1698, %v2235, %v2229
      %v2238 = vpack.c.bf16 %v2237, %v2236
      %v2240 = vunpack.c.l.b16 %v2238
      %v2241 = vunpack.c.h.b16 %v2238
      %v2242 = vpack.c.b16 %v2240, %v2240
      %v2243 = vpack.c.b16 %v2241, %v2241
      %v2244 = vrot.slane %v2242, 7
      %v2245 = vrot.slane %v2244, 4
      %v2246 = vrot.slane %v2243, 7
      %v2247 = vsel %vm1765, %v2245, %v2246
      %2250 = vst [vmem:[#allocation3 + $0x2c] sm:$0xe] %v2244
      %2251 = vst [vmem:[#allocation3 + $0x30] sm:$0x3] %v2247
      %v2252 = vld [vmem:[#allocation3] sm:$0xf]
      %v2253 = vld [vmem:[#allocation3 + $0x4] sm:$0xf]
      %v2254 = vld [vmem:[#allocation3 + $0x8] sm:$0xf]
      %v2255 = vld [vmem:[#allocation3 + $0xc] sm:$0xf]
      %v2256 = vld [vmem:[#allocation3 + $0x10] sm:$0xf]
      %v2257 = vld [vmem:[#allocation3 + $0x14] sm:$0xf]
      %v2258 = vld [vmem:[#allocation3 + $0x18] sm:$0xf]
      %v2259 = vld [vmem:[#allocation3 + $0x1c] sm:$0xf]
      %v2260 = vld [vmem:[#allocation3 + $0x20] sm:$0xf]
      %v2261 = vld [vmem:[#allocation3 + $0x24] sm:$0xf]
      %v2262 = vld [vmem:[#allocation3 + $0x28] sm:$0xf]
      %v2263 = vld [vmem:[#allocation3 + $0x2c] sm:$0xf]
      %v2264 = vld [vmem:[#allocation3 + $0x30] sm:$0x3]
      %v2277 = vunpack.c.l.b16 %v2252
      %v2278 = vunpack.c.l.b16 %v2253
      %v2279 = vunpack.c.l.b16 %v2254
      %v2280 = vunpack.c.l.b16 %v2255
      %v2281 = vunpack.c.l.b16 %v2256
      %v2282 = vunpack.c.l.b16 %v2257
      %v2283 = vunpack.c.l.b16 %v2258
      %v2284 = vunpack.c.l.b16 %v2259
      %v2285 = vunpack.c.l.b16 %v2260
      %v2286 = vunpack.c.l.b16 %v2261
      %v2287 = vunpack.c.l.b16 %v2262
      %v2288 = vunpack.c.l.b16 %v2263
      %v2289 = vpack.c.b16 %v2278, %v2277
      %v2290 = vpack.c.b16 %v2280, %v2279
      %v2291 = vpack.c.b16 %v2282, %v2281
      %v2292 = vpack.c.b16 %v2284, %v2283
      %v2293 = vpack.c.b16 %v2286, %v2285
      %v2294 = vpack.c.b16 %v2288, %v2287
      %v2302 = vshrl.u32 %v2289, 16
      %v2304 = vshll.u32 %v2289, 16
      %v2306 = vrot.slane %v2304, 1
      %v2307 = vor.u32 %v2302, %v2306
      %v2309 = vshll.u32 %v2290, 16
      %v2311 = vrot.slane %v2309, 1
      %v2312 = vsel %vm469, %v2307, %v2311
      %v2313 = vshrl.u32 %v2290, 16
      %v2315 = vor.u32 %v2313, %v2311
      %v2317 = vshll.u32 %v2291, 16
      %v2319 = vrot.slane %v2317, 1
      %v2320 = vsel %vm469, %v2315, %v2319
      %v2321 = vshrl.u32 %v2291, 16
      %v2323 = vor.u32 %v2321, %v2319
      %v2325 = vshll.u32 %v2292, 16
      %v2327 = vrot.slane %v2325, 1
      %v2328 = vsel %vm469, %v2323, %v2327
      %v2329 = vshrl.u32 %v2292, 16
      %v2331 = vor.u32 %v2329, %v2327
      %v2333 = vshll.u32 %v2293, 16
      %v2335 = vrot.slane %v2333, 1
      %v2336 = vsel %vm469, %v2331, %v2335
      %v2337 = vshrl.u32 %v2293, 16
      %v2339 = vor.u32 %v2337, %v2335
      %v2341 = vshll.u32 %v2294, 16
      %v2343 = vrot.slane %v2341, 1
      %v2344 = vsel %vm469, %v2339, %v2343
      %v2345 = vshrl.u32 %v2294, 16
      %v2347 = vor.u32 %v2345, %v2343
      %v2355 = vunpack.c.l.b16 %v2264
      %v2356 = vpack.c.b16 %v2279, %v2278
      %v2357 = vpack.c.b16 %v2281, %v2280
      %v2358 = vpack.c.b16 %v2283, %v2282
      %v2359 = vpack.c.b16 %v2285, %v2284
      %v2360 = vpack.c.b16 %v2287, %v2286
      %v2361 = vpack.c.b16 %v2355, %v2288
      %vm2362 = vcmask 1046528
      %v2363 = vrot.slane %v2356, 1
      %v2364 = vrot.slane %v2357, 1
      %v2365 = vsel %vm2362, %v2363, %v2364
      %v2366 = vrot.slane %v2358, 1
      %v2367 = vsel %vm2362, %v2364, %v2366
      %v2368 = vrot.slane %v2359, 1
      %v2369 = vsel %vm2362, %v2366, %v2368
      %v2370 = vrot.slane %v2360, 1
      %v2371 = vsel %vm2362, %v2368, %v2370
      %v2372 = vrot.slane %v2361, 1
      %v2373 = vsel %vm2362, %v2370, %v2372
      %vm2380 = vsmask.f32 6400
      %v2382 = vshrl.u32 %v2356, 16
      %v2384 = vrot.slane %v2382, 1
      %v2385 = vshll.u32 %v2356, 16
      %v2387 = vrot.slane %v2385, 2
      %v2388 = vor.u32 %v2384, %v2387
      %v2390 = vshrl.u32 %v2357, 16
      %v2392 = vrot.slane %v2390, 1
      %v2393 = vshll.u32 %v2357, 16
      %v2395 = vrot.slane %v2393, 2
      %v2396 = vor.u32 %v2392, %v2395
      %v2397 = vsel %vm2380, %v2388, %v2396
      %v2399 = vshrl.u32 %v2358, 16
      %v2401 = vrot.slane %v2399, 1
      %v2402 = vshll.u32 %v2358, 16
      %v2404 = vrot.slane %v2402, 2
      %v2405 = vor.u32 %v2401, %v2404
      %v2406 = vsel %vm2380, %v2396, %v2405
      %v2408 = vshrl.u32 %v2359, 16
      %v2410 = vrot.slane %v2408, 1
      %v2411 = vshll.u32 %v2359, 16
      %v2413 = vrot.slane %v2411, 2
      %v2414 = vor.u32 %v2410, %v2413
      %v2415 = vsel %vm2380, %v2405, %v2414
      %v2417 = vshrl.u32 %v2360, 16
      %v2419 = vrot.slane %v2417, 1
      %v2420 = vshll.u32 %v2360, 16
      %v2422 = vrot.slane %v2420, 2
      %v2423 = vor.u32 %v2419, %v2422
      %v2424 = vsel %vm2380, %v2414, %v2423
      %v2426 = vshrl.u32 %v2361, 16
      %v2428 = vrot.slane %v2426, 1
      %v2429 = vshll.u32 %v2361, 16
      %v2431 = vrot.slane %v2429, 2
      %v2432 = vor.u32 %v2428, %v2431
      %v2433 = vsel %vm2380, %v2423, %v2432
      %v2440 = vld [vmem:[%s3] sm:$0xf]
      %v2441 = vld [vmem:[%s3 + $0x4] sm:$0xf]
      %v2442 = vld [vmem:[%s3 + $0x8] sm:$0xf]
      %v2443 = vld [vmem:[%s3 + $0xc] sm:$0xf]
      %v2444 = vld [vmem:[%s3 + $0x10] sm:$0xf]
      %v2445 = vld [vmem:[%s3 + $0x14] sm:$0xf]
      %v2446 = vld [vmem:[%s3 + $0x18] sm:$0xf]
      %v2447 = vld [vmem:[%s3 + $0x1c] sm:$0xf]
      %v2448 = vld [vmem:[%s3 + $0x20] sm:$0xf]
      %v2449 = vld [vmem:[%s3 + $0x24] sm:$0xf]
      %v2450 = vld [vmem:[%s3 + $0x28] sm:$0xf]
      %v2451 = vld [vmem:[%s3 + $0x2c] sm:$0xf]
      %v2452 = vld [vmem:[%s3 + $0x30] sm:$0xf]
      %v2453 = vld [vmem:[%s3 + $0x34] sm:$0xf]
      %v2454 = vld [vmem:[%s3 + $0x38] sm:$0xf]
      %v2455 = vld [vmem:[%s3 + $0x3c] sm:$0xf]
      %v2456 = vld [vmem:[%s3 + $0x40] sm:$0xf]
      %v2457 = vld [vmem:[%s3 + $0x44] sm:$0xf]
      %v2458 = vld [vmem:[%s3 + $0x48] sm:$0xf]
      %v2459 = vld [vmem:[%s3 + $0x4c] sm:$0xf]
      %v2460 = vld [vmem:[%s3 + $0x50] sm:$0xf]
      %v2461 = vld [vmem:[%s3 + $0x54] sm:$0xf]
      %v2462 = vld [vmem:[%s3 + $0x58] sm:$0xf]
      %v2463 = vld [vmem:[%s3 + $0x5c] sm:$0xf]
      %v2464 = vld [vmem:[%s3 + $0x60] sm:$0xf]
      %v2465 = vld [vmem:[%s3 + $0x64] sm:$0xf]
      %v2466 = vld [vmem:[%s3 + $0x68] sm:$0xf]
      %v2467 = vld [vmem:[%s3 + $0x6c] sm:$0xf]
      %v2468 = vld [vmem:[%s3 + $0x70] sm:$0xf]
      %v2469 = vld [vmem:[%s3 + $0x74] sm:$0xf]
      %v2470 = vld [vmem:[%s3 + $0x78] sm:$0xf]
      %v2471 = vld [vmem:[%s3 + $0x7c] sm:$0xf]
      %v2472 = vld [vmem:[%s3 + $0x80] sm:$0xf]
      %v2473 = vld [vmem:[%s3 + $0x84] sm:$0xf]
      %v2474 = vld [vmem:[%s3 + $0x88] sm:$0xf]
      %v2475 = vld [vmem:[%s3 + $0x8c] sm:$0xf]
      %v2476 = vld [vmem:[%s3 + $0x90] sm:$0xf]
      %v2477 = vld [vmem:[%s3 + $0x94] sm:$0xf]
      %v2478 = vld [vmem:[%s3 + $0x98] sm:$0xf]
      %v2479 = vld [vmem:[%s3 + $0x9c] sm:$0xf]
      %v2480 = vld [vmem:[%s3 + $0xa0] sm:$0xf]
      %v2481 = vld [vmem:[%s3 + $0xa4] sm:$0xf]
      %v2482 = vld [vmem:[%s3 + $0xa8] sm:$0xf]
      %v2483 = vld [vmem:[%s3 + $0xac] sm:$0xf]
      %v2484 = vld [vmem:[%s3 + $0xb0] sm:$0xf]
      %v2485 = vld [vmem:[%s3 + $0xb4] sm:$0xf]
      %v2486 = vld [vmem:[%s3 + $0xb8] sm:$0xf]
      %v2487 = vld [vmem:[%s3 + $0xbc] sm:$0xf]
      %v2488 = vld [vmem:[%s3 + $0xc0] sm:$0xf]
      %v2489 = vld [vmem:[%s3 + $0xc4] sm:$0xf]
      %v2490 = vld [vmem:[%s3 + $0xc8] sm:$0xf]
      %v2491 = vld [vmem:[%s3 + $0xcc] sm:$0xf]
      %v2492 = vld [vmem:[%s3 + $0xd0] sm:$0xf]
      %v2493 = vld [vmem:[%s3 + $0xd4] sm:$0xf]
      %v2494 = vld [vmem:[%s3 + $0xd8] sm:$0xf]
      %v2495 = vld [vmem:[%s3 + $0xdc] sm:$0xf]
      %v2496 = vld [vmem:[%s3 + $0xe0] sm:$0xf]
      %v2497 = vld [vmem:[%s3 + $0xe4] sm:$0xf]
      %v2498 = vld [vmem:[%s3 + $0xe8] sm:$0xf]
      %v2499 = vld [vmem:[%s3 + $0xec] sm:$0xf]
      %v2500 = vld [vmem:[%s3 + $0xf0] sm:$0xf]
      %v2501 = vld [vmem:[%s3 + $0xf4] sm:$0xf]
      %v2502 = vld [vmem:[%s3 + $0xf8] sm:$0xf]
      %v2503 = vld [vmem:[%s3 + $0xfc] sm:$0xf]
      %v2504 = vld [vmem:[%s4] sm:$0x1]
      %v2506 = vlaneseq
      %v2507 = vshrl.u32 %v2506, 7
      %v2508 = vsub.s32 0, %v2507
      %v2509 = vrot.slane %v2504, %v2508
      %v2575 = vunpack.c.l.b16 %v2440
      %v2576 = vunpack.c.l.b16 %v2441
      %v2577 = vunpack.c.l.b16 %v2442
      %v2578 = vunpack.c.l.b16 %v2443
      %v2579 = vunpack.c.l.b16 %v2444
      %v2580 = vunpack.c.l.b16 %v2445
      %v2581 = vunpack.c.l.b16 %v2446
      %v2582 = vunpack.c.l.b16 %v2447
      %v2583 = vunpack.c.l.b16 %v2448
      %v2584 = vunpack.c.l.b16 %v2449
      %v2585 = vunpack.c.l.b16 %v2450
      %v2586 = vunpack.c.l.b16 %v2451
      %v2587 = vunpack.c.l.b16 %v2452
      %v2588 = vunpack.c.l.b16 %v2453
      %v2589 = vunpack.c.l.b16 %v2454
      %v2590 = vunpack.c.l.b16 %v2455
      %v2591 = vunpack.c.l.b16 %v2456
      %v2592 = vunpack.c.l.b16 %v2457
      %v2593 = vunpack.c.l.b16 %v2458
      %v2594 = vunpack.c.l.b16 %v2459
      %v2595 = vunpack.c.l.b16 %v2460
      %v2596 = vunpack.c.l.b16 %v2461
      %v2597 = vunpack.c.l.b16 %v2462
      %v2598 = vunpack.c.l.b16 %v2463
      %v2599 = vunpack.c.l.b16 %v2464
      %v2600 = vunpack.c.l.b16 %v2465
      %v2601 = vunpack.c.l.b16 %v2466
      %v2602 = vunpack.c.l.b16 %v2467
      %v2603 = vunpack.c.l.b16 %v2468
      %v2604 = vunpack.c.l.b16 %v2469
      %v2605 = vunpack.c.l.b16 %v2470
      %v2606 = vunpack.c.l.b16 %v2471
      %v2607 = vunpack.c.l.b16 %v2472
      %v2608 = vunpack.c.l.b16 %v2473
      %v2609 = vunpack.c.l.b16 %v2474
      %v2610 = vunpack.c.l.b16 %v2475
      %v2611 = vunpack.c.l.b16 %v2476
      %v2612 = vunpack.c.l.b16 %v2477
      %v2613 = vunpack.c.l.b16 %v2478
      %v2614 = vunpack.c.l.b16 %v2479
      %v2615 = vunpack.c.l.b16 %v2480
      %v2616 = vunpack.c.l.b16 %v2481
      %v2617 = vunpack.c.l.b16 %v2482
      %v2618 = vunpack.c.l.b16 %v2483
      %v2619 = vunpack.c.l.b16 %v2484
      %v2620 = vunpack.c.l.b16 %v2485
      %v2621 = vunpack.c.l.b16 %v2486
      %v2622 = vunpack.c.l.b16 %v2487
      %v2623 = vunpack.c.l.b16 %v2488
      %v2624 = vunpack.c.l.b16 %v2489
      %v2625 = vunpack.c.l.b16 %v2490
      %v2626 = vunpack.c.l.b16 %v2491
      %v2627 = vunpack.c.l.b16 %v2492
      %v2628 = vunpack.c.l.b16 %v2493
      %v2629 = vunpack.c.l.b16 %v2494
      %v2630 = vunpack.c.l.b16 %v2495
      %v2631 = vunpack.c.l.b16 %v2496
      %v2632 = vunpack.c.l.b16 %v2497
      %v2633 = vunpack.c.l.b16 %v2498
      %v2634 = vunpack.c.l.b16 %v2499
      %v2635 = vunpack.c.l.b16 %v2500
      %v2636 = vunpack.c.l.b16 %v2501
      %v2637 = vunpack.c.l.b16 %v2502
      %v2638 = vunpack.c.l.b16 %v2503
      %v2639 = vpack.c.b16 %v2576, %v2575
      %v2640 = vpack.c.b16 %v2578, %v2577
      %v2641 = vpack.c.b16 %v2580, %v2579
      %v2642 = vpack.c.b16 %v2582, %v2581
      %v2643 = vpack.c.b16 %v2584, %v2583
      %v2644 = vpack.c.b16 %v2586, %v2585
      %v2645 = vpack.c.b16 %v2588, %v2587
      %v2646 = vpack.c.b16 %v2590, %v2589
      %v2647 = vpack.c.b16 %v2592, %v2591
      %v2648 = vpack.c.b16 %v2594, %v2593
      %v2649 = vpack.c.b16 %v2596, %v2595
      %v2650 = vpack.c.b16 %v2598, %v2597
      %v2651 = vpack.c.b16 %v2600, %v2599
      %v2652 = vpack.c.b16 %v2602, %v2601
      %v2653 = vpack.c.b16 %v2604, %v2603
      %v2654 = vpack.c.b16 %v2606, %v2605
      %v2655 = vpack.c.b16 %v2608, %v2607
      %v2656 = vpack.c.b16 %v2610, %v2609
      %v2657 = vpack.c.b16 %v2612, %v2611
      %v2658 = vpack.c.b16 %v2614, %v2613
      %v2659 = vpack.c.b16 %v2616, %v2615
      %v2660 = vpack.c.b16 %v2618, %v2617
      %v2661 = vpack.c.b16 %v2620, %v2619
      %v2662 = vpack.c.b16 %v2622, %v2621
      %v2663 = vpack.c.b16 %v2624, %v2623
      %v2664 = vpack.c.b16 %v2626, %v2625
      %v2665 = vpack.c.b16 %v2628, %v2627
      %v2666 = vpack.c.b16 %v2630, %v2629
      %v2667 = vpack.c.b16 %v2632, %v2631
      %v2668 = vpack.c.b16 %v2634, %v2633
      %v2669 = vpack.c.b16 %v2636, %v2635
      %v2670 = vpack.c.b16 %v2638, %v2637
      %2703 = vmatprep.subr.bf16.mxu0 0
      %2704 = vmatpush1.bf16.msra.mxu0 %v2639
      %2705 = vmatprep.subr.bf16.mxu0 0
      %2706 = vmatpush1.bf16.msra.mxu0 %v2640
      %2707 = vmatprep.subr.bf16.mxu0 0
      %2708 = vmatpush1.bf16.msra.mxu0 %v2641
      %2709 = vmatprep.subr.bf16.mxu0 0
      %2710 = vmatpush1.bf16.msra.mxu0 %v2642
      %2711 = vmatprep.subr.bf16.mxu0 0
      %2712 = vmatpush1.bf16.msra.mxu0 %v2643
      %2713 = vmatprep.subr.bf16.mxu0 0
      %2714 = vmatpush1.bf16.msra.mxu0 %v2644
      %2715 = vmatprep.subr.bf16.mxu0 0
      %2716 = vmatpush1.bf16.msra.mxu0 %v2645
      %2717 = vmatprep.subr.bf16.mxu0 0
      %2718 = vmatpush1.bf16.msra.mxu0 %v2646
      %2719 = vmatprep.subr.bf16.mxu0 0
      %2720 = vmatpush1.bf16.msra.mxu0 %v2647
      %2721 = vmatprep.subr.bf16.mxu0 0
      %2722 = vmatpush1.bf16.msra.mxu0 %v2648
      %2723 = vmatprep.subr.bf16.mxu0 0
      %2724 = vmatpush1.bf16.msra.mxu0 %v2649
      %2725 = vmatprep.subr.bf16.mxu0 0
      %2726 = vmatpush1.bf16.msra.mxu0 %v2650
      %2727 = vmatprep.subr.bf16.mxu0 0
      %2728 = vmatpush1.bf16.msra.mxu0 %v2651
      %2729 = vmatprep.subr.bf16.mxu0 0
      %2730 = vmatpush1.bf16.msra.mxu0 %v2652
      %2731 = vmatprep.subr.bf16.mxu0 0
      %2732 = vmatpush1.bf16.msra.mxu0 %v2653
      %2733 = vmatprep.subr.bf16.mxu0 0
      %2734 = vmatpush1.bf16.msra.mxu0 %v2654
      %2735 = vmatprep.mubr.bf16.mxu0 %v2312
      %2736 = vmatmul.mubr.bf16.gmra.mrb[0].mxu0 %v2289
      %v2737 = vpop.f32.mrb[0].mxu0
      %v2738 = vadd.f32 %v2509, %v2737
      %v2739 = vpop.f32.mrb[0].mxu0
      %v2740 = vpop.f32.mrb[0].mxu0
      %v2741 = vadd.f32 %v2509, %v2740
      %v2742 = vpop.f32.mrb[0].mxu0
      %2743 = vmatprep.mubr.bf16.mxu0 %v2320
      %2744 = vmatmul.mubr.bf16.gmra.mrb[0].mxu0 %v2290
      %v2745 = vpop.f32.mrb[0].mxu0
      %v2746 = vadd.f32 %v2509, %v2745
      %v2747 = vpop.f32.mrb[0].mxu0
      %v2748 = vpop.f32.mrb[0].mxu0
      %v2749 = vadd.f32 %v2509, %v2748
      %v2750 = vpop.f32.mrb[0].mxu0
      %2751 = vmatprep.mubr.bf16.mxu0 %v2328
      %2752 = vmatmul.mubr.bf16.gmra.mrb[0].mxu0 %v2291
      %v2753 = vpop.f32.mrb[0].mxu0
      %v2754 = vadd.f32 %v2509, %v2753
      %v2755 = vpop.f32.mrb[0].mxu0
      %v2756 = vpop.f32.mrb[0].mxu0
      %v2757 = vadd.f32 %v2509, %v2756
      %v2758 = vpop.f32.mrb[0].mxu0
      %2759 = vmatprep.mubr.bf16.mxu0 %v2336
      %2760 = vmatmul.mubr.bf16.gmra.mrb[0].mxu0 %v2292
      %v2761 = vpop.f32.mrb[0].mxu0
      %v2762 = vadd.f32 %v2509, %v2761
      %v2763 = vpop.f32.mrb[0].mxu0
      %v2764 = vpop.f32.mrb[0].mxu0
      %v2765 = vadd.f32 %v2509, %v2764
      %v2766 = vpop.f32.mrb[0].mxu0
      %2767 = vmatprep.mubr.bf16.mxu0 %v2344
      %2768 = vmatmul.mubr.bf16.gmra.mrb[0].mxu0 %v2293
      %v2769 = vpop.f32.mrb[0].mxu0
      %v2770 = vadd.f32 %v2509, %v2769
      %v2771 = vpop.f32.mrb[0].mxu0
      %v2772 = vpop.f32.mrb[0].mxu0
      %v2773 = vadd.f32 %v2509, %v2772
      %v2774 = vpop.f32.mrb[0].mxu0
      %2775 = vmatprep.mubr.bf16.mxu0 %v2347
      %2776 = vmatmul.mubr.bf16.gmra.mrb[0].mxu0 %v2294
      %v2777 = vpop.f32.mrb[0].mxu0
      %v2778 = vadd.f32 %v2509, %v2777
      %v2779 = vpop.f32.mrb[0].mxu0
      %v2780 = vpop.f32.mrb[0].mxu0
      %v2781 = vadd.f32 %v2509, %v2780
      %v2782 = vpop.f32.mrb[0].mxu0
      %2783 = vdwg.mxu0
      %2784 = vmatprep.subr.bf16.mxu0 0
      %2785 = vmatpush1.bf16.msra.mxu0 %v2655
      %2786 = vmatprep.subr.bf16.mxu0 0
      %2787 = vmatpush1.bf16.msra.mxu0 %v2656
      %2788 = vmatprep.subr.bf16.mxu0 0
      %2789 = vmatpush1.bf16.msra.mxu0 %v2657
      %2790 = vmatprep.subr.bf16.mxu0 0
      %2791 = vmatpush1.bf16.msra.mxu0 %v2658
      %2792 = vmatprep.subr.bf16.mxu0 0
      %2793 = vmatpush1.bf16.msra.mxu0 %v2659
      %2794 = vmatprep.subr.bf16.mxu0 0
      %2795 = vmatpush1.bf16.msra.mxu0 %v2660
      %2796 = vmatprep.subr.bf16.mxu0 0
      %2797 = vmatpush1.bf16.msra.mxu0 %v2661
      %2798 = vmatprep.subr.bf16.mxu0 0
      %2799 = vmatpush1.bf16.msra.mxu0 %v2662
      %2800 = vmatprep.subr.bf16.mxu0 0
      %2801 = vmatpush1.bf16.msra.mxu0 %v2663
      %2802 = vmatprep.subr.bf16.mxu0 0
      %2803 = vmatpush1.bf16.msra.mxu0 %v2664
      %2804 = vmatprep.subr.bf16.mxu0 0
      %2805 = vmatpush1.bf16.msra.mxu0 %v2665
      %2806 = vmatprep.subr.bf16.mxu0 0
      %2807 = vmatpush1.bf16.msra.mxu0 %v2666
      %2808 = vmatprep.subr.bf16.mxu0 0
      %2809 = vmatpush1.bf16.msra.mxu0 %v2667
      %2810 = vmatprep.subr.bf16.mxu0 0
      %2811 = vmatpush1.bf16.msra.mxu0 %v2668
      %2812 = vmatprep.subr.bf16.mxu0 0
      %2813 = vmatpush1.bf16.msra.mxu0 %v2669
      %2814 = vmatprep.subr.bf16.mxu0 0
      %2815 = vmatpush1.bf16.msra.mxu0 %v2670
      %2816 = vmatprep.mubr.bf16.mxu0 %v2397
      %2817 = vmatmul.mubr.bf16.gmra.mrb[0].mxu0 %v2365
      %v2818 = vpop.f32.mrb[0].mxu0
      %v2819 = vadd.f32 %v2738, %v2818
      %v2820 = vpop.f32.mrb[0].mxu0
      %v2821 = vpop.f32.mrb[0].mxu0
      %v2822 = vadd.f32 %v2741, %v2821
      %v2823 = vpop.f32.mrb[0].mxu0
      %2824 = vmatprep.mubr.bf16.mxu0 %v2406
      %2825 = vmatmul.mubr.bf16.gmra.mrb[0].mxu0 %v2367
      %v2826 = vpop.f32.mrb[0].mxu0
      %v2827 = vadd.f32 %v2746, %v2826
      %v2828 = vpop.f32.mrb[0].mxu0
      %v2829 = vpop.f32.mrb[0].mxu0
      %v2830 = vadd.f32 %v2749, %v2829
      %v2831 = vpop.f32.mrb[0].mxu0
      %2832 = vmatprep.mubr.bf16.mxu0 %v2415
      %2833 = vmatmul.mubr.bf16.gmra.mrb[0].mxu0 %v2369
      %v2834 = vpop.f32.mrb[0].mxu0
      %v2835 = vadd.f32 %v2754, %v2834
      %v2836 = vpop.f32.mrb[0].mxu0
      %v2837 = vpop.f32.mrb[0].mxu0
      %v2838 = vadd.f32 %v2757, %v2837
      %v2839 = vpop.f32.mrb[0].mxu0
      %2840 = vmatprep.mubr.bf16.mxu0 %v2424
      %2841 = vmatmul.mubr.bf16.gmra.mrb[0].mxu0 %v2371
      %v2842 = vpop.f32.mrb[0].mxu0
      %v2843 = vadd.f32 %v2762, %v2842
      %v2844 = vpop.f32.mrb[0].mxu0
      %v2845 = vpop.f32.mrb[0].mxu0
      %v2846 = vadd.f32 %v2765, %v2845
      %v2847 = vpop.f32.mrb[0].mxu0
      %2848 = vmatprep.mubr.bf16.mxu0 %v2433
      %2849 = vmatmul.mubr.bf16.gmra.mrb[0].mxu0 %v2373
      %v2850 = vpop.f32.mrb[0].mxu0
      %v2851 = vadd.f32 %v2770, %v2850
      %v2852 = vpop.f32.mrb[0].mxu0
      %v2853 = vpop.f32.mrb[0].mxu0
      %v2854 = vadd.f32 %v2773, %v2853
      %v2855 = vpop.f32.mrb[0].mxu0
      %2856 = vmatprep.mubr.bf16.mxu0 %v2432
      %2857 = vmatmul.mubr.bf16.gmra.mrb[0].mxu0 %v2372
      %v2858 = vpop.f32.mrb[0].mxu0
      %v2859 = vadd.f32 %v2778, %v2858
      %v2860 = vpop.f32.mrb[0].mxu0
      %v2861 = vpop.f32.mrb[0].mxu0
      %v2862 = vadd.f32 %v2781, %v2861
      %v2863 = vpop.f32.mrb[0].mxu0
      %2864 = vdwg.mxu0
      %v2865 = vmax.f32 %v2819, 0.0
      %v2866 = vmax.f32 %v2822, 0.0
      %v2867 = vmax.f32 %v2827, 0.0
      %v2868 = vmax.f32 %v2830, 0.0
      %v2869 = vmax.f32 %v2835, 0.0
      %v2870 = vmax.f32 %v2838, 0.0
      %v2871 = vmax.f32 %v2843, 0.0
      %v2872 = vmax.f32 %v2846, 0.0
      %v2873 = vmax.f32 %v2851, 0.0
      %v2874 = vmax.f32 %v2854, 0.0
      %v2875 = vmax.f32 %v2859, 0.0
      %v2876 = vmax.f32 %v2862, 0.0
      %v2877 = vpack.c.bf16 %v2866, %v2865
      %v2878 = vpack.c.bf16 %v2868, %v2867
      %v2879 = vpack.c.bf16 %v2870, %v2869
      %v2880 = vpack.c.bf16 %v2872, %v2871
      %v2881 = vpack.c.bf16 %v2874, %v2873
      %v2882 = vpack.c.bf16 %v2876, %v2875
      %v2884 = vshrl.u32 %v2877, 16
      %v2886 = vshll.u32 %v2877, 16
      %v2888 = vrot.slane %v2886, 1
      %v2889 = vor.u32 %v2884, %v2888
      %v2891 = vshll.u32 %v2878, 16
      %v2893 = vrot.slane %v2891, 1
      %v2894 = vsel %vm469, %v2889, %v2893
      %v2895 = vshrl.u32 %v2878, 16
      %v2897 = vor.u32 %v2895, %v2893
      %v2899 = vshll.u32 %v2879, 16
      %v2901 = vrot.slane %v2899, 1
      %v2902 = vsel %vm469, %v2897, %v2901
      %v2903 = vshrl.u32 %v2879, 16
      %v2905 = vor.u32 %v2903, %v2901
      %v2907 = vshll.u32 %v2880, 16
      %v2909 = vrot.slane %v2907, 1
      %v2910 = vsel %vm469, %v2905, %v2909
      %v2911 = vshrl.u32 %v2880, 16
      %v2913 = vor.u32 %v2911, %v2909
      %v2915 = vshll.u32 %v2881, 16
      %v2917 = vrot.slane %v2915, 1
      %v2918 = vsel %vm469, %v2913, %v2917
      %v2919 = vshrl.u32 %v2881, 16
      %v2921 = vor.u32 %v2919, %v2917
      %2922 = vrot.lane.b32.xlu0 %v2894, 64
      %v2923 = vpop.permute.xlu0 %2922
      %2924 = vrot.lane.b32.xlu0 %v2902, 64
      %v2925 = vpop.permute.xlu0 %2924
      %2926 = vrot.lane.b32.xlu0 %v2910, 64
      %v2927 = vpop.permute.xlu0 %2926
      %2928 = vrot.lane.b32.xlu0 %v2918, 64
      %v2929 = vpop.permute.xlu0 %2928
      %2930 = vrot.lane.b32.xlu0 %v2921, 64
      %v2931 = vpop.permute.xlu0 %2930
      %v2937 = vrot.slane %v2877, 1
      %v2938 = vrot.slane %v2878, 1
      %v2939 = vsel %vm2362, %v2937, %v2938
      %v2940 = vrot.slane %v2879, 1
      %v2941 = vsel %vm2362, %v2938, %v2940
      %v2942 = vrot.slane %v2880, 1
      %v2943 = vsel %vm2362, %v2940, %v2942
      %v2944 = vrot.slane %v2881, 1
      %v2945 = vsel %vm2362, %v2942, %v2944
      %v2946 = vrot.slane %v2877, 5
      %v2947 = vrot.slane %v2878, 5
      %v2948 = vsel %vm1889, %v2946, %v2947
      %v2949 = vrot.slane %v2879, 5
      %v2950 = vsel %vm1889, %v2947, %v2949
      %v2951 = vrot.slane %v2880, 5
      %v2952 = vsel %vm1889, %v2949, %v2951
      %v2953 = vrot.slane %v2881, 5
      %v2954 = vsel %vm1889, %v2951, %v2953
      %2955 = vrot.lane.b32.xlu0 %v2948, 64
      %v2956 = vpop.permute.xlu0 %2955
      %2957 = vrot.lane.b32.xlu0 %v2950, 64
      %v2958 = vpop.permute.xlu0 %2957
      %2959 = vrot.lane.b32.xlu0 %v2952, 64
      %v2960 = vpop.permute.xlu0 %2959
      %2961 = vrot.lane.b32.xlu0 %v2954, 64
      %v2962 = vpop.permute.xlu0 %2961
      %2963 = vrot.lane.b32.xlu0 %v2953, 64
      %v2964 = vpop.permute.xlu0 %2963
      %vm2965 = vsmask.f32 2304
      %v2966 = vrot.slane %v2884, 5
      %v2967 = vrot.slane %v2886, 6
      %v2968 = vor.u32 %v2966, %v2967
      %v2969 = vrot.slane %v2895, 5
      %v2970 = vrot.slane %v2891, 6
      %v2971 = vor.u32 %v2969, %v2970
      %v2972 = vsel %vm2965, %v2968, %v2971
      %v2973 = vrot.slane %v2903, 5
      %v2974 = vrot.slane %v2899, 6
      %v2975 = vor.u32 %v2973, %v2974
      %v2976 = vsel %vm2965, %v2971, %v2975
      %v2977 = vrot.slane %v2911, 5
      %v2978 = vrot.slane %v2907, 6
      %v2979 = vor.u32 %v2977, %v2978
      %v2980 = vsel %vm2965, %v2975, %v2979
      %v2981 = vrot.slane %v2919, 5
      %v2982 = vrot.slane %v2915, 6
      %v2983 = vor.u32 %v2981, %v2982
      %v2984 = vsel %vm2965, %v2979, %v2983
      %v2985 = vrot.slane %v2877, 6
      %v2986 = vrot.slane %v2878, 6
      %v2987 = vsel %vm1826, %v2985, %v2986
      %v2988 = vrot.slane %v2879, 6
      %v2989 = vsel %vm1826, %v2986, %v2988
      %v2990 = vrot.slane %v2880, 6
      %v2991 = vsel %vm1826, %v2988, %v2990
      %v2992 = vrot.slane %v2881, 6
      %v2993 = vsel %vm1826, %v2990, %v2992
      %2994 = vrot.lane.b32.xlu0 %v2987, 64
      %v2995 = vpop.permute.xlu0 %2994
      %2996 = vrot.lane.b32.xlu0 %v2989, 64
      %v2997 = vpop.permute.xlu0 %2996
      %2998 = vrot.lane.b32.xlu0 %v2991, 64
      %v2999 = vpop.permute.xlu0 %2998
      %3000 = vrot.lane.b32.xlu0 %v2993, 64
      %v3001 = vpop.permute.xlu0 %3000
      %3002 = vrot.lane.b32.xlu0 %v2992, 64
      %v3003 = vpop.permute.xlu0 %3002
      %vm3005 = vcmask 1045504
      %v3006 = vrot.slane %v2878, 2
      %v3007 = vrot.slane %v2879, 2
      %v3008 = vsel %vm3005, %v3006, %v3007
      %v3009 = vrot.slane %v2880, 2
      %v3010 = vsel %vm3005, %v3007, %v3009
      %v3011 = vrot.slane %v2881, 2
      %v3012 = vsel %vm3005, %v3009, %v3011
      %v3013 = vrot.slane %v2882, 2
      %v3014 = vsel %vm3005, %v3011, %v3013
      %v3015 = vrot.slane %v2895, 2
      %v3016 = vrot.slane %v2891, 3
      %v3017 = vor.u32 %v3015, %v3016
      %v3018 = vrot.slane %v2903, 2
      %v3019 = vrot.slane %v2899, 3
      %v3020 = vor.u32 %v3018, %v3019
      %v3021 = vsel %vm745, %v3017, %v3020
      %v3022 = vrot.slane %v2911, 2
      %v3023 = vrot.slane %v2907, 3
      %v3024 = vor.u32 %v3022, %v3023
      %v3025 = vsel %vm745, %v3020, %v3024
      %v3026 = vrot.slane %v2919, 2
      %v3027 = vrot.slane %v2915, 3
      %v3028 = vor.u32 %v3026, %v3027
      %v3029 = vsel %vm745, %v3024, %v3028
      %v3031 = vshrl.u32 %v2882, 16
      %v3033 = vrot.slane %v3031, 2
      %v3034 = vshll.u32 %v2882, 16
      %v3036 = vrot.slane %v3034, 3
      %v3037 = vor.u32 %v3033, %v3036
      %v3038 = vsel %vm745, %v3028, %v3037
      %3039 = vrot.lane.b32.xlu0 %v3021, 64
      %v3040 = vpop.permute.xlu0 %3039
      %3041 = vrot.lane.b32.xlu0 %v3025, 64
      %v3042 = vpop.permute.xlu0 %3041
      %3043 = vrot.lane.b32.xlu0 %v3029, 64
      %v3044 = vpop.permute.xlu0 %3043
      %3045 = vrot.lane.b32.xlu0 %v3038, 64
      %v3046 = vpop.permute.xlu0 %3045
      %3047 = vrot.lane.b32.xlu0 %v3037, 64
      %v3048 = vpop.permute.xlu0 %3047
      %v3049 = vrot.slane %v2878, 3
      %v3050 = vrot.slane %v2879, 3
      %v3051 = vsel %vm866, %v3049, %v3050
      %v3052 = vrot.slane %v2880, 3
      %v3053 = vsel %vm866, %v3050, %v3052
      %v3054 = vrot.slane %v2881, 3
      %v3055 = vsel %vm866, %v3052, %v3054
      %v3056 = vrot.slane %v2882, 3
      %v3057 = vsel %vm866, %v3054, %v3056
      %v3059 = vsel %vm974, %v2877, %v2923
      %v3062 = vsel %vm974, %v2878, %v2925
      %v3065 = vsel %vm974, %v2879, %v2927
      %v3068 = vsel %vm974, %v2880, %v2929
      %v3071 = vsel %vm974, %v2881, %v2931
      %v3075 = vsel %vm974, %v2939, %v2956
      %v3079 = vsel %vm974, %v2941, %v2958
      %v3083 = vsel %vm974, %v2943, %v2960
      %v3087 = vsel %vm974, %v2945, %v2962
      %v3091 = vsel %vm974, %v2944, %v2964
      %v3095 = vsel %vm974, %v2972, %v2995
      %v3099 = vsel %vm974, %v2976, %v2997
      %v3103 = vsel %vm974, %v2980, %v2999
      %v3107 = vsel %vm974, %v2984, %v3001
      %v3111 = vsel %vm974, %v2983, %v3003
      %v3115 = vsel %vm974, %v3008, %v3040
      %v3119 = vsel %vm974, %v3010, %v3042
      %v3123 = vsel %vm974, %v3012, %v3044
      %v3127 = vsel %vm974, %v3014, %v3046
      %v3131 = vsel %vm974, %v3013, %v3048
      %v3133 = vld [vmem:[%s5] sm:$0xf]
      %v3134 = vld [vmem:[%s5 + $0x4] sm:$0xf]
      %v3135 = vld [vmem:[%s5 + $0x8] sm:$0xf]
      %v3136 = vld [vmem:[%s5 + $0xc] sm:$0xf]
      %v3137 = vld [vmem:[%s5 + $0x10] sm:$0xf]
      %v3138 = vld [vmem:[%s5 + $0x14] sm:$0xf]
      %v3139 = vld [vmem:[%s5 + $0x18] sm:$0xf]
      %v3140 = vld [vmem:[%s5 + $0x1c] sm:$0xf]
      %v3141 = vld [vmem:[%s5 + $0x20] sm:$0xf]
      %v3142 = vld [vmem:[%s5 + $0x24] sm:$0xf]
      %v3143 = vld [vmem:[%s5 + $0x28] sm:$0xf]
      %v3144 = vld [vmem:[%s5 + $0x2c] sm:$0xf]
      %v3145 = vld [vmem:[%s5 + $0x30] sm:$0xf]
      %v3146 = vld [vmem:[%s5 + $0x34] sm:$0xf]
      %v3147 = vld [vmem:[%s5 + $0x38] sm:$0xf]
      %v3148 = vld [vmem:[%s5 + $0x3c] sm:$0xf]
      %v3149 = vld [vmem:[%s5 + $0x40] sm:$0xf]
      %v3150 = vld [vmem:[%s5 + $0x44] sm:$0xf]
      %v3151 = vld [vmem:[%s5 + $0x48] sm:$0xf]
      %v3152 = vld [vmem:[%s5 + $0x4c] sm:$0xf]
      %v3153 = vld [vmem:[%s5 + $0x50] sm:$0xf]
      %v3154 = vld [vmem:[%s5 + $0x54] sm:$0xf]
      %v3155 = vld [vmem:[%s5 + $0x58] sm:$0xf]
      %v3156 = vld [vmem:[%s5 + $0x5c] sm:$0xf]
      %v3157 = vld [vmem:[%s5 + $0x60] sm:$0xf]
      %v3158 = vld [vmem:[%s5 + $0x64] sm:$0xf]
      %v3159 = vld [vmem:[%s5 + $0x68] sm:$0xf]
      %v3160 = vld [vmem:[%s5 + $0x6c] sm:$0xf]
      %v3161 = vld [vmem:[%s5 + $0x70] sm:$0xf]
      %v3162 = vld [vmem:[%s5 + $0x74] sm:$0xf]
      %v3163 = vld [vmem:[%s5 + $0x78] sm:$0xf]
      %v3164 = vld [vmem:[%s5 + $0x7c] sm:$0xf]
      %v3165 = vld [vmem:[%s5 + $0x80] sm:$0xf]
      %v3166 = vld [vmem:[%s5 + $0x84] sm:$0xf]
      %v3167 = vld [vmem:[%s5 + $0x88] sm:$0xf]
      %v3168 = vld [vmem:[%s5 + $0x8c] sm:$0xf]
      %v3169 = vld [vmem:[%s5 + $0x90] sm:$0xf]
      %v3170 = vld [vmem:[%s5 + $0x94] sm:$0xf]
      %v3171 = vld [vmem:[%s5 + $0x98] sm:$0xf]
      %v3172 = vld [vmem:[%s5 + $0x9c] sm:$0xf]
      %v3173 = vld [vmem:[%s5 + $0xa0] sm:$0xf]
      %v3174 = vld [vmem:[%s5 + $0xa4] sm:$0xf]
      %v3175 = vld [vmem:[%s5 + $0xa8] sm:$0xf]
      %v3176 = vld [vmem:[%s5 + $0xac] sm:$0xf]
      %v3177 = vld [vmem:[%s5 + $0xb0] sm:$0xf]
      %v3178 = vld [vmem:[%s5 + $0xb4] sm:$0xf]
      %v3179 = vld [vmem:[%s5 + $0xb8] sm:$0xf]
      %v3180 = vld [vmem:[%s5 + $0xbc] sm:$0xf]
      %v3181 = vld [vmem:[%s5 + $0xc0] sm:$0xf]
      %v3182 = vld [vmem:[%s5 + $0xc4] sm:$0xf]
      %v3183 = vld [vmem:[%s5 + $0xc8] sm:$0xf]
      %v3184 = vld [vmem:[%s5 + $0xcc] sm:$0xf]
      %v3185 = vld [vmem:[%s5 + $0xd0] sm:$0xf]
      %v3186 = vld [vmem:[%s5 + $0xd4] sm:$0xf]
      %v3187 = vld [vmem:[%s5 + $0xd8] sm:$0xf]
      %v3188 = vld [vmem:[%s5 + $0xdc] sm:$0xf]
      %v3189 = vld [vmem:[%s5 + $0xe0] sm:$0xf]
      %v3190 = vld [vmem:[%s5 + $0xe4] sm:$0xf]
      %v3191 = vld [vmem:[%s5 + $0xe8] sm:$0xf]
      %v3192 = vld [vmem:[%s5 + $0xec] sm:$0xf]
      %v3193 = vld [vmem:[%s5 + $0xf0] sm:$0xf]
      %v3194 = vld [vmem:[%s5 + $0xf4] sm:$0xf]
      %v3195 = vld [vmem:[%s5 + $0xf8] sm:$0xf]
      %v3196 = vld [vmem:[%s5 + $0xfc] sm:$0xf]
      %v3197 = vld [vmem:[%s5 + $0x100] sm:$0xf]
      %v3198 = vld [vmem:[%s5 + $0x104] sm:$0xf]
      %v3199 = vld [vmem:[%s5 + $0x108] sm:$0xf]
      %v3200 = vld [vmem:[%s5 + $0x10c] sm:$0xf]
      %v3201 = vld [vmem:[%s5 + $0x110] sm:$0xf]
      %v3202 = vld [vmem:[%s5 + $0x114] sm:$0xf]
      %v3203 = vld [vmem:[%s5 + $0x118] sm:$0xf]
      %v3204 = vld [vmem:[%s5 + $0x11c] sm:$0xf]
      %v3205 = vld [vmem:[%s6] sm:$0x1]
      %v3207 = vlaneseq
      %v3208 = vshrl.u32 %v3207, 7
      %v3209 = vsub.s32 0, %v3208
      %v3210 = vrot.slane %v3205, %v3209
      %v3284 = vunpack.c.l.b16 %v3133
      %v3285 = vunpack.c.l.b16 %v3134
      %v3286 = vunpack.c.l.b16 %v3135
      %v3287 = vunpack.c.l.b16 %v3136
      %v3288 = vunpack.c.l.b16 %v3137
      %v3289 = vunpack.c.l.b16 %v3138
      %v3290 = vunpack.c.l.b16 %v3139
      %v3291 = vunpack.c.l.b16 %v3140
      %v3292 = vunpack.c.l.b16 %v3141
      %v3293 = vunpack.c.l.b16 %v3142
      %v3294 = vunpack.c.l.b16 %v3143
      %v3295 = vunpack.c.l.b16 %v3144
      %v3296 = vunpack.c.l.b16 %v3145
      %v3297 = vunpack.c.l.b16 %v3146
      %v3298 = vunpack.c.l.b16 %v3147
      %v3299 = vunpack.c.l.b16 %v3148
      %v3300 = vunpack.c.l.b16 %v3149
      %v3301 = vunpack.c.l.b16 %v3150
      %v3302 = vunpack.c.l.b16 %v3151
      %v3303 = vunpack.c.l.b16 %v3152
      %v3304 = vunpack.c.l.b16 %v3153
      %v3305 = vunpack.c.l.b16 %v3154
      %v3306 = vunpack.c.l.b16 %v3155
      %v3307 = vunpack.c.l.b16 %v3156
      %v3308 = vunpack.c.l.b16 %v3157
      %v3309 = vunpack.c.l.b16 %v3158
      %v3310 = vunpack.c.l.b16 %v3159
      %v3311 = vunpack.c.l.b16 %v3160
      %v3312 = vunpack.c.l.b16 %v3161
      %v3313 = vunpack.c.l.b16 %v3162
      %v3314 = vunpack.c.l.b16 %v3163
      %v3315 = vunpack.c.l.b16 %v3164
      %v3316 = vunpack.c.l.b16 %v3165
      %v3317 = vunpack.c.l.b16 %v3166
      %v3318 = vunpack.c.l.b16 %v3167
      %v3319 = vunpack.c.l.b16 %v3168
      %v3320 = vunpack.c.l.b16 %v3169
      %v3321 = vunpack.c.l.b16 %v3170
      %v3322 = vunpack.c.l.b16 %v3171
      %v3323 = vunpack.c.l.b16 %v3172
      %v3324 = vunpack.c.l.b16 %v3173
      %v3325 = vunpack.c.l.b16 %v3174
      %v3326 = vunpack.c.l.b16 %v3175
      %v3327 = vunpack.c.l.b16 %v3176
      %v3328 = vunpack.c.l.b16 %v3177
      %v3329 = vunpack.c.l.b16 %v3178
      %v3330 = vunpack.c.l.b16 %v3179
      %v3331 = vunpack.c.l.b16 %v3180
      %v3332 = vunpack.c.l.b16 %v3181
      %v3333 = vunpack.c.l.b16 %v3182
      %v3334 = vunpack.c.l.b16 %v3183
      %v3335 = vunpack.c.l.b16 %v3184
      %v3336 = vunpack.c.l.b16 %v3185
      %v3337 = vunpack.c.l.b16 %v3186
      %v3338 = vunpack.c.l.b16 %v3187
      %v3339 = vunpack.c.l.b16 %v3188
      %v3340 = vunpack.c.l.b16 %v3189
      %v3341 = vunpack.c.l.b16 %v3190
      %v3342 = vunpack.c.l.b16 %v3191
      %v3343 = vunpack.c.l.b16 %v3192
      %v3344 = vunpack.c.l.b16 %v3193
      %v3345 = vunpack.c.l.b16 %v3194
      %v3346 = vunpack.c.l.b16 %v3195
      %v3347 = vunpack.c.l.b16 %v3196
      %v3348 = vunpack.c.l.b16 %v3197
      %v3349 = vunpack.c.l.b16 %v3198
      %v3350 = vunpack.c.l.b16 %v3199
      %v3351 = vunpack.c.l.b16 %v3200
      %v3352 = vunpack.c.l.b16 %v3201
      %v3353 = vunpack.c.l.b16 %v3202
      %v3354 = vunpack.c.l.b16 %v3203
      %v3355 = vunpack.c.l.b16 %v3204
      %v3356 = vpack.c.b16 %v3285, %v3284
      %v3357 = vpack.c.b16 %v3287, %v3286
      %v3358 = vpack.c.b16 %v3289, %v3288
      %v3359 = vpack.c.b16 %v3291, %v3290
      %v3360 = vpack.c.b16 %v3293, %v3292
      %v3361 = vpack.c.b16 %v3295, %v3294
      %v3362 = vpack.c.b16 %v3297, %v3296
      %v3363 = vpack.c.b16 %v3299, %v3298
      %v3364 = vpack.c.b16 %v3301, %v3300
      %v3365 = vpack.c.b16 %v3303, %v3302
      %v3366 = vpack.c.b16 %v3305, %v3304
      %v3367 = vpack.c.b16 %v3307, %v3306
      %v3368 = vpack.c.b16 %v3309, %v3308
      %v3369 = vpack.c.b16 %v3311, %v3310
      %v3370 = vpack.c.b16 %v3313, %v3312
      %v3371 = vpack.c.b16 %v3315, %v3314
      %v3372 = vpack.c.b16 %v3317, %v3316
      %v3373 = vpack.c.b16 %v3319, %v3318
      %v3374 = vpack.c.b16 %v3321, %v3320
      %v3375 = vpack.c.b16 %v3323, %v3322
      %v3376 = vpack.c.b16 %v3325, %v3324
      %v3377 = vpack.c.b16 %v3327, %v3326
      %v3378 = vpack.c.b16 %v3329, %v3328
      %v3379 = vpack.c.b16 %v3331, %v3330
      %v3380 = vpack.c.b16 %v3333, %v3332
      %v3381 = vpack.c.b16 %v3335, %v3334
      %v3382 = vpack.c.b16 %v3337, %v3336
      %v3383 = vpack.c.b16 %v3339, %v3338
      %v3384 = vpack.c.b16 %v3341, %v3340
      %v3385 = vpack.c.b16 %v3343, %v3342
      %v3386 = vpack.c.b16 %v3345, %v3344
      %v3387 = vpack.c.b16 %v3347, %v3346
      %v3388 = vpack.c.b16 %v3349, %v3348
      %v3389 = vpack.c.b16 %v3351, %v3350
      %v3390 = vpack.c.b16 %v3353, %v3352
      %v3391 = vpack.c.b16 %v3355, %v3354
      %v3429 = vsel %vm974, %v3051, 0
      %v3432 = vsel %vm974, %v3053, 0
      %v3435 = vsel %vm974, %v3055, 0
      %v3438 = vsel %vm974, %v3057, 0
      %v3441 = vsel %vm974, %v3056, 0
      %3443 = vmatprep.subr.bf16.mxu0 0
      %3444 = vmatpush1.bf16.msra.mxu0 %v3356
      %3445 = vmatprep.subr.bf16.mxu0 0
      %3446 = vmatpush1.bf16.msra.mxu0 %v3357
      %3447 = vmatprep.subr.bf16.mxu0 0
      %3448 = vmatpush1.bf16.msra.mxu0 %v3358
      %3449 = vmatprep.subr.bf16.mxu0 0
      %3450 = vmatpush1.bf16.msra.mxu0 %v3359
      %3451 = vmatprep.subr.bf16.mxu0 0
      %3452 = vmatpush1.bf16.msra.mxu0 %v3360
      %3453 = vmatprep.subr.bf16.mxu0 0
      %3454 = vmatpush1.bf16.msra.mxu0 %v3361
      %3455 = vmatprep.subr.bf16.mxu0 0
      %3456 = vmatpush1.bf16.msra.mxu0 %v3362
      %3457 = vmatprep.subr.bf16.mxu0 0
      %3458 = vmatpush1.bf16.msra.mxu0 %v3363
      %3459 = vmatprep.subr.bf16.mxu0 0
      %3460 = vmatpush1.bf16.msra.mxu0 %v3364
      %3461 = vmatprep.subr.bf16.mxu0 0
      %3462 = vmatpush1.bf16.msra.mxu0 %v3365
      %3463 = vmatprep.subr.bf16.mxu0 0
      %3464 = vmatpush1.bf16.msra.mxu0 %v3366
      %3465 = vmatprep.subr.bf16.mxu0 0
      %3466 = vmatpush1.bf16.msra.mxu0 %v3367
      %3467 = vmatprep.subr.bf16.mxu0 0
      %3468 = vmatpush1.bf16.msra.mxu0 %v3368
      %3469 = vmatprep.subr.bf16.mxu0 0
      %3470 = vmatpush1.bf16.msra.mxu0 %v3369
      %3471 = vmatprep.subr.bf16.mxu0 0
      %3472 = vmatpush1.bf16.msra.mxu0 %v3370
      %3473 = vmatprep.subr.bf16.mxu0 0
      %3474 = vmatpush1.bf16.msra.mxu0 %v3371
      %3475 = vmatprep.mubr.bf16.mxu0 %v3075
      %3476 = vmatmul.mubr.bf16.gmra.mrb[0].mxu0 %v3059
      %v3477 = vpop.f32.mrb[0].mxu0
      %v3478 = vadd.f32 %v3210, %v3477
      %v3479 = vpop.f32.mrb[0].mxu0
      %v3480 = vpop.f32.mrb[0].mxu0
      %v3481 = vadd.f32 %v3210, %v3480
      %v3482 = vpop.f32.mrb[0].mxu0
      %3483 = vmatprep.mubr.bf16.mxu0 %v3079
      %3484 = vmatmul.mubr.bf16.gmra.mrb[0].mxu0 %v3062
      %v3485 = vpop.f32.mrb[0].mxu0
      %v3486 = vadd.f32 %v3210, %v3485
      %v3487 = vpop.f32.mrb[0].mxu0
      %v3488 = vpop.f32.mrb[0].mxu0
      %v3489 = vadd.f32 %v3210, %v3488
      %v3490 = vpop.f32.mrb[0].mxu0
      %3491 = vmatprep.mubr.bf16.mxu0 %v3083
      %3492 = vmatmul.mubr.bf16.gmra.mrb[0].mxu0 %v3065
      %v3493 = vpop.f32.mrb[0].mxu0
      %v3494 = vadd.f32 %v3210, %v3493
      %v3495 = vpop.f32.mrb[0].mxu0
      %v3496 = vpop.f32.mrb[0].mxu0
      %v3497 = vadd.f32 %v3210, %v3496
      %v3498 = vpop.f32.mrb[0].mxu0
      %3499 = vmatprep.mubr.bf16.mxu0 %v3087
      %3500 = vmatmul.mubr.bf16.gmra.mrb[0].mxu0 %v3068
      %v3501 = vpop.f32.mrb[0].mxu0
      %v3502 = vadd.f32 %v3210, %v3501
      %v3503 = vpop.f32.mrb[0].mxu0
      %v3504 = vpop.f32.mrb[0].mxu0
      %v3505 = vadd.f32 %v3210, %v3504
      %v3506 = vpop.f32.mrb[0].mxu0
      %3507 = vmatprep.mubr.bf16.mxu0 %v3091
      %3508 = vmatmul.mubr.bf16.gmra.mrb[0].mxu0 %v3071
      %v3509 = vpop.f32.mrb[0].mxu0
      %v3510 = vadd.f32 %v3210, %v3509
      %v3511 = vpop.f32.mrb[0].mxu0
      %v3512 = vpop.f32.mrb[0].mxu0
      %v3513 = vpop.f32.mrb[0].mxu0
      %3514 = vdwg.mxu0
      %3515 = vmatprep.subr.bf16.mxu0 0
      %3516 = vmatpush1.bf16.msra.mxu0 %v3372
      %3517 = vmatprep.subr.bf16.mxu0 0
      %3518 = vmatpush1.bf16.msra.mxu0 %v3373
      %3519 = vmatprep.subr.bf16.mxu0 0
      %3520 = vmatpush1.bf16.msra.mxu0 %v3374
      %3521 = vmatprep.subr.bf16.mxu0 0
      %3522 = vmatpush1.bf16.msra.mxu0 %v3375
      %3523 = vmatprep.subr.bf16.mxu0 0
      %3524 = vmatpush1.bf16.msra.mxu0 %v3376
      %3525 = vmatprep.subr.bf16.mxu0 0
      %3526 = vmatpush1.bf16.msra.mxu0 %v3377
      %3527 = vmatprep.subr.bf16.mxu0 0
      %3528 = vmatpush1.bf16.msra.mxu0 %v3378
      %3529 = vmatprep.subr.bf16.mxu0 0
      %3530 = vmatpush1.bf16.msra.mxu0 %v3379
      %3531 = vmatprep.subr.bf16.mxu0 0
      %3532 = vmatpush1.bf16.msra.mxu0 %v3380
      %3533 = vmatprep.subr.bf16.mxu0 0
      %3534 = vmatpush1.bf16.msra.mxu0 %v3381
      %3535 = vmatprep.subr.bf16.mxu0 0
      %3536 = vmatpush1.bf16.msra.mxu0 %v3382
      %3537 = vmatprep.subr.bf16.mxu0 0
      %3538 = vmatpush1.bf16.msra.mxu0 %v3383
      %3539 = vmatprep.subr.bf16.mxu0 0
      %3540 = vmatpush1.bf16.msra.mxu0 %v3384
      %3541 = vmatprep.subr.bf16.mxu0 0
      %3542 = vmatpush1.bf16.msra.mxu0 %v3385
      %3543 = vmatprep.subr.bf16.mxu0 0
      %3544 = vmatpush1.bf16.msra.mxu0 %v3386
      %3545 = vmatprep.subr.bf16.mxu0 0
      %3546 = vmatpush1.bf16.msra.mxu0 %v3387
      %3547 = vmatprep.mubr.bf16.mxu0 %v3115
      %3548 = vmatmul.mubr.bf16.gmra.mrb[0].mxu0 %v3095
      %v3549 = vpop.f32.mrb[0].mxu0
      %v3550 = vadd.f32 %v3478, %v3549
      %v3551 = vpop.f32.mrb[0].mxu0
      %v3552 = vpop.f32.mrb[0].mxu0
      %v3553 = vadd.f32 %v3481, %v3552
      %v3554 = vpop.f32.mrb[0].mxu0
      %3555 = vmatprep.mubr.bf16.mxu0 %v3119
      %3556 = vmatmul.mubr.bf16.gmra.mrb[0].mxu0 %v3099
      %v3557 = vpop.f32.mrb[0].mxu0
      %v3558 = vadd.f32 %v3486, %v3557
      %v3559 = vpop.f32.mrb[0].mxu0
      %v3560 = vpop.f32.mrb[0].mxu0
      %v3561 = vadd.f32 %v3489, %v3560
      %v3562 = vpop.f32.mrb[0].mxu0
      %3563 = vmatprep.mubr.bf16.mxu0 %v3123
      %3564 = vmatmul.mubr.bf16.gmra.mrb[0].mxu0 %v3103
      %v3565 = vpop.f32.mrb[0].mxu0
      %v3566 = vadd.f32 %v3494, %v3565
      %v3567 = vpop.f32.mrb[0].mxu0
      %v3568 = vpop.f32.mrb[0].mxu0
      %v3569 = vadd.f32 %v3497, %v3568
      %v3570 = vpop.f32.mrb[0].mxu0
      %3571 = vmatprep.mubr.bf16.mxu0 %v3127
      %3572 = vmatmul.mubr.bf16.gmra.mrb[0].mxu0 %v3107
      %v3573 = vpop.f32.mrb[0].mxu0
      %v3574 = vadd.f32 %v3502, %v3573
      %v3575 = vpop.f32.mrb[0].mxu0
      %v3576 = vpop.f32.mrb[0].mxu0
      %v3577 = vadd.f32 %v3505, %v3576
      %v3578 = vpop.f32.mrb[0].mxu0
      %3579 = vmatprep.mubr.bf16.mxu0 %v3131
      %3580 = vmatmul.mubr.bf16.gmra.mrb[0].mxu0 %v3111
      %v3581 = vpop.f32.mrb[0].mxu0
      %v3582 = vadd.f32 %v3510, %v3581
      %v3583 = vpop.f32.mrb[0].mxu0
      %v3584 = vpop.f32.mrb[0].mxu0
      %v3585 = vpop.f32.mrb[0].mxu0
      %3586 = vdwg.mxu0
      %3587 = vmatprep.subr.bf16.mxu0 0
      %3588 = vmatpush1.bf16.msra.mxu0 %v3388
      %3589 = vmatprep.subr.bf16.mxu0 0
      %3590 = vmatpush1.bf16.msra.mxu0 %v3389
      %3591 = vmatprep.subr.bf16.mxu0 0
      %3592 = vmatpush1.bf16.msra.mxu0 %v3390
      %3593 = vmatprep.subr.bf16.mxu0 0
      %3594 = vmatpush1.bf16.msra.mxu0 %v3391
      %3595 = vmatprep.subr.bf16.mxu0 0
      %3596 = vmatpush1.bf16.msra.mxu0 0
      %3597 = vmatprep.subr.bf16.mxu0 0
      %3598 = vmatpush1.bf16.msra.mxu0 0
      %3599 = vmatprep.subr.bf16.mxu0 0
      %3600 = vmatpush1.bf16.msra.mxu0 0
      %3601 = vmatprep.subr.bf16.mxu0 0
      %3602 = vmatpush1.bf16.msra.mxu0 0
      %3603 = vmatprep.subr.bf16.mxu0 0
      %3604 = vmatpush1.bf16.msra.mxu0 0
      %3605 = vmatprep.subr.bf16.mxu0 0
      %3606 = vmatpush1.bf16.msra.mxu0 0
      %3607 = vmatprep.subr.bf16.mxu0 0
      %3608 = vmatpush1.bf16.msra.mxu0 0
      %3609 = vmatprep.subr.bf16.mxu0 0
      %3610 = vmatpush1.bf16.msra.mxu0 0
      %3611 = vmatprep.subr.bf16.mxu0 0
      %3612 = vmatpush1.bf16.msra.mxu0 0
      %3613 = vmatprep.subr.bf16.mxu0 0
      %3614 = vmatpush1.bf16.msra.mxu0 0
      %3615 = vmatprep.subr.bf16.mxu0 0
      %3616 = vmatpush1.bf16.msra.mxu0 0
      %3617 = vmatprep.subr.bf16.mxu0 0
      %3618 = vmatpush1.bf16.msra.mxu0 0
      %3619 = vmatprep.mubr.bf16.mxu0 0
      %3620 = vmatmul.mubr.bf16.gmra.mrb[0].mxu0 %v3429
      %v3621 = vpop.f32.mrb[0].mxu0
      %v3622 = vadd.f32 %v3550, %v3621
      %v3623 = vpop.f32.mrb[0].mxu0
      %v3624 = vpop.f32.mrb[0].mxu0
      %v3625 = vadd.f32 %v3553, %v3624
      %v3626 = vpop.f32.mrb[0].mxu0
      %3627 = vmatprep.mubr.bf16.mxu0 0
      %3628 = vmatmul.mubr.bf16.gmra.mrb[0].mxu0 %v3432
      %v3629 = vpop.f32.mrb[0].mxu0
      %v3630 = vadd.f32 %v3558, %v3629
      %v3631 = vpop.f32.mrb[0].mxu0
      %v3632 = vpop.f32.mrb[0].mxu0
      %v3633 = vadd.f32 %v3561, %v3632
      %v3634 = vpop.f32.mrb[0].mxu0
      %3635 = vmatprep.mubr.bf16.mxu0 0
      %3636 = vmatmul.mubr.bf16.gmra.mrb[0].mxu0 %v3435
      %v3637 = vpop.f32.mrb[0].mxu0
      %v3638 = vadd.f32 %v3566, %v3637
      %v3639 = vpop.f32.mrb[0].mxu0
      %v3640 = vpop.f32.mrb[0].mxu0
      %v3641 = vadd.f32 %v3569, %v3640
      %v3642 = vpop.f32.mrb[0].mxu0
      %3643 = vmatprep.mubr.bf16.mxu0 0
      %3644 = vmatmul.mubr.bf16.gmra.mrb[0].mxu0 %v3438
      %v3645 = vpop.f32.mrb[0].mxu0
      %v3646 = vadd.f32 %v3574, %v3645
      %v3647 = vpop.f32.mrb[0].mxu0
      %v3648 = vpop.f32.mrb[0].mxu0
      %v3649 = vadd.f32 %v3577, %v3648
      %v3650 = vpop.f32.mrb[0].mxu0
      %3651 = vmatprep.mubr.bf16.mxu0 0
      %3652 = vmatmul.mubr.bf16.gmra.mrb[0].mxu0 %v3441
      %v3653 = vpop.f32.mrb[0].mxu0
      %v3654 = vadd.f32 %v3582, %v3653
      %v3655 = vpop.f32.mrb[0].mxu0
      %v3656 = vpop.f32.mrb[0].mxu0
      %v3657 = vpop.f32.mrb[0].mxu0
      %3658 = vdwg.mxu0
      %v3659 = vmax.f32 %v3622, 0.0
      %v3660 = vmax.f32 %v3625, 0.0
      %v3661 = vmax.f32 %v3630, 0.0
      %v3662 = vmax.f32 %v3633, 0.0
      %v3663 = vmax.f32 %v3638, 0.0
      %v3664 = vmax.f32 %v3641, 0.0
      %v3665 = vmax.f32 %v3646, 0.0
      %v3666 = vmax.f32 %v3649, 0.0
      %v3667 = vmax.f32 %v3654, 0.0
      %v3668 = vpack.c.bf16 %v3660, %v3659
      %v3669 = vpack.c.bf16 %v3662, %v3661
      %v3670 = vpack.c.bf16 %v3664, %v3663
      %v3671 = vpack.c.bf16 %v3666, %v3665
      %v3672 = vpack.c.bf16 %v3667, %v3667
      %v3674 = vshrl.u32 %v3668, 16
      %v3676 = vrot.slane %v3674, 1
      %v3677 = vshll.u32 %v3668, 16
      %v3679 = vrot.slane %v3677, 2
      %v3680 = vor.u32 %v3676, %v3679
      %v3682 = vshll.u32 %v3669, 16
      %v3684 = vrot.slane %v3682, 2
      %v3685 = vsel %vm2380, %v3680, %v3684
      %v3688 = vrot.slane %v3669, 3
      %vm3690 = vsmask.f32 3328
      %v3691 = vshrl.u32 %v3669, 16
      %v3693 = vrot.slane %v3691, 4
      %v3694 = vrot.slane %v3682, 5
      %v3695 = vor.u32 %v3693, %v3694
      %v3697 = vshrl.u32 %v3670, 16
      %v3699 = vrot.slane %v3697, 4
      %v3700 = vshll.u32 %v3670, 16
      %v3702 = vrot.slane %v3700, 5
      %v3703 = vor.u32 %v3699, %v3702
      %v3704 = vsel %vm3690, %v3695, %v3703
      %v3707 = vrot.slane %v3670, 6
      %v3710 = vshrl.u32 %v3671, 16
      %v3712 = vrot.slane %v3710, 7
      %v3713 = vshll.u32 %v3671, 16
      %v3715 = vor.u32 %v3712, %v3713
      %v3719 = vrot.slane %v3671, 1
      %v3720 = vrot.slane %v3672, 1
      %v3721 = vsel %vm2362, %v3719, %v3720
      %vm3722 = vcmask 1043456
      %vm3723 = vmand %vm3722, %vm3690
      %v3724 = vsel %vm3723, %v3668, %v3685
      %vm3725 = vcmask 1046528
      %v3728 = vsel %vm3725, %v3724, %v3688
      %vm3729 = vmand %vm1889, %vm2965
      %v3730 = vsel %vm3729, %v3688, %v3704
      %vm3731 = vcmask 1045504
      %v3734 = vsel %vm3731, %v3730, %v3707
      %vm3735 = vsmask.f32 1280
      %vm3736 = vmand %vm1826, %vm3735
      %v3737 = vsel %vm3736, %v3707, %v3715
      %vm3738 = vcmask 1044480
      %v3741 = vsel %vm3738, %v3737, %v3721
      %v3745 = vunpack.c.l.b16 %v3728
      %v3746 = vunpack.c.h.b16 %v3728
      %v3747 = vunpack.c.l.b16 %v3734
      %v3748 = vunpack.c.h.b16 %v3734
      %v3749 = vunpack.c.l.b16 %v3741
      %v3750 = vunpack.c.h.b16 %v3741
      %v3751 = vunpack.c.l.b16 %v3720
      %v3752 = vpack.c.b16 %v3745, %v3745
      %v3753 = vpack.c.b16 %v3746, %v3746
      %v3754 = vpack.c.b16 %v3747, %v3747
      %v3755 = vpack.c.b16 %v3748, %v3748
      %v3756 = vpack.c.b16 %v3749, %v3749
      %v3757 = vpack.c.b16 %v3750, %v3750
      %v3758 = vpack.c.b16 %v3751, %v3751
      %vm3766 = vcmask 257024
      %3767 = vst.msk [vmem:[%s278] sm:$0xf] %vm3766, %v3752
      %3768 = vst.msk [vmem:[%s278 + $0x4] sm:$0xf] %vm3766, %v3753
      %3769 = vst.msk [vmem:[%s278 + $0x8] sm:$0xf] %vm3766, %v3754
      %3770 = vst.msk [vmem:[%s278 + $0xc] sm:$0xf] %vm3766, %v3755
      %3771 = vst.msk [vmem:[%s278 + $0x10] sm:$0xf] %vm3766, %v3756
      %3772 = vst.msk [vmem:[%s278 + $0x14] sm:$0xf] %vm3766, %v3757
      %vm3773 = vcmask 253952
      %vm3774 = vsmask.f32 256
      %vm3775 = vmand %vm3773, %vm3774
      %v3776 = vld [vmem:[%s278 + $0x18] sm:$0x1]
      %v3777 = vsel %vm3775, %v3758, %v3776
      %3778 = vst [vmem:[%s278 + $0x18] sm:$0x1] %v3777
      %p3779 = scmp.lt.s32.totalorder %s18, 1
      %s3780 = scalar_select %p3779, %s18, 1
      %s3781 = smul.addr %s3780, 7
      %s3782 = smul.addr %s3781, 4
      %s3783 = scalar_lea.vmem %s7, %s3782
      // Predicated region
      $region49: #{nature_cnn_forward.2} parent=47 // pred_check
        %p3784 = pneg %p188
      $region50: #{nature_cnn_forward.2} parent=47 // pred_check_branch
        %3786 = sbr.rel (%p3784) target = $region52
      $region51: #{nature_cnn_forward.2} parent=47 // pred_region
        _
      $region52: #{nature_cnn_forward.2} parent=47 // pred_fallthru
        _
    $region48: #{nature_cnn_forward.2} parent=5 // pred_fallthru
      _
    %p3787 = scmp.le.s32.totalorder 2, %s13
    // Predicated region
    $region53: #{nature_cnn_forward.2} parent=5 // pred_check
      %p3788 = pneg %p3787
    $region54: #{nature_cnn_forward.2} parent=5 // pred_check_branch
      %3790 = sbr.rel (%p3788) target = $region56
    $region55: #{nature_cnn_forward.2} parent=5 // pred_region
      %s3791 = ssub.s32 %s13, 2
      // Predicated region
      $region57: #{nature_cnn_forward.2} parent=55 // pred_check
        %p3792 = pneg %p194
      $region58: #{nature_cnn_forward.2} parent=55 // pred_check_branch
        %3794 = sbr.rel (%p3792) target = $region60
      $region59: #{nature_cnn_forward.2} parent=55 // pred_region
        %p3795 = scmp.lt.s32.totalorder %s19, 1
        %s3796 = scalar_select %p3795, %s19, 1
        %s3797 = smul.addr %s3796, 7
        %s3798 = smul.addr %s3797, 4
        %s3799 = scalar_lea.vmem %s7, %s3798
      $region60: #{nature_cnn_forward.2} parent=55 // pred_fallthru
        _
    $region56: #{nature_cnn_forward.2} parent=5 // pred_fallthru
      _
  $region6: #{nature_cnn_forward.2} parent=0 // loop_footer
    %s17 = sadd.s32 1, %s13
  $region7: #{nature_cnn_forward.2} parent=0 // loop_footer_branch
    %12 = sbr.rel target = $region3
  $region8: #{nature_cnn_forward.2} parent=0 // loop_exit
    _

// kernel: nature_cnn_forward.3
$region0: #{nature_cnn_forward.3}
  #allocation0 [shape = 'u32[]', space=smem, size = 0x4, offset = 0x4, fixed_abs, tag = 'smem constant byte address 0x4 - core index']
  #allocation1 [shape = 'u32[144,128]{1,0:T(1,128)}', space=vmem, size = 0x12000, scoped, tag = 'internal scratch']
  %s0 = inlined_call_operand.vmem [shape: bf16[2,1568], index: 0, kind: input, shape index: {}]
  %s1 = inlined_call_operand.vmem [shape: bf16[1568,32], index: 1, kind: input, shape index: {}]
  %s2 = inlined_call_operand.vmem [shape: f32[1,32], index: 2, kind: input, shape index: {}]
  %s3 = inlined_call_operand.hbm [shape: f32[2,32], index: 3, kind: output, shape index: {}]
  %s4 = sld [smem:[#allocation0]]
  $region22: #{nature_cnn_forward.3} parent=0
    _
  %s6 = ssub.s32 1, %s4
  %s7 = scalar_select 0, %s6, %s4
  $region1: #{nature_cnn_forward.3} parent=0
    #allocation2 [shape = 'u8[1024]{0}', space=vmem, size = 0x400, scoped, tag = 'output window, operand 0, single buffered']
    #allocation3 [shape = 's32[1]{0}', space=sflag, size = 0x4, scoped, tag = 'scoped memory for nature_cnn_forward.3']
    %8 = vsyncpa [#allocation3], 0
    // Predicated region
    $region2: #{nature_cnn_forward.3} parent=1 // pred_check
      _
    $region3: #{nature_cnn_forward.3} parent=1 // pred_check_branch
      %10 = sbr.rel (0) target = $region5
    $region4: #{nature_cnn_forward.3} parent=1 // pred_region
      _
    $region5: #{nature_cnn_forward.3} parent=1 // pred_fallthru
      _
    // Predicated region
    $region6: #{nature_cnn_forward.3} parent=1 // pred_check
      _
    $region7: #{nature_cnn_forward.3} parent=1 // pred_check_branch
      %12 = sbr.rel (0) target = $region9
    $region8: #{nature_cnn_forward.3} parent=1 // pred_region
      _
    $region9: #{nature_cnn_forward.3} parent=1 // pred_fallthru
      _
    // Predicated region
    $region10: #{nature_cnn_forward.3} parent=1 // pred_check
      _
    $region11: #{nature_cnn_forward.3} parent=1 // pred_check_branch
      %14 = sbr.rel (0) target = $region13
    $region12: #{nature_cnn_forward.3} parent=1 // pred_region
      _
    $region13: #{nature_cnn_forward.3} parent=1 // pred_fallthru
      _
    %v16 = vld [vmem:[%s0] sm:$0xff]
    %v17 = vld [vmem:[%s0 + $0x8] sm:$0x1f]
    %v18 = vld [vmem:[%s1] sm:$0xf]
    %v19 = vld [vmem:[%s1 + $0x4] sm:$0xf]
    %v20 = vld [vmem:[%s1 + $0x8] sm:$0xf]
    %v21 = vld [vmem:[%s1 + $0xc] sm:$0xf]
    %v22 = vld [vmem:[%s1 + $0x10] sm:$0xf]
    %v23 = vld [vmem:[%s1 + $0x14] sm:$0xf]
    %v24 = vld [vmem:[%s1 + $0x18] sm:$0xf]
    %v25 = vld [vmem:[%s1 + $0x1c] sm:$0xf]
    %v26 = vld [vmem:[%s1 + $0x20] sm:$0xf]
    %v27 = vld [vmem:[%s1 + $0x24] sm:$0xf]
    %v28 = vld [vmem:[%s1 + $0x28] sm:$0xf]
    %v29 = vld [vmem:[%s1 + $0x2c] sm:$0xf]
    %v30 = vld [vmem:[%s1 + $0x30] sm:$0xf]
    %v31 = vld [vmem:[%s1 + $0x34] sm:$0xf]
    %v32 = vld [vmem:[%s1 + $0x38] sm:$0xf]
    %v33 = vld [vmem:[%s1 + $0x3c] sm:$0xf]
    %v34 = vld [vmem:[%s1 + $0x40] sm:$0xf]
    %v35 = vld [vmem:[%s1 + $0x44] sm:$0xf]
    %v36 = vld [vmem:[%s1 + $0x48] sm:$0xf]
    %v37 = vld [vmem:[%s1 + $0x4c] sm:$0xf]
    %v38 = vld [vmem:[%s1 + $0x50] sm:$0xf]
    %v39 = vld [vmem:[%s1 + $0x54] sm:$0xf]
    %v40 = vld [vmem:[%s1 + $0x58] sm:$0xf]
    %v41 = vld [vmem:[%s1 + $0x5c] sm:$0xf]
    %v42 = vld [vmem:[%s1 + $0x60] sm:$0xf]
    %v43 = vld [vmem:[%s1 + $0x64] sm:$0xf]
    %v44 = vld [vmem:[%s1 + $0x68] sm:$0xf]
    %v45 = vld [vmem:[%s1 + $0x6c] sm:$0xf]
    %v46 = vld [vmem:[%s1 + $0x70] sm:$0xf]
    %v47 = vld [vmem:[%s1 + $0x74] sm:$0xf]
    %v48 = vld [vmem:[%s1 + $0x78] sm:$0xf]
    %v49 = vld [vmem:[%s1 + $0x7c] sm:$0xf]
    %v50 = vld [vmem:[%s1 + $0x80] sm:$0xf]
    %v51 = vld [vmem:[%s1 + $0x84] sm:$0xf]
    %v52 = vld [vmem:[%s1 + $0x88] sm:$0xf]
    %v53 = vld [vmem:[%s1 + $0x8c] sm:$0xf]
    %v54 = vld [vmem:[%s1 + $0x90] sm:$0xf]
    %v55 = vld [vmem:[%s1 + $0x94] sm:$0xf]
    %v56 = vld [vmem:[%s1 + $0x98] sm:$0xf]
    %v57 = vld [vmem:[%s1 + $0x9c] sm:$0xf]
    %v58 = vld [vmem:[%s1 + $0xa0] sm:$0xf]
    %v59 = vld [vmem:[%s1 + $0xa4] sm:$0xf]
    %v60 = vld [vmem:[%s1 + $0xa8] sm:$0xf]
    %v61 = vld [vmem:[%s1 + $0xac] sm:$0xf]
    %v62 = vld [vmem:[%s1 + $0xb0] sm:$0xf]
    %v63 = vld [vmem:[%s1 + $0xb4] sm:$0xf]
    %v64 = vld [vmem:[%s1 + $0xb8] sm:$0xf]
    %v65 = vld [vmem:[%s1 + $0xbc] sm:$0xf]
    %v66 = vld [vmem:[%s1 + $0xc0] sm:$0xf]
    %v67 = vld [vmem:[%s1 + $0xc4] sm:$0xf]
    %v68 = vld [vmem:[%s1 + $0xc8] sm:$0xf]
    %v69 = vld [vmem:[%s1 + $0xcc] sm:$0xf]
    %v70 = vld [vmem:[%s1 + $0xd0] sm:$0xf]
    %v71 = vld [vmem:[%s1 + $0xd4] sm:$0xf]
    %v72 = vld [vmem:[%s1 + $0xd8] sm:$0xf]
    %v73 = vld [vmem:[%s1 + $0xdc] sm:$0xf]
    %v74 = vld [vmem:[%s1 + $0xe0] sm:$0xf]
    %v75 = vld [vmem:[%s1 + $0xe4] sm:$0xf]
    %v76 = vld [vmem:[%s1 + $0xe8] sm:$0xf]
    %v77 = vld [vmem:[%s1 + $0xec] sm:$0xf]
    %v78 = vld [vmem:[%s1 + $0xf0] sm:$0xf]
    %v79 = vld [vmem:[%s1 + $0xf4] sm:$0xf]
    %v80 = vld [vmem:[%s1 + $0xf8] sm:$0xf]
    %v81 = vld [vmem:[%s1 + $0xfc] sm:$0xf]
    %v82 = vld [vmem:[%s1 + $0x100] sm:$0xf]
    %v83 = vld [vmem:[%s1 + $0x104] sm:$0xf]
    %v84 = vld [vmem:[%s1 + $0x108] sm:$0xf]
    %v85 = vld [vmem:[%s1 + $0x10c] sm:$0xf]
    %v86 = vld [vmem:[%s1 + $0x110] sm:$0xf]
    %v87 = vld [vmem:[%s1 + $0x114] sm:$0xf]
    %v88 = vld [vmem:[%s1 + $0x118] sm:$0xf]
    %v89 = vld [vmem:[%s1 + $0x11c] sm:$0xf]
    %v90 = vld [vmem:[%s1 + $0x120] sm:$0xf]
    %v91 = vld [vmem:[%s1 + $0x124] sm:$0xf]
    %v92 = vld [vmem:[%s1 + $0x128] sm:$0xf]
    %v93 = vld [vmem:[%s1 + $0x12c] sm:$0xf]
    %v94 = vld [vmem:[%s1 + $0x130] sm:$0xf]
    %v95 = vld [vmem:[%s1 + $0x134] sm:$0xf]
    %v96 = vld [vmem:[%s1 + $0x138] sm:$0xf]
    %v97 = vld [vmem:[%s1 + $0x13c] sm:$0xf]
    %v98 = vld [vmem:[%s1 + $0x140] sm:$0xf]
    %v99 = vld [vmem:[%s1 + $0x144] sm:$0xf]
    %v100 = vld [vmem:[%s1 + $0x148] sm:$0xf]
    %v101 = vld [vmem:[%s1 + $0x14c] sm:$0xf]
    %v102 = vld [vmem:[%s1 + $0x150] sm:$0xf]
    %v103 = vld [vmem:[%s1 + $0x154] sm:$0xf]
    %v104 = vld [vmem:[%s1 + $0x158] sm:$0xf]
    %v105 = vld [vmem:[%s1 + $0x15c] sm:$0xf]
    %v106 = vld [vmem:[%s1 + $0x160] sm:$0xf]
    %v107 = vld [vmem:[%s1 + $0x164] sm:$0xf]
    %v108 = vld [vmem:[%s1 + $0x168] sm:$0xf]
    %v109 = vld [vmem:[%s1 + $0x16c] sm:$0xf]
    %v110 = vld [vmem:[%s1 + $0x170] sm:$0xf]
    %v111 = vld [vmem:[%s1 + $0x174] sm:$0xf]
    %v112 = vld [vmem:[%s1 + $0x178] sm:$0xf]
    %v113 = vld [vmem:[%s1 + $0x17c] sm:$0xf]
    %v114 = vld [vmem:[%s1 + $0x180] sm:$0xf]
    %v115 = vld [vmem:[%s1 + $0x184] sm:$0xf]
    %v116 = vld [vmem:[%s1 + $0x188] sm:$0xf]
    %v117 = vld [vmem:[%s1 + $0x18c] sm:$0xf]
    %v118 = vld [vmem:[%s1 + $0x190] sm:$0xf]
    %v119 = vld [vmem:[%s1 + $0x194] sm:$0xf]
    %v120 = vld [vmem:[%s1 + $0x198] sm:$0xf]
    %v121 = vld [vmem:[%s1 + $0x19c] sm:$0xf]
    %v122 = vld [vmem:[%s1 + $0x1a0] sm:$0xf]
    %v123 = vld [vmem:[%s1 + $0x1a4] sm:$0xf]
    %v124 = vld [vmem:[%s1 + $0x1a8] sm:$0xf]
    %v125 = vld [vmem:[%s1 + $0x1ac] sm:$0xf]
    %v126 = vld [vmem:[%s1 + $0x1b0] sm:$0xf]
    %v127 = vld [vmem:[%s1 + $0x1b4] sm:$0xf]
    %v128 = vld [vmem:[%s1 + $0x1b8] sm:$0xf]
    %v129 = vld [vmem:[%s1 + $0x1bc] sm:$0xf]
    %v130 = vld [vmem:[%s1 + $0x1c0] sm:$0xf]
    %v131 = vld [vmem:[%s1 + $0x1c4] sm:$0xf]
    %v132 = vld [vmem:[%s1 + $0x1c8] sm:$0xf]
    %v133 = vld [vmem:[%s1 + $0x1cc] sm:$0xf]
    %v134 = vld [vmem:[%s1 + $0x1d0] sm:$0xf]
    %v135 = vld [vmem:[%s1 + $0x1d4] sm:$0xf]
    %v136 = vld [vmem:[%s1 + $0x1d8] sm:$0xf]
    %v137 = vld [vmem:[%s1 + $0x1dc] sm:$0xf]
    %v138 = vld [vmem:[%s1 + $0x1e0] sm:$0xf]
    %v139 = vld [vmem:[%s1 + $0x1e4] sm:$0xf]
    %v140 = vld [vmem:[%s1 + $0x1e8] sm:$0xf]
    %v141 = vld [vmem:[%s1 + $0x1ec] sm:$0xf]
    %v142 = vld [vmem:[%s1 + $0x1f0] sm:$0xf]
    %v143 = vld [vmem:[%s1 + $0x1f4] sm:$0xf]
    %v144 = vld [vmem:[%s1 + $0x1f8] sm:$0xf]
    %v145 = vld [vmem:[%s1 + $0x1fc] sm:$0xf]
    %v146 = vld [vmem:[%s1 + $0x200] sm:$0xf]
    %v147 = vld [vmem:[%s1 + $0x204] sm:$0xf]
    %v148 = vld [vmem:[%s1 + $0x208] sm:$0xf]
    %v149 = vld [vmem:[%s1 + $0x20c] sm:$0xf]
    %v150 = vld [vmem:[%s1 + $0x210] sm:$0xf]
    %v151 = vld [vmem:[%s1 + $0x214] sm:$0xf]
    %v152 = vld [vmem:[%s1 + $0x218] sm:$0xf]
    %v153 = vld [vmem:[%s1 + $0x21c] sm:$0xf]
    %v154 = vld [vmem:[%s1 + $0x220] sm:$0xf]
    %v155 = vld [vmem:[%s1 + $0x224] sm:$0xf]
    %v156 = vld [vmem:[%s1 + $0x228] sm:$0xf]
    %v157 = vld [vmem:[%s1 + $0x22c] sm:$0xf]
    %v158 = vld [vmem:[%s1 + $0x230] sm:$0xf]
    %v159 = vld [vmem:[%s1 + $0x234] sm:$0xf]
    %v160 = vld [vmem:[%s1 + $0x238] sm:$0xf]
    %v161 = vld [vmem:[%s1 + $0x23c] sm:$0xf]
    %v162 = vld [vmem:[%s1 + $0x240] sm:$0xf]
    %v163 = vld [vmem:[%s1 + $0x244] sm:$0xf]
    %v164 = vld [vmem:[%s1 + $0x248] sm:$0xf]
    %v165 = vld [vmem:[%s1 + $0x24c] sm:$0xf]
    %v166 = vld [vmem:[%s1 + $0x250] sm:$0xf]
    %v167 = vld [vmem:[%s1 + $0x254] sm:$0xf]
    %v168 = vld [vmem:[%s1 + $0x258] sm:$0xf]
    %v169 = vld [vmem:[%s1 + $0x25c] sm:$0xf]
    %v170 = vld [vmem:[%s1 + $0x260] sm:$0xf]
    %v171 = vld [vmem:[%s1 + $0x264] sm:$0xf]
    %v172 = vld [vmem:[%s1 + $0x268] sm:$0xf]
    %v173 = vld [vmem:[%s1 + $0x26c] sm:$0xf]
    %v174 = vld [vmem:[%s1 + $0x270] sm:$0xf]
    %v175 = vld [vmem:[%s1 + $0x274] sm:$0xf]
    %v176 = vld [vmem:[%s1 + $0x278] sm:$0xf]
    %v177 = vld [vmem:[%s1 + $0x27c] sm:$0xf]
    %v178 = vld [vmem:[%s1 + $0x280] sm:$0xf]
    %v179 = vld [vmem:[%s1 + $0x284] sm:$0xf]
    %v180 = vld [vmem:[%s1 + $0x288] sm:$0xf]
    %v181 = vld [vmem:[%s1 + $0x28c] sm:$0xf]
    %v182 = vld [vmem:[%s1 + $0x290] sm:$0xf]
    %v183 = vld [vmem:[%s1 + $0x294] sm:$0xf]
    %v184 = vld [vmem:[%s1 + $0x298] sm:$0xf]
    %v185 = vld [vmem:[%s1 + $0x29c] sm:$0xf]
    %v186 = vld [vmem:[%s1 + $0x2a0] sm:$0xf]
    %v187 = vld [vmem:[%s1 + $0x2a4] sm:$0xf]
    %v188 = vld [vmem:[%s1 + $0x2a8] sm:$0xf]
    %v189 = vld [vmem:[%s1 + $0x2ac] sm:$0xf]
    %v190 = vld [vmem:[%s1 + $0x2b0] sm:$0xf]
    %v191 = vld [vmem:[%s1 + $0x2b4] sm:$0xf]
    %v192 = vld [vmem:[%s1 + $0x2b8] sm:$0xf]
    %v193 = vld [vmem:[%s1 + $0x2bc] sm:$0xf]
    %v194 = vld [vmem:[%s1 + $0x2c0] sm:$0xf]
    %v195 = vld [vmem:[%s1 + $0x2c4] sm:$0xf]
    %v196 = vld [vmem:[%s1 + $0x2c8] sm:$0xf]
    %v197 = vld [vmem:[%s1 + $0x2cc] sm:$0xf]
    %v198 = vld [vmem:[%s1 + $0x2d0] sm:$0xf]
    %v199 = vld [vmem:[%s1 + $0x2d4] sm:$0xf]
    %v200 = vld [vmem:[%s1 + $0x2d8] sm:$0xf]
    %v201 = vld [vmem:[%s1 + $0x2dc] sm:$0xf]
    %v202 = vld [vmem:[%s1 + $0x2e0] sm:$0xf]
    %v203 = vld [vmem:[%s1 + $0x2e4] sm:$0xf]
    %v204 = vld [vmem:[%s1 + $0x2e8] sm:$0xf]
    %v205 = vld [vmem:[%s1 + $0x2ec] sm:$0xf]
    %v206 = vld [vmem:[%s1 + $0x2f0] sm:$0xf]
    %v207 = vld [vmem:[%s1 + $0x2f4] sm:$0xf]
    %v208 = vld [vmem:[%s1 + $0x2f8] sm:$0xf]
    %v209 = vld [vmem:[%s1 + $0x2fc] sm:$0xf]
    %v210 = vld [vmem:[%s1 + $0x300] sm:$0xf]
    %v211 = vld [vmem:[%s1 + $0x304] sm:$0xf]
    %v212 = vld [vmem:[%s1 + $0x308] sm:$0xf]
    %v213 = vld [vmem:[%s1 + $0x30c] sm:$0xf]
    %v214 = vld [vmem:[%s2] sm:$0x1]
    %v216 = vlaneseq
    %v217 = vshrl.u32 %v216, 7
    %v218 = vsub.s32 0, %v217
    %v219 = vrot.slane %v214, %v218
    %v223 = vcombine.high %v16, %v16
    %v225 = vunpack.c.l.s4 1966171168
    %v226 = vunpack.c.0.s8 %v225
    %v227 = vlaneseq
    %v228 = vshrl.u32 %v227, 7
    %v229 = vsub.s32 %v226, %v228
    %v230 = vrot.slane %v16, %v229
    %v232 = vunpack.c.l.s4 1966171168
    %v233 = vunpack.c.0.s8 %v232
    %v234 = vlaneseq
    %v235 = vshrl.u32 %v234, 7
    %v236 = vsub.s32 %v233, %v235
    %v237 = vrot.slane %v223, %v236
    %v238 = vcombine.high %v230, %v230
    %v239 = vcombine.high %v237, %v237
    %v241 = vunpack.c.l.s4 1966171168
    %v242 = vunpack.c.0.s8 %v241
    %v243 = vlaneseq
    %v244 = vshrl.u32 %v243, 7
    %v245 = vsub.s32 %v242, %v244
    %v246 = vrot.slane %v230, %v245
    %v248 = vunpack.c.l.s4 1966171168
    %v249 = vunpack.c.0.s8 %v248
    %v250 = vlaneseq
    %v251 = vshrl.u32 %v250, 7
    %v252 = vsub.s32 %v249, %v251
    %v253 = vrot.slane %v237, %v252
    %v255 = vunpack.c.l.s4 1966171168
    %v256 = vunpack.c.0.s8 %v255
    %v257 = vlaneseq
    %v258 = vshrl.u32 %v257, 7
    %v259 = vsub.s32 %v256, %v258
    %v260 = vrot.slane %v238, %v259
    %v262 = vunpack.c.l.s4 1966171168
    %v263 = vunpack.c.0.s8 %v262
    %v264 = vlaneseq
    %v265 = vshrl.u32 %v264, 7
    %v266 = vsub.s32 %v263, %v265
    %v267 = vrot.slane %v239, %v266
    %v268 = vcombine.high %v246, %v246
    %v269 = vcombine.high %v253, %v253
    %v270 = vcombine.high %v260, %v260
    %v271 = vcombine.high %v267, %v267
    %v272 = vcombine.high %v17, %v17
    %v274 = vunpack.c.l.s4 1966171168
    %v275 = vunpack.c.0.s8 %v274
    %v276 = vlaneseq
    %v277 = vshrl.u32 %v276, 7
    %v278 = vsub.s32 %v275, %v277
    %v279 = vrot.slane %v17, %v278
    %v281 = vunpack.c.l.s4 1966171168
    %v282 = vunpack.c.0.s8 %v281
    %v283 = vlaneseq
    %v284 = vshrl.u32 %v283, 7
    %v285 = vsub.s32 %v282, %v284
    %v286 = vrot.slane %v272, %v285
    %v287 = vcombine.high %v279, %v279
    %v289 = vunpack.c.l.s4 1966171168
    %v290 = vunpack.c.0.s8 %v289
    %v291 = vlaneseq
    %v292 = vshrl.u32 %v291, 7
    %v293 = vsub.s32 %v290, %v292
    %v294 = vrot.slane %v279, %v293
    %v296 = vunpack.c.l.s4 1966171168
    %v297 = vunpack.c.0.s8 %v296
    %v298 = vlaneseq
    %v299 = vshrl.u32 %v298, 7
    %v300 = vsub.s32 %v297, %v299
    %v301 = vrot.slane %v286, %v300
    %v303 = vunpack.c.l.s4 1966171168
    %v304 = vunpack.c.0.s8 %v303
    %v305 = vlaneseq
    %v306 = vshrl.u32 %v305, 7
    %v307 = vsub.s32 %v304, %v306
    %v308 = vrot.slane %v287, %v307
    %v309 = vcombine.high %v294, %v294
    %v310 = vcombine.high %v308, %v308
    %v519 = vunpack.c.l.b16 %v18
    %v520 = vunpack.c.l.b16 %v19
    %v521 = vunpack.c.l.b16 %v20
    %v522 = vunpack.c.l.b16 %v21
    %v523 = vunpack.c.l.b16 %v22
    %v524 = vunpack.c.l.b16 %v23
    %v525 = vunpack.c.l.b16 %v24
    %v526 = vunpack.c.l.b16 %v25
    %v527 = vunpack.c.l.b16 %v26
    %v528 = vunpack.c.l.b16 %v27
    %v529 = vunpack.c.l.b16 %v28
    %v530 = vunpack.c.l.b16 %v29
    %v531 = vunpack.c.l.b16 %v30
    %v532 = vunpack.c.l.b16 %v31
    %v533 = vunpack.c.l.b16 %v32
    %v534 = vunpack.c.l.b16 %v33
    %v535 = vunpack.c.l.b16 %v34
    %v536 = vunpack.c.l.b16 %v35
    %v537 = vunpack.c.l.b16 %v36
    %v538 = vunpack.c.l.b16 %v37
    %v539 = vunpack.c.l.b16 %v38
    %v540 = vunpack.c.l.b16 %v39
    %v541 = vunpack.c.l.b16 %v40
    %v542 = vunpack.c.l.b16 %v41
    %v543 = vunpack.c.l.b16 %v42
    %v544 = vunpack.c.l.b16 %v43
    %v545 = vunpack.c.l.b16 %v44
    %v546 = vunpack.c.l.b16 %v45
    %v547 = vunpack.c.l.b16 %v46
    %v548 = vunpack.c.l.b16 %v47
    %v549 = vunpack.c.l.b16 %v48
    %v550 = vunpack.c.l.b16 %v49
    %v551 = vunpack.c.l.b16 %v50
    %v552 = vunpack.c.l.b16 %v51
    %v553 = vunpack.c.l.b16 %v52
    %v554 = vunpack.c.l.b16 %v53
    %v555 = vunpack.c.l.b16 %v54
    %v556 = vunpack.c.l.b16 %v55
    %v557 = vunpack.c.l.b16 %v56
    %v558 = vunpack.c.l.b16 %v57
    %v559 = vunpack.c.l.b16 %v58
    %v560 = vunpack.c.l.b16 %v59
    %v561 = vunpack.c.l.b16 %v60
    %v562 = vunpack.c.l.b16 %v61
    %v563 = vunpack.c.l.b16 %v62
    %v564 = vunpack.c.l.b16 %v63
    %v565 = vunpack.c.l.b16 %v64
    %v566 = vunpack.c.l.b16 %v65
    %v567 = vunpack.c.l.b16 %v66
    %v568 = vunpack.c.l.b16 %v67
    %v569 = vunpack.c.l.b16 %v68
    %v570 = vunpack.c.l.b16 %v69
    %v571 = vunpack.c.l.b16 %v70
    %v572 = vunpack.c.l.b16 %v71
    %v573 = vunpack.c.l.b16 %v72
    %v574 = vunpack.c.l.b16 %v73
    %v575 = vunpack.c.l.b16 %v74
    %v576 = vunpack.c.l.b16 %v75
    %v577 = vunpack.c.l.b16 %v76
    %v578 = vunpack.c.l.b16 %v77
    %v579 = vunpack.c.l.b16 %v78
    %v580 = vunpack.c.l.b16 %v79
    %v581 = vunpack.c.l.b16 %v80
    %v582 = vunpack.c.l.b16 %v81
    %v583 = vunpack.c.l.b16 %v82
    %v584 = vunpack.c.l.b16 %v83
    %v585 = vunpack.c.l.b16 %v84
    %v586 = vunpack.c.l.b16 %v85
    %v587 = vunpack.c.l.b16 %v86
    %v588 = vunpack.c.l.b16 %v87
    %v589 = vunpack.c.l.b16 %v88
    %v590 = vunpack.c.l.b16 %v89
    %v591 = vunpack.c.l.b16 %v90
    %v592 = vunpack.c.l.b16 %v91
    %v593 = vunpack.c.l.b16 %v92
    %v594 = vunpack.c.l.b16 %v93
    %v595 = vunpack.c.l.b16 %v94
    %v596 = vunpack.c.l.b16 %v95
    %v597 = vunpack.c.l.b16 %v96
    %v598 = vunpack.c.l.b16 %v97
    %v599 = vunpack.c.l.b16 %v98
    %v600 = vunpack.c.l.b16 %v99
    %v601 = vunpack.c.l.b16 %v100
    %v602 = vunpack.c.l.b16 %v101
    %v603 = vunpack.c.l.b16 %v102
    %v604 = vunpack.c.l.b16 %v103
    %v605 = vunpack.c.l.b16 %v104
    %v606 = vunpack.c.l.b16 %v105
    %v607 = vunpack.c.l.b16 %v106
    %v608 = vunpack.c.l.b16 %v107
    %v609 = vunpack.c.l.b16 %v108
    %v610 = vunpack.c.l.b16 %v109
    %v611 = vunpack.c.l.b16 %v110
    %v612 = vunpack.c.l.b16 %v111
    %v613 = vunpack.c.l.b16 %v112
    %v614 = vunpack.c.l.b16 %v113
    %v615 = vunpack.c.l.b16 %v114
    %v616 = vunpack.c.l.b16 %v115
    %v617 = vunpack.c.l.b16 %v116
    %v618 = vunpack.c.l.b16 %v117
    %v619 = vunpack.c.l.b16 %v118
    %v620 = vunpack.c.l.b16 %v119
    %v621 = vunpack.c.l.b16 %v120
    %v622 = vunpack.c.l.b16 %v121
    %v623 = vunpack.c.l.b16 %v122
    %v624 = vunpack.c.l.b16 %v123
    %v625 = vunpack.c.l.b16 %v124
    %v626 = vunpack.c.l.b16 %v125
    %v627 = vunpack.c.l.b16 %v126
    %v628 = vunpack.c.l.b16 %v127
    %v629 = vunpack.c.l.b16 %v128
    %v630 = vunpack.c.l.b16 %v129
    %v631 = vunpack.c.l.b16 %v130
    %v632 = vunpack.c.l.b16 %v131
    %v633 = vunpack.c.l.b16 %v132
    %v634 = vunpack.c.l.b16 %v133
    %v635 = vunpack.c.l.b16 %v134
    %v636 = vunpack.c.l.b16 %v135
    %v637 = vunpack.c.l.b16 %v136
    %v638 = vunpack.c.l.b16 %v137
    %v639 = vunpack.c.l.b16 %v138
    %v640 = vunpack.c.l.b16 %v139
    %v641 = vunpack.c.l.b16 %v140
    %v642 = vunpack.c.l.b16 %v141
    %v643 = vunpack.c.l.b16 %v142
    %v644 = vunpack.c.l.b16 %v143
    %v645 = vunpack.c.l.b16 %v144
    %v646 = vunpack.c.l.b16 %v145
    %v647 = vunpack.c.l.b16 %v146
    %v648 = vunpack.c.l.b16 %v147
    %v649 = vunpack.c.l.b16 %v148
    %v650 = vunpack.c.l.b16 %v149
    %v651 = vunpack.c.l.b16 %v150
    %v652 = vunpack.c.l.b16 %v151
    %v653 = vunpack.c.l.b16 %v152
    %v654 = vunpack.c.l.b16 %v153
    %v655 = vunpack.c.l.b16 %v154
    %v656 = vunpack.c.l.b16 %v155
    %v657 = vunpack.c.l.b16 %v156
    %v658 = vunpack.c.l.b16 %v157
    %v659 = vunpack.c.l.b16 %v158
    %v660 = vunpack.c.l.b16 %v159
    %v661 = vunpack.c.l.b16 %v160
    %v662 = vunpack.c.l.b16 %v161
    %v663 = vunpack.c.l.b16 %v162
    %v664 = vunpack.c.l.b16 %v163
    %v665 = vunpack.c.l.b16 %v164
    %v666 = vunpack.c.l.b16 %v165
    %v667 = vunpack.c.l.b16 %v166
    %v668 = vunpack.c.l.b16 %v167
    %v669 = vunpack.c.l.b16 %v168
    %v670 = vunpack.c.l.b16 %v169
    %v671 = vunpack.c.l.b16 %v170
    %v672 = vunpack.c.l.b16 %v171
    %v673 = vunpack.c.l.b16 %v172
    %v674 = vunpack.c.l.b16 %v173
    %v675 = vunpack.c.l.b16 %v174
    %v676 = vunpack.c.l.b16 %v175
    %v677 = vunpack.c.l.b16 %v176
    %v678 = vunpack.c.l.b16 %v177
    %v679 = vunpack.c.l.b16 %v178
    %v680 = vunpack.c.l.b16 %v179
    %v681 = vunpack.c.l.b16 %v180
    %v682 = vunpack.c.l.b16 %v181
    %v683 = vunpack.c.l.b16 %v182
    %v684 = vunpack.c.l.b16 %v183
    %v685 = vunpack.c.l.b16 %v184
    %v686 = vunpack.c.l.b16 %v185
    %v687 = vunpack.c.l.b16 %v186
    %v688 = vunpack.c.l.b16 %v187
    %v689 = vunpack.c.l.b16 %v188
    %v690 = vunpack.c.l.b16 %v189
    %v691 = vunpack.c.l.b16 %v190
    %v692 = vunpack.c.l.b16 %v191
    %v693 = vunpack.c.l.b16 %v192
    %v694 = vunpack.c.l.b16 %v193
    %v695 = vunpack.c.l.b16 %v194
    %v696 = vunpack.c.l.b16 %v195
    %v697 = vunpack.c.l.b16 %v196
    %v698 = vunpack.c.l.b16 %v197
    %v699 = vunpack.c.l.b16 %v198
    %v700 = vunpack.c.l.b16 %v199
    %v701 = vunpack.c.l.b16 %v200
    %v702 = vunpack.c.l.b16 %v201
    %v703 = vunpack.c.l.b16 %v202
    %v704 = vunpack.c.l.b16 %v203
    %v705 = vunpack.c.l.b16 %v204
    %v706 = vunpack.c.l.b16 %v205
    %v707 = vunpack.c.l.b16 %v206
    %v708 = vunpack.c.l.b16 %v207
    %v709 = vunpack.c.l.b16 %v208
    %v710 = vunpack.c.l.b16 %v209
    %v711 = vunpack.c.l.b16 %v210
    %v712 = vunpack.c.l.b16 %v211
    %v713 = vunpack.c.l.b16 %v212
    %v714 = vunpack.c.l.b16 %v213
    %v715 = vpack.c.b16 %v520, %v519
    %v716 = vpack.c.b16 %v522, %v521
    %v717 = vpack.c.b16 %v524, %v523
    %v718 = vpack.c.b16 %v526, %v525
    %v719 = vpack.c.b16 %v528, %v527
    %v720 = vpack.c.b16 %v530, %v529
    %v721 = vpack.c.b16 %v532, %v531
    %v722 = vpack.c.b16 %v534, %v533
    %v723 = vpack.c.b16 %v536, %v535
    %v724 = vpack.c.b16 %v538, %v537
    %v725 = vpack.c.b16 %v540, %v539
    %v726 = vpack.c.b16 %v542, %v541
    %v727 = vpack.c.b16 %v544, %v543
    %v728 = vpack.c.b16 %v546, %v545
    %v729 = vpack.c.b16 %v548, %v547
    %v730 = vpack.c.b16 %v550, %v549
    %v731 = vpack.c.b16 %v552, %v551
    %v732 = vpack.c.b16 %v554, %v553
    %v733 = vpack.c.b16 %v556, %v555
    %v734 = vpack.c.b16 %v558, %v557
    %v735 = vpack.c.b16 %v560, %v559
    %v736 = vpack.c.b16 %v562, %v561
    %v737 = vpack.c.b16 %v564, %v563
    %v738 = vpack.c.b16 %v566, %v565
    %v739 = vpack.c.b16 %v568, %v567
    %v740 = vpack.c.b16 %v570, %v569
    %v741 = vpack.c.b16 %v572, %v571
    %v742 = vpack.c.b16 %v574, %v573
    %v743 = vpack.c.b16 %v576, %v575
    %v744 = vpack.c.b16 %v578, %v577
    %v745 = vpack.c.b16 %v580, %v579
    %v746 = vpack.c.b16 %v582, %v581
    %v747 = vpack.c.b16 %v584, %v583
    %v748 = vpack.c.b16 %v586, %v585
    %v749 = vpack.c.b16 %v588, %v587
    %v750 = vpack.c.b16 %v590, %v589
    %v751 = vpack.c.b16 %v592, %v591
    %v752 = vpack.c.b16 %v594, %v593
    %v753 = vpack.c.b16 %v596, %v595
    %v754 = vpack.c.b16 %v598, %v597
    %v755 = vpack.c.b16 %v600, %v599
    %v756 = vpack.c.b16 %v602, %v601
    %v757 = vpack.c.b16 %v604, %v603
    %v758 = vpack.c.b16 %v606, %v605
    %v759 = vpack.c.b16 %v608, %v607
    %v760 = vpack.c.b16 %v610, %v609
    %v761 = vpack.c.b16 %v612, %v611
    %v762 = vpack.c.b16 %v614, %v613
    %v763 = vpack.c.b16 %v616, %v615
    %v764 = vpack.c.b16 %v618, %v617
    %v765 = vpack.c.b16 %v620, %v619
    %v766 = vpack.c.b16 %v622, %v621
    %v767 = vpack.c.b16 %v624, %v623
    %v768 = vpack.c.b16 %v626, %v625
    %v769 = vpack.c.b16 %v628, %v627
    %v770 = vpack.c.b16 %v630, %v629
    %v771 = vpack.c.b16 %v632, %v631
    %v772 = vpack.c.b16 %v634, %v633
    %v773 = vpack.c.b16 %v636, %v635
    %v774 = vpack.c.b16 %v638, %v637
    %v775 = vpack.c.b16 %v640, %v639
    %v776 = vpack.c.b16 %v642, %v641
    %v777 = vpack.c.b16 %v644, %v643
    %v778 = vpack.c.b16 %v646, %v645
    %v779 = vpack.c.b16 %v648, %v647
    %v780 = vpack.c.b16 %v650, %v649
    %v781 = vpack.c.b16 %v652, %v651
    %v782 = vpack.c.b16 %v654, %v653
    %v783 = vpack.c.b16 %v656, %v655
    %v784 = vpack.c.b16 %v658, %v657
    %v785 = vpack.c.b16 %v660, %v659
    %v786 = vpack.c.b16 %v662, %v661
    %v787 = vpack.c.b16 %v664, %v663
    %v788 = vpack.c.b16 %v666, %v665
    %v789 = vpack.c.b16 %v668, %v667
    %v790 = vpack.c.b16 %v670, %v669
    %v791 = vpack.c.b16 %v672, %v671
    %v792 = vpack.c.b16 %v674, %v673
    %v793 = vpack.c.b16 %v676, %v675
    %v794 = vpack.c.b16 %v678, %v677
    %v795 = vpack.c.b16 %v680, %v679
    %v796 = vpack.c.b16 %v682, %v681
    %v797 = vpack.c.b16 %v684, %v683
    %v798 = vpack.c.b16 %v686, %v685
    %v799 = vpack.c.b16 %v688, %v687
    %v800 = vpack.c.b16 %v690, %v689
    %v801 = vpack.c.b16 %v692, %v691
    %v802 = vpack.c.b16 %v694, %v693
    %v803 = vpack.c.b16 %v696, %v695
    %v804 = vpack.c.b16 %v698, %v697
    %v805 = vpack.c.b16 %v700, %v699
    %v806 = vpack.c.b16 %v702, %v701
    %v807 = vpack.c.b16 %v704, %v703
    %v808 = vpack.c.b16 %v706, %v705
    %v809 = vpack.c.b16 %v708, %v707
    %v810 = vpack.c.b16 %v710, %v709
    %v811 = vpack.c.b16 %v712, %v711
    %v812 = vpack.c.b16 %v714, %v713
    %vm911 = vcmask 261120
    %v913 = vsel %vm911, %v301, 0
    %915 = vmatprep.subr.bf16.mxu0 0
    %916 = vmatpush1.bf16.msra.mxu0 %v715
    %917 = vmatprep.subr.bf16.mxu0 0
    %918 = vmatpush1.bf16.msra.mxu0 %v716
    %919 = vmatprep.subr.bf16.mxu0 0
    %920 = vmatpush1.bf16.msra.mxu0 %v717
    %921 = vmatprep.subr.bf16.mxu0 0
    %922 = vmatpush1.bf16.msra.mxu0 %v718
    %923 = vmatprep.subr.bf16.mxu0 0
    %924 = vmatpush1.bf16.msra.mxu0 %v719
    %925 = vmatprep.subr.bf16.mxu0 0
    %926 = vmatpush1.bf16.msra.mxu0 %v720
    %927 = vmatprep.subr.bf16.mxu0 0
    %928 = vmatpush1.bf16.msra.mxu0 %v721
    %929 = vmatprep.subr.bf16.mxu0 0
    %930 = vmatpush1.bf16.msra.mxu0 %v722
    %931 = vmatprep.subr.bf16.mxu0 0
    %932 = vmatpush1.bf16.msra.mxu0 %v723
    %933 = vmatprep.subr.bf16.mxu0 0
    %934 = vmatpush1.bf16.msra.mxu0 %v724
    %935 = vmatprep.subr.bf16.mxu0 0
    %936 = vmatpush1.bf16.msra.mxu0 %v725
    %937 = vmatprep.subr.bf16.mxu0 0
    %938 = vmatpush1.bf16.msra.mxu0 %v726
    %939 = vmatprep.subr.bf16.mxu0 0
    %940 = vmatpush1.bf16.msra.mxu0 %v727
    %941 = vmatprep.subr.bf16.mxu0 0
    %942 = vmatpush1.bf16.msra.mxu0 %v728
    %943 = vmatprep.subr.bf16.mxu0 0
    %944 = vmatpush1.bf16.msra.mxu0 %v729
    %945 = vmatprep.subr.bf16.mxu0 0
    %946 = vmatpush1.bf16.msra.mxu0 %v730
    %947 = vmatprep.mubr.bf16.mxu0 %v260
    %948 = vmatmul.mubr.bf16.gmra.mrb[0].mxu0 %v246
    %v949 = vpop.f32.mrb[0].mxu0
    %v950 = vadd.f32 %v219, %v949
    %v951 = vpop.f32.mrb[0].mxu0
    %v952 = vpop.f32.mrb[0].mxu0
    %v953 = vpop.f32.mrb[0].mxu0
    %954 = vdwg.mxu0
    %955 = vmatprep.subr.bf16.mxu0 0
    %956 = vmatpush1.bf16.msra.mxu0 %v731
    %957 = vmatprep.subr.bf16.mxu0 0
    %958 = vmatpush1.bf16.msra.mxu0 %v732
    %959 = vmatprep.subr.bf16.mxu0 0
    %960 = vmatpush1.bf16.msra.mxu0 %v733
    %961 = vmatprep.subr.bf16.mxu0 0
    %962 = vmatpush1.bf16.msra.mxu0 %v734
    %963 = vmatprep.subr.bf16.mxu0 0
    %964 = vmatpush1.bf16.msra.mxu0 %v735
    %965 = vmatprep.subr.bf16.mxu0 0
    %966 = vmatpush1.bf16.msra.mxu0 %v736
    %967 = vmatprep.subr.bf16.mxu0 0
    %968 = vmatpush1.bf16.msra.mxu0 %v737
    %969 = vmatprep.subr.bf16.mxu0 0
    %970 = vmatpush1.bf16.msra.mxu0 %v738
    %971 = vmatprep.subr.bf16.mxu0 0
    %972 = vmatpush1.bf16.msra.mxu0 %v739
    %973 = vmatprep.subr.bf16.mxu0 0
    %974 = vmatpush1.bf16.msra.mxu0 %v740
    %975 = vmatprep.subr.bf16.mxu0 0
    %976 = vmatpush1.bf16.msra.mxu0 %v741
    %977 = vmatprep.subr.bf16.mxu0 0
    %978 = vmatpush1.bf16.msra.mxu0 %v742
    %979 = vmatprep.subr.bf16.mxu0 0
    %980 = vmatpush1.bf16.msra.mxu0 %v743
    %981 = vmatprep.subr.bf16.mxu0 0
    %982 = vmatpush1.bf16.msra.mxu0 %v744
    %983 = vmatprep.subr.bf16.mxu0 0
    %984 = vmatpush1.bf16.msra.mxu0 %v745
    %985 = vmatprep.subr.bf16.mxu0 0
    %986 = vmatpush1.bf16.msra.mxu0 %v746
    %987 = vmatprep.mubr.bf16.mxu0 %v270
    %988 = vmatmul.mubr.bf16.gmra.mrb[0].mxu0 %v268
    %v989 = vpop.f32.mrb[0].mxu0
    %v990 = vadd.f32 %v950, %v989
    %v991 = vpop.f32.mrb[0].mxu0
    %v992 = vpop.f32.mrb[0].mxu0
    %v993 = vpop.f32.mrb[0].mxu0
    %994 = vdwg.mxu0
    %995 = vmatprep.subr.bf16.mxu0 0
    %996 = vmatpush1.bf16.msra.mxu0 %v747
    %997 = vmatprep.subr.bf16.mxu0 0
    %998 = vmatpush1.bf16.msra.mxu0 %v748
    %999 = vmatprep.subr.bf16.mxu0 0
    %1000 = vmatpush1.bf16.msra.mxu0 %v749
    %1001 = vmatprep.subr.bf16.mxu0 0
    %1002 = vmatpush1.bf16.msra.mxu0 %v750
    %1003 = vmatprep.subr.bf16.mxu0 0
    %1004 = vmatpush1.bf16.msra.mxu0 %v751
    %1005 = vmatprep.subr.bf16.mxu0 0
    %1006 = vmatpush1.bf16.msra.mxu0 %v752
    %1007 = vmatprep.subr.bf16.mxu0 0
    %1008 = vmatpush1.bf16.msra.mxu0 %v753
    %1009 = vmatprep.subr.bf16.mxu0 0
    %1010 = vmatpush1.bf16.msra.mxu0 %v754
    %1011 = vmatprep.subr.bf16.mxu0 0
    %1012 = vmatpush1.bf16.msra.mxu0 %v755
    %1013 = vmatprep.subr.bf16.mxu0 0
    %1014 = vmatpush1.bf16.msra.mxu0 %v756
    %1015 = vmatprep.subr.bf16.mxu0 0
    %1016 = vmatpush1.bf16.msra.mxu0 %v757
    %1017 = vmatprep.subr.bf16.mxu0 0
    %1018 = vmatpush1.bf16.msra.mxu0 %v758
    %1019 = vmatprep.subr.bf16.mxu0 0
    %1020 = vmatpush1.bf16.msra.mxu0 %v759
    %1021 = vmatprep.subr.bf16.mxu0 0
    %1022 = vmatpush1.bf16.msra.mxu0 %v760
    %1023 = vmatprep.subr.bf16.mxu0 0
    %1024 = vmatpush1.bf16.msra.mxu0 %v761
    %1025 = vmatprep.subr.bf16.mxu0 0
    %1026 = vmatpush1.bf16.msra.mxu0 %v762
    %1027 = vmatprep.mubr.bf16.mxu0 %v267
    %1028 = vmatmul.mubr.bf16.gmra.mrb[0].mxu0 %v253
    %v1029 = vpop.f32.mrb[0].mxu0
    %v1030 = vadd.f32 %v990, %v1029
    %v1031 = vpop.f32.mrb[0].mxu0
    %v1032 = vpop.f32.mrb[0].mxu0
    %v1033 = vpop.f32.mrb[0].mxu0
    %1034 = vdwg.mxu0
    %1035 = vmatprep.subr.bf16.mxu0 0
    %1036 = vmatpush1.bf16.msra.mxu0 %v763
    %1037 = vmatprep.subr.bf16.mxu0 0
    %1038 = vmatpush1.bf16.msra.mxu0 %v764
    %1039 = vmatprep.subr.bf16.mxu0 0
    %1040 = vmatpush1.bf16.msra.mxu0 %v765
    %1041 = vmatprep.subr.bf16.mxu0 0
    %1042 = vmatpush1.bf16.msra.mxu0 %v766
    %1043 = vmatprep.subr.bf16.mxu0 0
    %1044 = vmatpush1.bf16.msra.mxu0 %v767
    %1045 = vmatprep.subr.bf16.mxu0 0
    %1046 = vmatpush1.bf16.msra.mxu0 %v768
    %1047 = vmatprep.subr.bf16.mxu0 0
    %1048 = vmatpush1.bf16.msra.mxu0 %v769
    %1049 = vmatprep.subr.bf16.mxu0 0
    %1050 = vmatpush1.bf16.msra.mxu0 %v770
    %1051 = vmatprep.subr.bf16.mxu0 0
    %1052 = vmatpush1.bf16.msra.mxu0 %v771
    %1053 = vmatprep.subr.bf16.mxu0 0
    %1054 = vmatpush1.bf16.msra.mxu0 %v772
    %1055 = vmatprep.subr.bf16.mxu0 0
    %1056 = vmatpush1.bf16.msra.mxu0 %v773
    %1057 = vmatprep.subr.bf16.mxu0 0
    %1058 = vmatpush1.bf16.msra.mxu0 %v774
    %1059 = vmatprep.subr.bf16.mxu0 0
    %1060 = vmatpush1.bf16.msra.mxu0 %v775
    %1061 = vmatprep.subr.bf16.mxu0 0
    %1062 = vmatpush1.bf16.msra.mxu0 %v776
    %1063 = vmatprep.subr.bf16.mxu0 0
    %1064 = vmatpush1.bf16.msra.mxu0 %v777
    %1065 = vmatprep.subr.bf16.mxu0 0
    %1066 = vmatpush1.bf16.msra.mxu0 %v778
    %1067 = vmatprep.mubr.bf16.mxu0 %v271
    %1068 = vmatmul.mubr.bf16.gmra.mrb[0].mxu0 %v269
    %v1069 = vpop.f32.mrb[0].mxu0
    %v1070 = vadd.f32 %v1030, %v1069
    %v1071 = vpop.f32.mrb[0].mxu0
    %v1072 = vpop.f32.mrb[0].mxu0
    %v1073 = vpop.f32.mrb[0].mxu0
    %1074 = vdwg.mxu0
    %1075 = vmatprep.subr.bf16.mxu0 0
    %1076 = vmatpush1.bf16.msra.mxu0 %v779
    %1077 = vmatprep.subr.bf16.mxu0 0
    %1078 = vmatpush1.bf16.msra.mxu0 %v780
    %1079 = vmatprep.subr.bf16.mxu0 0
    %1080 = vmatpush1.bf16.msra.mxu0 %v781
    %1081 = vmatprep.subr.bf16.mxu0 0
    %1082 = vmatpush1.bf16.msra.mxu0 %v782
    %1083 = vmatprep.subr.bf16.mxu0 0
    %1084 = vmatpush1.bf16.msra.mxu0 %v783
    %1085 = vmatprep.subr.bf16.mxu0 0
    %1086 = vmatpush1.bf16.msra.mxu0 %v784
    %1087 = vmatprep.subr.bf16.mxu0 0
    %1088 = vmatpush1.bf16.msra.mxu0 %v785
    %1089 = vmatprep.subr.bf16.mxu0 0
    %1090 = vmatpush1.bf16.msra.mxu0 %v786
    %1091 = vmatprep.subr.bf16.mxu0 0
    %1092 = vmatpush1.bf16.msra.mxu0 %v787
    %1093 = vmatprep.subr.bf16.mxu0 0
    %1094 = vmatpush1.bf16.msra.mxu0 %v788
    %1095 = vmatprep.subr.bf16.mxu0 0
    %1096 = vmatpush1.bf16.msra.mxu0 %v789
    %1097 = vmatprep.subr.bf16.mxu0 0
    %1098 = vmatpush1.bf16.msra.mxu0 %v790
    %1099 = vmatprep.subr.bf16.mxu0 0
    %1100 = vmatpush1.bf16.msra.mxu0 %v791
    %1101 = vmatprep.subr.bf16.mxu0 0
    %1102 = vmatpush1.bf16.msra.mxu0 %v792
    %1103 = vmatprep.subr.bf16.mxu0 0
    %1104 = vmatpush1.bf16.msra.mxu0 %v793
    %1105 = vmatprep.subr.bf16.mxu0 0
    %1106 = vmatpush1.bf16.msra.mxu0 %v794
    %1107 = vmatprep.mubr.bf16.mxu0 %v308
    %1108 = vmatmul.mubr.bf16.gmra.mrb[0].mxu0 %v294
    %v1109 = vpop.f32.mrb[0].mxu0
    %v1110 = vadd.f32 %v1070, %v1109
    %v1111 = vpop.f32.mrb[0].mxu0
    %v1112 = vpop.f32.mrb[0].mxu0
    %v1113 = vpop.f32.mrb[0].mxu0
    %1114 = vdwg.mxu0
    %1115 = vmatprep.subr.bf16.mxu0 0
    %1116 = vmatpush1.bf16.msra.mxu0 %v795
    %1117 = vmatprep.subr.bf16.mxu0 0
    %1118 = vmatpush1.bf16.msra.mxu0 %v796
    %1119 = vmatprep.subr.bf16.mxu0 0
    %1120 = vmatpush1.bf16.msra.mxu0 %v797
    %1121 = vmatprep.subr.bf16.mxu0 0
    %1122 = vmatpush1.bf16.msra.mxu0 %v798
    %1123 = vmatprep.subr.bf16.mxu0 0
    %1124 = vmatpush1.bf16.msra.mxu0 %v799
    %1125 = vmatprep.subr.bf16.mxu0 0
    %1126 = vmatpush1.bf16.msra.mxu0 %v800
    %1127 = vmatprep.subr.bf16.mxu0 0
    %1128 = vmatpush1.bf16.msra.mxu0 %v801
    %1129 = vmatprep.subr.bf16.mxu0 0
    %1130 = vmatpush1.bf16.msra.mxu0 %v802
    %1131 = vmatprep.subr.bf16.mxu0 0
    %1132 = vmatpush1.bf16.msra.mxu0 %v803
    %1133 = vmatprep.subr.bf16.mxu0 0
    %1134 = vmatpush1.bf16.msra.mxu0 %v804
    %1135 = vmatprep.subr.bf16.mxu0 0
    %1136 = vmatpush1.bf16.msra.mxu0 %v805
    %1137 = vmatprep.subr.bf16.mxu0 0
    %1138 = vmatpush1.bf16.msra.mxu0 %v806
    %1139 = vmatprep.subr.bf16.mxu0 0
    %1140 = vmatpush1.bf16.msra.mxu0 %v807
    %1141 = vmatprep.subr.bf16.mxu0 0
    %1142 = vmatpush1.bf16.msra.mxu0 %v808
    %1143 = vmatprep.subr.bf16.mxu0 0
    %1144 = vmatpush1.bf16.msra.mxu0 %v809
    %1145 = vmatprep.subr.bf16.mxu0 0
    %1146 = vmatpush1.bf16.msra.mxu0 %v810
    %1147 = vmatprep.mubr.bf16.mxu0 %v310
    %1148 = vmatmul.mubr.bf16.gmra.mrb[0].mxu0 %v309
    %v1149 = vpop.f32.mrb[0].mxu0
    %v1150 = vadd.f32 %v1110, %v1149
    %v1151 = vpop.f32.mrb[0].mxu0
    %v1152 = vpop.f32.mrb[0].mxu0
    %v1153 = vpop.f32.mrb[0].mxu0
    %1154 = vdwg.mxu0
    %1155 = vmatprep.subr.bf16.mxu0 0
    %1156 = vmatpush1.bf16.msra.mxu0 %v811
    %1157 = vmatprep.subr.bf16.mxu0 0
    %1158 = vmatpush1.bf16.msra.mxu0 %v812
    %1159 = vmatprep.subr.bf16.mxu0 0
    %1160 = vmatpush1.bf16.msra.mxu0 0
    %1161 = vmatprep.subr.bf16.mxu0 0
    %1162 = vmatpush1.bf16.msra.mxu0 0
    %1163 = vmatprep.subr.bf16.mxu0 0
    %1164 = vmatpush1.bf16.msra.mxu0 0
    %1165 = vmatprep.subr.bf16.mxu0 0
    %1166 = vmatpush1.bf16.msra.mxu0 0
    %1167 = vmatprep.subr.bf16.mxu0 0
    %1168 = vmatpush1.bf16.msra.mxu0 0
    %1169 = vmatprep.subr.bf16.mxu0 0
    %1170 = vmatpush1.bf16.msra.mxu0 0
    %1171 = vmatprep.subr.bf16.mxu0 0
    %1172 = vmatpush1.bf16.msra.mxu0 0
    %1173 = vmatprep.subr.bf16.mxu0 0
    %1174 = vmatpush1.bf16.msra.mxu0 0
    %1175 = vmatprep.subr.bf16.mxu0 0
    %1176 = vmatpush1.bf16.msra.mxu0 0
    %1177 = vmatprep.subr.bf16.mxu0 0
    %1178 = vmatpush1.bf16.msra.mxu0 0
    %1179 = vmatprep.subr.bf16.mxu0 0
    %1180 = vmatpush1.bf16.msra.mxu0 0
    %1181 = vmatprep.subr.bf16.mxu0 0
    %1182 = vmatpush1.bf16.msra.mxu0 0
    %1183 = vmatprep.subr.bf16.mxu0 0
    %1184 = vmatpush1.bf16.msra.mxu0 0
    %1185 = vmatprep.subr.bf16.mxu0 0
    %1186 = vmatpush1.bf16.msra.mxu0 0
    %1187 = vmatprep.mubr.bf16.mxu0 0
    %1188 = vmatmul.mubr.bf16.gmra.mrb[0].mxu0 %v913
    %v1189 = vpop.f32.mrb[0].mxu0
    %v1190 = vadd.f32 %v1150, %v1189
    %v1191 = vpop.f32.mrb[0].mxu0
    %v1192 = vpop.f32.mrb[0].mxu0
    %v1193 = vpop.f32.mrb[0].mxu0
    %1194 = vdwg.mxu0
    %vm1195 = vcmask 254976
    %1196 = vst.msk [vmem:[#allocation2] sm:$0x3] %vm1195, %v1190
    // Predicated region
    $region14: #{nature_cnn_forward.3} parent=1 // pred_check
      _
    $region15: #{nature_cnn_forward.3} parent=1 // pred_check_branch
      %1198 = sbr.rel (0) target = $region17
    $region16: #{nature_cnn_forward.3} parent=1 // pred_region
      %s1200 = ssub.s32 32, 32
      %1201 = vsyncadd [#allocation3], %s1200
      %s1203 = sshll.u32 [#allocation2], 4
      %s1204 = int_to_ptr.vmem [resolvable:$true] %s1203
      %1206 = dma.vmem_to_hbm [thread:$0]  %s1204, 32, %s3, [#allocation3]
    $region17: #{nature_cnn_forward.3} parent=1 // pred_fallthru
      _
    // Predicated region
    $region18: #{nature_cnn_forward.3} parent=1 // pred_check
      _
    $region19: #{nature_cnn_forward.3} parent=1 // pred_check_branch
      %1208 = sbr.rel (0) target = $region21
    $region20: #{nature_cnn_forward.3} parent=1 // pred_region
      %1209 = dma.done [#allocation3], 32
    $region21: #{nature_cnn_forward.3} parent=1 // pred_fallthru
      _
    %1210 = vsyncpa [#allocation3], 1

</llo_original>
